<compile_context>
chip_gen: v5e
topology: v5e:2x2
jax: 0.10.0
libtpu: 0.0.40
codegen_flags: <defaults>
</compile_context>

<pallas_src>
import functools

import jax
import jax.numpy as jnp
from jax.experimental import pallas as pl
from jax.experimental.pallas import tpu as pltpu


def _layernorm(x, gamma, beta, eps=1e-5):
    # one-pass mean/variance (E[x^2]-mean^2): one fewer cross-lane reduction per LN.
    mean = jnp.mean(x, axis=-1, keepdims=True)
    mean2 = jnp.mean(x * x, axis=-1, keepdims=True)
    var = mean2 - mean * mean
    return (x - mean) * jax.lax.rsqrt(var + eps) * gamma + beta


def gated_xattn_kernel(y_ref, k_ref, v_ref, tt_ref, mt_ref,
                       ln1_g_ref, ln1_b_ref, wq_ref, wo_ref, gate_attn_ref,
                       ln2_g_ref, ln2_b_ref, w1_ref, w2_ref, gate_ffw_ref,
                       out_ref, *, heads):
    f32, bf16 = jnp.float32, jnp.bfloat16
    trans_b = (((1,), (1,)), ((), ()))       # contract last dims (A @ B.T form)

    y = y_ref[0]                              # (tT, D)  f32
    tt = tt_ref[0]                            # (tT, 1)  i32  cumsum(media_locations)
    mt = mt_ref[...]                          # (1,  MQ) i32  media_time
    mask = tt == mt                           # (tT, MQ) bool
    neg = -jnp.finfo(f32).max

    # ---------------- MaskedCrossAttention ----------------
    yn = _layernorm(y, ln1_g_ref[0], ln1_b_ref[0]).astype(bf16)

    # Per-head 2-D matmuls; all head indexing is on the *leading* dim of the
    # refs (no lane shuffles).  attn_out accumulates directly into (tT, D) f32.
    attn_out = jnp.zeros(y.shape, f32)
    for h in range(heads):                    # static unroll, heads is small
        # q_h = yn @ Wq_h^T   (scale already folded into Wq in the wrapper)
        q_h = jax.lax.dot_general(yn, wq_ref[h], trans_b,
                                  preferred_element_type=f32).astype(bf16)   # (tT, dh)
        sim = jnp.dot(q_h, k_ref[0, h], preferred_element_type=f32)          # (tT, MQ)
        sim = jnp.where(mask, sim, neg)
        sim = sim - jnp.max(sim, axis=-1, keepdims=True)
        e = jnp.exp(sim)
        p = (e * pl.reciprocal(jnp.sum(e, axis=-1, keepdims=True),
                               approx=True)).astype(bf16)                    # (tT, MQ)
        av = jax.lax.dot_general(p, v_ref[0, h], trans_b,
                                 preferred_element_type=f32).astype(bf16)    # (tT, dh)
        attn_out = attn_out + jnp.dot(av, wo_ref[h],
                                      preferred_element_type=f32)            # (tT, D)

    y1 = y + gate_attn_ref[0, 0] * attn_out

    # ---------------- FeedForward: LN -> Linear -> GELU -> Linear ----------
    yn2 = _layernorm(y1, ln2_g_ref[0], ln2_b_ref[0]).astype(bf16)
    h1 = jnp.dot(yn2, w1_ref[...], preferred_element_type=f32)
    # TODO(synk): nn.GELU() default is the exact erf form; tanh-approx is used here.
    h1 = jax.nn.gelu(h1, approximate=True).astype(bf16)
    ff = jnp.dot(h1, w2_ref[...], preferred_element_type=f32)

    out_ref[0] = y1 + gate_ffw_ref[0, 0] * ff


def gated_cross_attention_block(y, visual_features, media_locations, params,
                                *, heads, dim_head, n_visual, seq_tile=None):
    B, T, D = y.shape
    _, M, Q, Dv = visual_features.shape
    assert Q == n_visual
    MQ = M * Q
    dh = dim_head
    HD = heads * dim_head
    Dff = params['w1'].shape[1]
    bf16 = jnp.bfloat16

    if seq_tile is None:
        # 256 fills the 256-wide MXU on v6e/v7x; v5e's 128-wide MXU is fine at 128.
        for cand in (256, 128):
            if T % cand == 0:
                seq_tile = cand
                break
        else:
            seq_tile = T
    assert T % seq_tile == 0
    n_t = T // seq_tile

    # ---------------- wrapper-side (once-per-call) glue ----------------
    # K/V projections are independent of the seq tile -> hoisted out of the grid.
    vf = visual_features.reshape(B, MQ, Dv)
    wk = params['wkv'][:, :HD]
    wv = params['wkv'][:, HD:]
    k = jnp.einsum('bmd,de->bme', vf, wk)                       # (B, MQ, HD) f32
    v = jnp.einsum('bmd,de->bme', vf, wv)
    # head-major, lane-dense on MQ: (B, H, dh, MQ) bf16
    k = k.reshape(B, MQ, heads, dh).transpose(0, 2, 3, 1).astype(bf16)
    v = v.reshape(B, MQ, heads, dh).transpose(0, 2, 3, 1).astype(bf16)

    text_time = jnp.cumsum(media_locations.astype(jnp.int32), axis=-1)[..., None]
    media_time = (jnp.arange(MQ, dtype=jnp.int32) // n_visual + 1)[None, :]

    scale = dim_head ** -0.5
    wq_h = (params['wq'] * scale).T.reshape(heads, dh, D).astype(bf16)   # (H, dh, D)
    wo_h = params['wo'].reshape(heads, dh, D).astype(bf16)               # (H, dh, D)
    w1 = params['w1'].astype(bf16)                                       # (D, Dff)
    w2 = params['w2'].astype(bf16)                                       # (Dff, D)
    gate_attn = jnp.tanh(params['alpha_attn']).reshape(1, 1).astype(jnp.float32)
    gate_ffw = jnp.tanh(params['alpha_ffw']).reshape(1, 1).astype(jnp.float32)

    try:
        vmem_limit = int(0.8 * pltpu.get_tpu_info().vmem_capacity_bytes)
    except Exception:
        vmem_limit = 64 * 1024 * 1024

    kern = functools.partial(gated_xattn_kernel, heads=heads)

    def _run(single_buffer_weights):
        const_kwargs = ({'pipeline_mode': pl.Buffered(1)}
                        if single_buffer_weights else {})

        def const(shape):
            zeros = (0,) * len(shape)
            return pl.BlockSpec(shape, lambda b, t: zeros, **const_kwargs)

        return pl.pallas_call(
            kern,
            out_shape=jax.ShapeDtypeStruct((B, T, D), jnp.float32),
            grid=(B, n_t),
            in_specs=[
                pl.BlockSpec((1, seq_tile, D), lambda b, t: (b, t, 0)),       # y
                pl.BlockSpec((1, heads, dh, MQ), lambda b, t: (b, 0, 0, 0)),  # k
                pl.BlockSpec((1, heads, dh, MQ), lambda b, t: (b, 0, 0, 0)),  # v
                pl.BlockSpec((1, seq_tile, 1), lambda b, t: (b, t, 0)),       # text_time
                const((1, MQ)),           # media_time
                const((1, D)),            # ln1 gamma
                const((1, D)),            # ln1 beta
                const((heads, dh, D)),    # to_q (head-major, scale folded)
                const((heads, dh, D)),    # to_out (head-major)
                const((1, 1)),            # tanh(alpha_attn)
                const((1, D)),            # ffw ln gamma
                const((1, D)),            # ffw ln beta
                const((D, Dff)),          # ffw w1
                const((Dff, D)),          # ffw w2
                const((1, 1)),            # tanh(alpha_ffw)
            ],
            out_specs=pl.BlockSpec((1, seq_tile, D), lambda b, t: (b, t, 0)),
            compiler_params=pltpu.CompilerParams(
                dimension_semantics=("parallel", "parallel"),
                vmem_limit_bytes=vmem_limit),
        )(y, k, v, text_time, media_time,
          params['ln1_g'], params['ln1_b'], wq_h, wo_h, gate_attn,
          params['ln2_g'], params['ln2_b'], w1, w2, gate_ffw)

    try:
        out = _run(True)
    except Exception:
        # pipeline_mode=pl.Buffered(1) not supported by this jax build; fall back
        # to default double-buffered constant blocks (correctness unchanged).
        out = _run(False)

    # output_kv=False path of the PyTorch module -> kv is None
    return out, None


def reference(y, vf4, media_locations, params, *, heads, dim_head, n_visual):
    """Pure-JAX f32 reference mirroring the PyTorch forward."""
    B, T, D = y.shape
    HD = heads * dim_head
    scale = dim_head ** -0.5

    def ln(x, g, b):
        m = jnp.mean(x, -1, keepdims=True)
        v = jnp.mean((x - m) ** 2, -1, keepdims=True)
        return (x - m) * jax.lax.rsqrt(v + 1e-5) * g + b

    yn = ln(y, params['ln1_g'][0], params['ln1_b'][0])
    q = (yn @ params['wq']) * scale
    vf = vf4.reshape(B, -1, vf4.shape[-1])
    kv = vf @ params['wkv']
    k, v = kv[..., :HD], kv[..., HD:]
    q = q.reshape(B, T, heads, dim_head).transpose(0, 2, 1, 3)
    k = k.reshape(B, -1, heads, dim_head).transpose(0, 2, 1, 3)
    v = v.reshape(B, -1, heads, dim_head).transpose(0, 2, 1, 3)
    sim = jnp.einsum('bhid,bhjd->bhij', q, k)
    text_time = jnp.cumsum(media_locations.astype(jnp.int32), -1)
    MQ = k.shape[2]
    media_time = jnp.arange(MQ) // n_visual + 1
    mask = text_time[:, None, :, None] == media_time[None, None, None, :]
    sim = jnp.where(mask, sim, -jnp.finfo(jnp.float32).max)
    sim = sim - jnp.max(sim, -1, keepdims=True)
    alphas = jax.nn.softmax(sim, -1)
    out = jnp.einsum('bhij,bhjd->bhid', alphas, v)
    out = out.transpose(0, 2, 1, 3).reshape(B, T, HD)
    attn_out = out @ params['wo']
    y1 = y + jnp.tanh(params['alpha_attn'][0, 0]) * attn_out
    yn2 = ln(y1, params['ln2_g'][0], params['ln2_b'][0])
    ff = jax.nn.gelu(yn2 @ params['w1'], approximate=True) @ params['w2']
    return y1 + jnp.tanh(params['alpha_ffw'][0, 0]) * ff


if __name__ == "__main__":
    # Small, module-consistent shapes (T=16 with seq_tile=8 exercises the T grid axis).
    B, T, D = 2, 16, 32         # n_batch, n_tokens, dim
    Dv = 16                     # dim_visual
    heads, dim_head = 4, 8
    n_media, n_visual = 2, 4    # n_images, n_queries per image
    ff_mult = 4
    HD = heads * dim_head
    Dff = D * ff_mult

    key = jax.random.PRNGKey(0)
    ks = jax.random.split(key, 10)

    y = jax.random.normal(ks[0], (B, T, D), jnp.float32)
    visual_features = jax.random.normal(ks[1], (B, n_media, n_visual, Dv), jnp.float32)
    # <image> token start positions
    media_locations = (jnp.zeros((B, T), dtype=bool)
                       .at[0, 0].set(True).at[0, 6].set(True)
                       .at[1, 2].set(True).at[1, 9].set(True))

    w = lambda k, s: (0.05 * jax.random.normal(k, s, jnp.float32))
    params = {
        'ln1_g': jnp.ones((1, D), jnp.float32),
        'ln1_b': jnp.zeros((1, D), jnp.float32),
        'wq': w(ks[2], (D, HD)),
        'wkv': w(ks[3], (Dv, 2 * HD)),
        'wo': w(ks[4], (HD, D)),
        # nn.Parameter(torch.tensor([0.0])) in the module; nonzero values so the
        # gated paths are actually exercised.
        'alpha_attn': jnp.full((1, 1), 0.5, jnp.float32),
        'ln2_g': jnp.ones((1, D), jnp.float32),
        'ln2_b': jnp.zeros((1, D), jnp.float32),
        'w1': w(ks[5], (D, Dff)),
        'w2': w(ks[6], (Dff, D)),
        'alpha_ffw': jnp.full((1, 1), 0.25, jnp.float32),
    }

    out, kv = gated_cross_attention_block(
        y, visual_features, media_locations, params,
        heads=heads, dim_head=dim_head, n_visual=n_visual, seq_tile=8)
    out = jax.block_until_ready(out)

    ref = reference(y, visual_features, media_locations, params,
                    heads=heads, dim_head=dim_head, n_visual=n_visual)
    ref = jax.block_until_ready(ref)

    if not jnp.allclose(out, ref, atol=2e-2, rtol=2e-2):
        err = jnp.max(jnp.abs(out - ref))
        raise ValueError(f"Pallas kernel output does not match reference (max err {err})")
    print("KERNEL_OK")
</pallas_src>

<mosaic_0001>
module attributes {stable_mosaic.version = 11 : i64} {
  func.func @gated_xattn_kernel(%arg0: i32, %arg1: i32, %arg2: memref<1x8x32xf32, #tpu.memory_space<vmem>>, %arg3: memref<1x4x8x8xbf16, #tpu.memory_space<vmem>>, %arg4: memref<1x4x8x8xbf16, #tpu.memory_space<vmem>>, %arg5: memref<1x8x1xi32, #tpu.memory_space<vmem>>, %arg6: memref<1x8xi32, #tpu.memory_space<vmem>>, %arg7: memref<1x32xf32, #tpu.memory_space<vmem>>, %arg8: memref<1x32xf32, #tpu.memory_space<vmem>>, %arg9: memref<4x8x32xbf16, #tpu.memory_space<vmem>>, %arg10: memref<4x8x32xbf16, #tpu.memory_space<vmem>>, %arg11: memref<1x1xf32, #tpu.memory_space<vmem>>, %arg12: memref<1x32xf32, #tpu.memory_space<vmem>>, %arg13: memref<1x32xf32, #tpu.memory_space<vmem>>, %arg14: memref<32x128xbf16, #tpu.memory_space<vmem>>, %arg15: memref<128x32xbf16, #tpu.memory_space<vmem>>, %arg16: memref<1x1xf32, #tpu.memory_space<vmem>>, %arg17: memref<1x8x32xf32, #tpu.memory_space<vmem>>) attributes {dimension_semantics = [#tpu.dimension_semantics<parallel>, #tpu.dimension_semantics<parallel>], iteration_bounds = array<i64: 2, 2>, scalar_prefetch = 0 : i64, scratch_operands = 0 : i64, tpu.core_type = #tpu.core_type<tc>, window_params = [{transform_indices = @transform_0, window_bounds = array<i64: 1, 8, 32>}, {transform_indices = @transform_1, window_bounds = array<i64: 1, 4, 8, 8>}, {transform_indices = @transform_2, window_bounds = array<i64: 1, 4, 8, 8>}, {transform_indices = @transform_3, window_bounds = array<i64: 1, 8, 1>}, {pipeline_mode = #tpu.pipeline_mode<synchronous>, transform_indices = @transform_4, window_bounds = array<i64: 1, 8>}, {pipeline_mode = #tpu.pipeline_mode<synchronous>, transform_indices = @transform_5, window_bounds = array<i64: 1, 32>}, {pipeline_mode = #tpu.pipeline_mode<synchronous>, transform_indices = @transform_6, window_bounds = array<i64: 1, 32>}, {pipeline_mode = #tpu.pipeline_mode<synchronous>, transform_indices = @transform_7, window_bounds = array<i64: 4, 8, 32>}, {pipeline_mode = #tpu.pipeline_mode<synchronous>, transform_indices = @transform_8, window_bounds = array<i64: 4, 8, 32>}, {pipeline_mode = #tpu.pipeline_mode<synchronous>, transform_indices = @transform_9, window_bounds = array<i64: 1, 1>}, {pipeline_mode = #tpu.pipeline_mode<synchronous>, transform_indices = @transform_10, window_bounds = array<i64: 1, 32>}, {pipeline_mode = #tpu.pipeline_mode<synchronous>, transform_indices = @transform_11, window_bounds = array<i64: 1, 32>}, {pipeline_mode = #tpu.pipeline_mode<synchronous>, transform_indices = @transform_12, window_bounds = array<i64: 32, 128>}, {pipeline_mode = #tpu.pipeline_mode<synchronous>, transform_indices = @transform_13, window_bounds = array<i64: 128, 32>}, {pipeline_mode = #tpu.pipeline_mode<synchronous>, transform_indices = @transform_14, window_bounds = array<i64: 1, 1>}, {transform_indices = @transform_15, window_bounds = array<i64: 1, 8, 32>}]} {
    %c0 = arith.constant 0 : index
    %c0_0 = arith.constant 0 : index
    %c0_1 = arith.constant 0 : index
    %0 = vector.load %arg2[%c0, %c0_0, %c0_1] : memref<1x8x32xf32, #tpu.memory_space<vmem>>, vector<1x8x32xf32>
    %1 = vector.shape_cast %0 : vector<1x8x32xf32> to vector<8x32xf32>
    %c0_2 = arith.constant 0 : index
    %c0_3 = arith.constant 0 : index
    %c0_4 = arith.constant 0 : index
    %2 = vector.load %arg5[%c0_2, %c0_3, %c0_4] : memref<1x8x1xi32, #tpu.memory_space<vmem>>, vector<1x8x1xi32>
    %3 = vector.shape_cast %2 : vector<1x8x1xi32> to vector<8x1xi32>
    %c0_5 = arith.constant 0 : index
    %c0_6 = arith.constant 0 : index
    %4 = vector.load %arg6[%c0_5, %c0_6] : memref<1x8xi32, #tpu.memory_space<vmem>>, vector<1x8xi32>
    %5 = vector.broadcast %3 : vector<8x1xi32> to vector<8x8xi32>
    %6 = vector.broadcast %4 : vector<1x8xi32> to vector<8x8xi32>
    %7 = arith.cmpi eq, %5, %6 : vector<8x8xi32>
    %c0_7 = arith.constant 0 : index
    %c0_8 = arith.constant 0 : index
    %8 = vector.load %arg7[%c0_7, %c0_8] : memref<1x32xf32, #tpu.memory_space<vmem>>, vector<1x32xf32>
    %9 = vector.shape_cast %8 : vector<1x32xf32> to vector<32xf32>
    %c0_9 = arith.constant 0 : index
    %c0_10 = arith.constant 0 : index
    %10 = vector.load %arg8[%c0_9, %c0_10] : memref<1x32xf32, #tpu.memory_space<vmem>>, vector<1x32xf32>
    %11 = vector.shape_cast %10 : vector<1x32xf32> to vector<32xf32>
    %cst = arith.constant dense<0.000000e+00> : vector<8xf32>
    %12 = vector.multi_reduction <add>, %1, %cst [1] : vector<8x32xf32> to vector<8xf32>
    %13 = vector.shape_cast %12 : vector<8xf32> to vector<8x1xf32>
    %cst_11 = arith.constant 3.200000e+01 : f32
    %14 = vector.broadcast %cst_11 : f32 to vector<8x1xf32>
    %15 = arith.divf %13, %14 : vector<8x1xf32>
    %16 = arith.mulf %1, %1 : vector<8x32xf32>
    %cst_12 = arith.constant dense<0.000000e+00> : vector<8xf32>
    %17 = vector.multi_reduction <add>, %16, %cst_12 [1] : vector<8x32xf32> to vector<8xf32>
    %18 = vector.shape_cast %17 : vector<8xf32> to vector<8x1xf32>
    %cst_13 = arith.constant 3.200000e+01 : f32
    %19 = vector.broadcast %cst_13 : f32 to vector<8x1xf32>
    %20 = arith.divf %18, %19 : vector<8x1xf32>
    %21 = arith.mulf %15, %15 : vector<8x1xf32>
    %22 = arith.subf %20, %21 : vector<8x1xf32>
    %23 = vector.broadcast %15 : vector<8x1xf32> to vector<8x32xf32>
    %24 = arith.subf %1, %23 : vector<8x32xf32>
    %cst_14 = arith.constant 9.99999974E-6 : f32
    %25 = vector.broadcast %cst_14 : f32 to vector<8x1xf32>
    %26 = arith.addf %22, %25 : vector<8x1xf32>
    %27 = math.rsqrt %26 : vector<8x1xf32>
    %28 = vector.broadcast %27 : vector<8x1xf32> to vector<8x32xf32>
    %29 = arith.mulf %24, %28 : vector<8x32xf32>
    %30 = vector.shape_cast %9 : vector<32xf32> to vector<1x32xf32>
    %31 = vector.broadcast %30 : vector<1x32xf32> to vector<8x32xf32>
    %32 = arith.mulf %29, %31 : vector<8x32xf32>
    %33 = vector.shape_cast %11 : vector<32xf32> to vector<1x32xf32>
    %34 = vector.broadcast %33 : vector<1x32xf32> to vector<8x32xf32>
    %35 = arith.addf %32, %34 : vector<8x32xf32>
    %36 = arith.truncf %35 : vector<8x32xf32> to vector<8x32xbf16>
    %cst_15 = arith.constant 0.000000e+00 : f32
    %37 = vector.broadcast %cst_15 : f32 to vector<8x32xf32>
    %c0_16 = arith.constant 0 : index
    %c0_17 = arith.constant 0 : index
    %c0_18 = arith.constant 0 : index
    %38 = vector.load %arg9[%c0_16, %c0_17, %c0_18] : memref<4x8x32xbf16, #tpu.memory_space<vmem>>, vector<1x8x32xbf16>
    %39 = vector.shape_cast %38 : vector<1x8x32xbf16> to vector<8x32xbf16>
    %cst_19 = arith.constant dense<0.000000e+00> : vector<8x8xf32>
    %40 = tpu.matmul %36, %39, %cst_19 {dimension_numbers = #tpu.dot_dimension_numbers<[1], [1], [0], [0], [0, 0, 1, 0], [], []>} : vector<8x32xbf16>, vector<8x32xbf16>, vector<8x8xf32> -> vector<8x8xf32>
    %41 = arith.truncf %40 : vector<8x8xf32> to vector<8x8xbf16>
    %c0_20 = arith.constant 0 : index
    %c0_21 = arith.constant 0 : index
    %c0_22 = arith.constant 0 : index
    %c0_23 = arith.constant 0 : index
    %42 = vector.load %arg3[%c0_20, %c0_21, %c0_22, %c0_23] : memref<1x4x8x8xbf16, #tpu.memory_space<vmem>>, vector<1x1x8x8xbf16>
    %43 = vector.shape_cast %42 : vector<1x1x8x8xbf16> to vector<8x8xbf16>
    %cst_24 = arith.constant dense<0.000000e+00> : vector<8x8xf32>
    %44 = tpu.matmul %41, %43, %cst_24 {dimension_numbers = #tpu.dot_dimension_numbers<[1], [0], [0], [1], [0, 0, 1, 1], [], []>} : vector<8x8xbf16>, vector<8x8xbf16>, vector<8x8xf32> -> vector<8x8xf32>
    %cst_25 = arith.constant -3.40282347E+38 : f32
    %45 = vector.broadcast %cst_25 : f32 to vector<8x8xf32>
    %46 = arith.select %7, %44, %45 : vector<8x8xi1>, vector<8x8xf32>
    %cst_26 = arith.constant dense<0xFF800000> : vector<8xf32>
    %47 = vector.multi_reduction <maximumf>, %46, %cst_26 [1] : vector<8x8xf32> to vector<8xf32>
    %48 = vector.shape_cast %47 : vector<8xf32> to vector<8x1xf32>
    %49 = vector.broadcast %48 : vector<8x1xf32> to vector<8x8xf32>
    %50 = arith.subf %46, %49 : vector<8x8xf32>
    %51 = math.exp %50 : vector<8x8xf32>
    %cst_27 = arith.constant dense<0.000000e+00> : vector<8xf32>
    %52 = vector.multi_reduction <add>, %51, %cst_27 [1] : vector<8x8xf32> to vector<8xf32>
    %53 = vector.shape_cast %52 : vector<8xf32> to vector<8x1xf32>
    %54 = tpu.reciprocal %53 {approx = true} : vector<8x1xf32> -> vector<8x1xf32>
    %55 = vector.broadcast %54 : vector<8x1xf32> to vector<8x8xf32>
    %56 = arith.mulf %51, %55 : vector<8x8xf32>
    %57 = arith.truncf %56 : vector<8x8xf32> to vector<8x8xbf16>
    %c0_28 = arith.constant 0 : index
    %c0_29 = arith.constant 0 : index
    %c0_30 = arith.constant 0 : index
    %c0_31 = arith.constant 0 : index
    %58 = vector.load %arg4[%c0_28, %c0_29, %c0_30, %c0_31] : memref<1x4x8x8xbf16, #tpu.memory_space<vmem>>, vector<1x1x8x8xbf16>
    %59 = vector.shape_cast %58 : vector<1x1x8x8xbf16> to vector<8x8xbf16>
    %cst_32 = arith.constant dense<0.000000e+00> : vector<8x8xf32>
    %60 = tpu.matmul %57, %59, %cst_32 {dimension_numbers = #tpu.dot_dimension_numbers<[1], [1], [0], [0], [0, 0, 1, 0], [], []>} : vector<8x8xbf16>, vector<8x8xbf16>, vector<8x8xf32> -> vector<8x8xf32>
    %61 = arith.truncf %60 : vector<8x8xf32> to vector<8x8xbf16>
    %c0_33 = arith.constant 0 : index
    %c0_34 = arith.constant 0 : index
    %c0_35 = arith.constant 0 : index
    %62 = vector.load %arg10[%c0_33, %c0_34, %c0_35] : memref<4x8x32xbf16, #tpu.memory_space<vmem>>, vector<1x8x32xbf16>
    %63 = vector.shape_cast %62 : vector<1x8x32xbf16> to vector<8x32xbf16>
    %cst_36 = arith.constant dense<0.000000e+00> : vector<8x32xf32>
    %64 = tpu.matmul %61, %63, %cst_36 {dimension_numbers = #tpu.dot_dimension_numbers<[1], [0], [0], [1], [0, 0, 1, 1], [], []>} : vector<8x8xbf16>, vector<8x32xbf16>, vector<8x32xf32> -> vector<8x32xf32>
    %65 = arith.addf %37, %64 : vector<8x32xf32>
    %c1 = arith.constant 1 : index
    %c0_37 = arith.constant 0 : index
    %c0_38 = arith.constant 0 : index
    %66 = vector.load %arg9[%c1, %c0_37, %c0_38] : memref<4x8x32xbf16, #tpu.memory_space<vmem>>, vector<1x8x32xbf16>
    %67 = vector.shape_cast %66 : vector<1x8x32xbf16> to vector<8x32xbf16>
    %cst_39 = arith.constant dense<0.000000e+00> : vector<8x8xf32>
    %68 = tpu.matmul %36, %67, %cst_39 {dimension_numbers = #tpu.dot_dimension_numbers<[1], [1], [0], [0], [0, 0, 1, 0], [], []>} : vector<8x32xbf16>, vector<8x32xbf16>, vector<8x8xf32> -> vector<8x8xf32>
    %69 = arith.truncf %68 : vector<8x8xf32> to vector<8x8xbf16>
    %c0_40 = arith.constant 0 : index
    %c1_41 = arith.constant 1 : index
    %c0_42 = arith.constant 0 : index
    %c0_43 = arith.constant 0 : index
    %70 = vector.load %arg3[%c0_40, %c1_41, %c0_42, %c0_43] : memref<1x4x8x8xbf16, #tpu.memory_space<vmem>>, vector<1x1x8x8xbf16>
    %71 = vector.shape_cast %70 : vector<1x1x8x8xbf16> to vector<8x8xbf16>
    %cst_44 = arith.constant dense<0.000000e+00> : vector<8x8xf32>
    %72 = tpu.matmul %69, %71, %cst_44 {dimension_numbers = #tpu.dot_dimension_numbers<[1], [0], [0], [1], [0, 0, 1, 1], [], []>} : vector<8x8xbf16>, vector<8x8xbf16>, vector<8x8xf32> -> vector<8x8xf32>
    %cst_45 = arith.constant -3.40282347E+38 : f32
    %73 = vector.broadcast %cst_45 : f32 to vector<8x8xf32>
    %74 = arith.select %7, %72, %73 : vector<8x8xi1>, vector<8x8xf32>
    %cst_46 = arith.constant dense<0xFF800000> : vector<8xf32>
    %75 = vector.multi_reduction <maximumf>, %74, %cst_46 [1] : vector<8x8xf32> to vector<8xf32>
    %76 = vector.shape_cast %75 : vector<8xf32> to vector<8x1xf32>
    %77 = vector.broadcast %76 : vector<8x1xf32> to vector<8x8xf32>
    %78 = arith.subf %74, %77 : vector<8x8xf32>
    %79 = math.exp %78 : vector<8x8xf32>
    %cst_47 = arith.constant dense<0.000000e+00> : vector<8xf32>
    %80 = vector.multi_reduction <add>, %79, %cst_47 [1] : vector<8x8xf32> to vector<8xf32>
    %81 = vector.shape_cast %80 : vector<8xf32> to vector<8x1xf32>
    %82 = tpu.reciprocal %81 {approx = true} : vector<8x1xf32> -> vector<8x1xf32>
    %83 = vector.broadcast %82 : vector<8x1xf32> to vector<8x8xf32>
    %84 = arith.mulf %79, %83 : vector<8x8xf32>
    %85 = arith.truncf %84 : vector<8x8xf32> to vector<8x8xbf16>
    %c0_48 = arith.constant 0 : index
    %c1_49 = arith.constant 1 : index
    %c0_50 = arith.constant 0 : index
    %c0_51 = arith.constant 0 : index
    %86 = vector.load %arg4[%c0_48, %c1_49, %c0_50, %c0_51] : memref<1x4x8x8xbf16, #tpu.memory_space<vmem>>, vector<1x1x8x8xbf16>
    %87 = vector.shape_cast %86 : vector<1x1x8x8xbf16> to vector<8x8xbf16>
    %cst_52 = arith.constant dense<0.000000e+00> : vector<8x8xf32>
    %88 = tpu.matmul %85, %87, %cst_52 {dimension_numbers = #tpu.dot_dimension_numbers<[1], [1], [0], [0], [0, 0, 1, 0], [], []>} : vector<8x8xbf16>, vector<8x8xbf16>, vector<8x8xf32> -> vector<8x8xf32>
    %89 = arith.truncf %88 : vector<8x8xf32> to vector<8x8xbf16>
    %c1_53 = arith.constant 1 : index
    %c0_54 = arith.constant 0 : index
    %c0_55 = arith.constant 0 : index
    %90 = vector.load %arg10[%c1_53, %c0_54, %c0_55] : memref<4x8x32xbf16, #tpu.memory_space<vmem>>, vector<1x8x32xbf16>
    %91 = vector.shape_cast %90 : vector<1x8x32xbf16> to vector<8x32xbf16>
    %cst_56 = arith.constant dense<0.000000e+00> : vector<8x32xf32>
    %92 = tpu.matmul %89, %91, %cst_56 {dimension_numbers = #tpu.dot_dimension_numbers<[1], [0], [0], [1], [0, 0, 1, 1], [], []>} : vector<8x8xbf16>, vector<8x32xbf16>, vector<8x32xf32> -> vector<8x32xf32>
    %93 = arith.addf %65, %92 : vector<8x32xf32>
    %c2 = arith.constant 2 : index
    %c0_57 = arith.constant 0 : index
    %c0_58 = arith.constant 0 : index
    %94 = vector.load %arg9[%c2, %c0_57, %c0_58] : memref<4x8x32xbf16, #tpu.memory_space<vmem>>, vector<1x8x32xbf16>
    %95 = vector.shape_cast %94 : vector<1x8x32xbf16> to vector<8x32xbf16>
    %cst_59 = arith.constant dense<0.000000e+00> : vector<8x8xf32>
    %96 = tpu.matmul %36, %95, %cst_59 {dimension_numbers = #tpu.dot_dimension_numbers<[1], [1], [0], [0], [0, 0, 1, 0], [], []>} : vector<8x32xbf16>, vector<8x32xbf16>, vector<8x8xf32> -> vector<8x8xf32>
    %97 = arith.truncf %96 : vector<8x8xf32> to vector<8x8xbf16>
    %c0_60 = arith.constant 0 : index
    %c2_61 = arith.constant 2 : index
    %c0_62 = arith.constant 0 : index
    %c0_63 = arith.constant 0 : index
    %98 = vector.load %arg3[%c0_60, %c2_61, %c0_62, %c0_63] : memref<1x4x8x8xbf16, #tpu.memory_space<vmem>>, vector<1x1x8x8xbf16>
    %99 = vector.shape_cast %98 : vector<1x1x8x8xbf16> to vector<8x8xbf16>
    %cst_64 = arith.constant dense<0.000000e+00> : vector<8x8xf32>
    %100 = tpu.matmul %97, %99, %cst_64 {dimension_numbers = #tpu.dot_dimension_numbers<[1], [0], [0], [1], [0, 0, 1, 1], [], []>} : vector<8x8xbf16>, vector<8x8xbf16>, vector<8x8xf32> -> vector<8x8xf32>
    %cst_65 = arith.constant -3.40282347E+38 : f32
    %101 = vector.broadcast %cst_65 : f32 to vector<8x8xf32>
    %102 = arith.select %7, %100, %101 : vector<8x8xi1>, vector<8x8xf32>
    %cst_66 = arith.constant dense<0xFF800000> : vector<8xf32>
    %103 = vector.multi_reduction <maximumf>, %102, %cst_66 [1] : vector<8x8xf32> to vector<8xf32>
    %104 = vector.shape_cast %103 : vector<8xf32> to vector<8x1xf32>
    %105 = vector.broadcast %104 : vector<8x1xf32> to vector<8x8xf32>
    %106 = arith.subf %102, %105 : vector<8x8xf32>
    %107 = math.exp %106 : vector<8x8xf32>
    %cst_67 = arith.constant dense<0.000000e+00> : vector<8xf32>
    %108 = vector.multi_reduction <add>, %107, %cst_67 [1] : vector<8x8xf32> to vector<8xf32>
    %109 = vector.shape_cast %108 : vector<8xf32> to vector<8x1xf32>
    %110 = tpu.reciprocal %109 {approx = true} : vector<8x1xf32> -> vector<8x1xf32>
    %111 = vector.broadcast %110 : vector<8x1xf32> to vector<8x8xf32>
    %112 = arith.mulf %107, %111 : vector<8x8xf32>
    %113 = arith.truncf %112 : vector<8x8xf32> to vector<8x8xbf16>
    %c0_68 = arith.constant 0 : index
    %c2_69 = arith.constant 2 : index
    %c0_70 = arith.constant 0 : index
    %c0_71 = arith.constant 0 : index
    %114 = vector.load %arg4[%c0_68, %c2_69, %c0_70, %c0_71] : memref<1x4x8x8xbf16, #tpu.memory_space<vmem>>, vector<1x1x8x8xbf16>
    %115 = vector.shape_cast %114 : vector<1x1x8x8xbf16> to vector<8x8xbf16>
    %cst_72 = arith.constant dense<0.000000e+00> : vector<8x8xf32>
    %116 = tpu.matmul %113, %115, %cst_72 {dimension_numbers = #tpu.dot_dimension_numbers<[1], [1], [0], [0], [0, 0, 1, 0], [], []>} : vector<8x8xbf16>, vector<8x8xbf16>, vector<8x8xf32> -> vector<8x8xf32>
    %117 = arith.truncf %116 : vector<8x8xf32> to vector<8x8xbf16>
    %c2_73 = arith.constant 2 : index
    %c0_74 = arith.constant 0 : index
    %c0_75 = arith.constant 0 : index
    %118 = vector.load %arg10[%c2_73, %c0_74, %c0_75] : memref<4x8x32xbf16, #tpu.memory_space<vmem>>, vector<1x8x32xbf16>
    %119 = vector.shape_cast %118 : vector<1x8x32xbf16> to vector<8x32xbf16>
    %cst_76 = arith.constant dense<0.000000e+00> : vector<8x32xf32>
    %120 = tpu.matmul %117, %119, %cst_76 {dimension_numbers = #tpu.dot_dimension_numbers<[1], [0], [0], [1], [0, 0, 1, 1], [], []>} : vector<8x8xbf16>, vector<8x32xbf16>, vector<8x32xf32> -> vector<8x32xf32>
    %121 = arith.addf %93, %120 : vector<8x32xf32>
    %c3 = arith.constant 3 : index
    %c0_77 = arith.constant 0 : index
    %c0_78 = arith.constant 0 : index
    %122 = vector.load %arg9[%c3, %c0_77, %c0_78] : memref<4x8x32xbf16, #tpu.memory_space<vmem>>, vector<1x8x32xbf16>
    %123 = vector.shape_cast %122 : vector<1x8x32xbf16> to vector<8x32xbf16>
    %cst_79 = arith.constant dense<0.000000e+00> : vector<8x8xf32>
    %124 = tpu.matmul %36, %123, %cst_79 {dimension_numbers = #tpu.dot_dimension_numbers<[1], [1], [0], [0], [0, 0, 1, 0], [], []>} : vector<8x32xbf16>, vector<8x32xbf16>, vector<8x8xf32> -> vector<8x8xf32>
    %125 = arith.truncf %124 : vector<8x8xf32> to vector<8x8xbf16>
    %c0_80 = arith.constant 0 : index
    %c3_81 = arith.constant 3 : index
    %c0_82 = arith.constant 0 : index
    %c0_83 = arith.constant 0 : index
    %126 = vector.load %arg3[%c0_80, %c3_81, %c0_82, %c0_83] : memref<1x4x8x8xbf16, #tpu.memory_space<vmem>>, vector<1x1x8x8xbf16>
    %127 = vector.shape_cast %126 : vector<1x1x8x8xbf16> to vector<8x8xbf16>
    %cst_84 = arith.constant dense<0.000000e+00> : vector<8x8xf32>
    %128 = tpu.matmul %125, %127, %cst_84 {dimension_numbers = #tpu.dot_dimension_numbers<[1], [0], [0], [1], [0, 0, 1, 1], [], []>} : vector<8x8xbf16>, vector<8x8xbf16>, vector<8x8xf32> -> vector<8x8xf32>
    %cst_85 = arith.constant -3.40282347E+38 : f32
    %129 = vector.broadcast %cst_85 : f32 to vector<8x8xf32>
    %130 = arith.select %7, %128, %129 : vector<8x8xi1>, vector<8x8xf32>
    %cst_86 = arith.constant dense<0xFF800000> : vector<8xf32>
    %131 = vector.multi_reduction <maximumf>, %130, %cst_86 [1] : vector<8x8xf32> to vector<8xf32>
    %132 = vector.shape_cast %131 : vector<8xf32> to vector<8x1xf32>
    %133 = vector.broadcast %132 : vector<8x1xf32> to vector<8x8xf32>
    %134 = arith.subf %130, %133 : vector<8x8xf32>
    %135 = math.exp %134 : vector<8x8xf32>
    %cst_87 = arith.constant dense<0.000000e+00> : vector<8xf32>
    %136 = vector.multi_reduction <add>, %135, %cst_87 [1] : vector<8x8xf32> to vector<8xf32>
    %137 = vector.shape_cast %136 : vector<8xf32> to vector<8x1xf32>
    %138 = tpu.reciprocal %137 {approx = true} : vector<8x1xf32> -> vector<8x1xf32>
    %139 = vector.broadcast %138 : vector<8x1xf32> to vector<8x8xf32>
    %140 = arith.mulf %135, %139 : vector<8x8xf32>
    %141 = arith.truncf %140 : vector<8x8xf32> to vector<8x8xbf16>
    %c0_88 = arith.constant 0 : index
    %c3_89 = arith.constant 3 : index
    %c0_90 = arith.constant 0 : index
    %c0_91 = arith.constant 0 : index
    %142 = vector.load %arg4[%c0_88, %c3_89, %c0_90, %c0_91] : memref<1x4x8x8xbf16, #tpu.memory_space<vmem>>, vector<1x1x8x8xbf16>
    %143 = vector.shape_cast %142 : vector<1x1x8x8xbf16> to vector<8x8xbf16>
    %cst_92 = arith.constant dense<0.000000e+00> : vector<8x8xf32>
    %144 = tpu.matmul %141, %143, %cst_92 {dimension_numbers = #tpu.dot_dimension_numbers<[1], [1], [0], [0], [0, 0, 1, 0], [], []>} : vector<8x8xbf16>, vector<8x8xbf16>, vector<8x8xf32> -> vector<8x8xf32>
    %145 = arith.truncf %144 : vector<8x8xf32> to vector<8x8xbf16>
    %c3_93 = arith.constant 3 : index
    %c0_94 = arith.constant 0 : index
    %c0_95 = arith.constant 0 : index
    %146 = vector.load %arg10[%c3_93, %c0_94, %c0_95] : memref<4x8x32xbf16, #tpu.memory_space<vmem>>, vector<1x8x32xbf16>
    %147 = vector.shape_cast %146 : vector<1x8x32xbf16> to vector<8x32xbf16>
    %cst_96 = arith.constant dense<0.000000e+00> : vector<8x32xf32>
    %148 = tpu.matmul %145, %147, %cst_96 {dimension_numbers = #tpu.dot_dimension_numbers<[1], [0], [0], [1], [0, 0, 1, 1], [], []>} : vector<8x8xbf16>, vector<8x32xbf16>, vector<8x32xf32> -> vector<8x32xf32>
    %149 = arith.addf %121, %148 : vector<8x32xf32>
    %c0_97 = arith.constant 0 : index
    %c0_98 = arith.constant 0 : index
    %150 = vector.load %arg11[%c0_97, %c0_98] : memref<1x1xf32, #tpu.memory_space<vmem>>, vector<1x1xf32>
    %151 = vector.extract %150[0, 0] : f32 from vector<1x1xf32>
    %152 = vector.broadcast %151 : f32 to vector<8x32xf32>
    %153 = arith.mulf %152, %149 : vector<8x32xf32>
    %154 = arith.addf %1, %153 : vector<8x32xf32>
    %c0_99 = arith.constant 0 : index
    %c0_100 = arith.constant 0 : index
    %155 = vector.load %arg12[%c0_99, %c0_100] : memref<1x32xf32, #tpu.memory_space<vmem>>, vector<1x32xf32>
    %156 = vector.shape_cast %155 : vector<1x32xf32> to vector<32xf32>
    %c0_101 = arith.constant 0 : index
    %c0_102 = arith.constant 0 : index
    %157 = vector.load %arg13[%c0_101, %c0_102] : memref<1x32xf32, #tpu.memory_space<vmem>>, vector<1x32xf32>
    %158 = vector.shape_cast %157 : vector<1x32xf32> to vector<32xf32>
    %cst_103 = arith.constant dense<0.000000e+00> : vector<8xf32>
    %159 = vector.multi_reduction <add>, %154, %cst_103 [1] : vector<8x32xf32> to vector<8xf32>
    %160 = vector.shape_cast %159 : vector<8xf32> to vector<8x1xf32>
    %cst_104 = arith.constant 3.200000e+01 : f32
    %161 = vector.broadcast %cst_104 : f32 to vector<8x1xf32>
    %162 = arith.divf %160, %161 : vector<8x1xf32>
    %163 = arith.mulf %154, %154 : vector<8x32xf32>
    %cst_105 = arith.constant dense<0.000000e+00> : vector<8xf32>
    %164 = vector.multi_reduction <add>, %163, %cst_105 [1] : vector<8x32xf32> to vector<8xf32>
    %165 = vector.shape_cast %164 : vector<8xf32> to vector<8x1xf32>
    %cst_106 = arith.constant 3.200000e+01 : f32
    %166 = vector.broadcast %cst_106 : f32 to vector<8x1xf32>
    %167 = arith.divf %165, %166 : vector<8x1xf32>
    %168 = arith.mulf %162, %162 : vector<8x1xf32>
    %169 = arith.subf %167, %168 : vector<8x1xf32>
    %170 = vector.broadcast %162 : vector<8x1xf32> to vector<8x32xf32>
    %171 = arith.subf %154, %170 : vector<8x32xf32>
    %cst_107 = arith.constant 9.99999974E-6 : f32
    %172 = vector.broadcast %cst_107 : f32 to vector<8x1xf32>
    %173 = arith.addf %169, %172 : vector<8x1xf32>
    %174 = math.rsqrt %173 : vector<8x1xf32>
    %175 = vector.broadcast %174 : vector<8x1xf32> to vector<8x32xf32>
    %176 = arith.mulf %171, %175 : vector<8x32xf32>
    %177 = vector.shape_cast %156 : vector<32xf32> to vector<1x32xf32>
    %178 = vector.broadcast %177 : vector<1x32xf32> to vector<8x32xf32>
    %179 = arith.mulf %176, %178 : vector<8x32xf32>
    %180 = vector.shape_cast %158 : vector<32xf32> to vector<1x32xf32>
    %181 = vector.broadcast %180 : vector<1x32xf32> to vector<8x32xf32>
    %182 = arith.addf %179, %181 : vector<8x32xf32>
    %183 = arith.truncf %182 : vector<8x32xf32> to vector<8x32xbf16>
    %c0_108 = arith.constant 0 : index
    %c0_109 = arith.constant 0 : index
    %184 = vector.load %arg14[%c0_108, %c0_109] : memref<32x128xbf16, #tpu.memory_space<vmem>>, vector<32x128xbf16>
    %cst_110 = arith.constant dense<0.000000e+00> : vector<8x128xf32>
    %185 = tpu.matmul %183, %184, %cst_110 {dimension_numbers = #tpu.dot_dimension_numbers<[1], [0], [0], [1], [0, 0, 1, 1], [], []>} : vector<8x32xbf16>, vector<32x128xbf16>, vector<8x128xf32> -> vector<8x128xf32>
    %186 = arith.mulf %185, %185 : vector<8x128xf32>
    %187 = arith.mulf %185, %186 : vector<8x128xf32>
    %cst_111 = arith.constant 4.471500e-02 : f32
    %188 = vector.broadcast %cst_111 : f32 to vector<8x128xf32>
    %189 = arith.mulf %188, %187 : vector<8x128xf32>
    %190 = arith.addf %185, %189 : vector<8x128xf32>
    %cst_112 = arith.constant 0.797884583 : f32
    %191 = vector.broadcast %cst_112 : f32 to vector<8x128xf32>
    %192 = arith.mulf %191, %190 : vector<8x128xf32>
    %193 = math.tanh %192 : vector<8x128xf32>
    %cst_113 = arith.constant 1.000000e+00 : f32
    %194 = vector.broadcast %cst_113 : f32 to vector<8x128xf32>
    %195 = arith.addf %194, %193 : vector<8x128xf32>
    %cst_114 = arith.constant 5.000000e-01 : f32
    %196 = vector.broadcast %cst_114 : f32 to vector<8x128xf32>
    %197 = arith.mulf %196, %195 : vector<8x128xf32>
    %198 = arith.mulf %185, %197 : vector<8x128xf32>
    %199 = arith.truncf %198 : vector<8x128xf32> to vector<8x128xbf16>
    %c0_115 = arith.constant 0 : index
    %c0_116 = arith.constant 0 : index
    %200 = vector.load %arg15[%c0_115, %c0_116] : memref<128x32xbf16, #tpu.memory_space<vmem>>, vector<128x32xbf16>
    %cst_117 = arith.constant dense<0.000000e+00> : vector<8x32xf32>
    %201 = tpu.matmul %199, %200, %cst_117 {dimension_numbers = #tpu.dot_dimension_numbers<[1], [0], [0], [1], [0, 0, 1, 1], [], []>} : vector<8x128xbf16>, vector<128x32xbf16>, vector<8x32xf32> -> vector<8x32xf32>
    %c0_118 = arith.constant 0 : index
    %c0_119 = arith.constant 0 : index
    %202 = vector.load %arg16[%c0_118, %c0_119] : memref<1x1xf32, #tpu.memory_space<vmem>>, vector<1x1xf32>
    %203 = vector.extract %202[0, 0] : f32 from vector<1x1xf32>
    %204 = vector.broadcast %203 : f32 to vector<8x32xf32>
    %205 = arith.mulf %204, %201 : vector<8x32xf32>
    %206 = arith.addf %154, %205 : vector<8x32xf32>
    %c0_120 = arith.constant 0 : index
    %c0_121 = arith.constant 0 : index
    %c0_122 = arith.constant 0 : index
    %207 = vector.load %arg17[%c0_120, %c0_121, %c0_122] : memref<1x8x32xf32, #tpu.memory_space<vmem>>, vector<1x8x32xf32>
    %208 = vector.shape_cast %207 : vector<1x8x32xf32> to vector<8x32xf32>
    %209 = vector.shape_cast %206 : vector<8x32xf32> to vector<1x8x32xf32>
    tpu.vector_store %arg17[%c0_120, %c0_121, %c0_122], %209 {strides = array<i32>} : memref<1x8x32xf32, #tpu.memory_space<vmem>>, vector<1x8x32xf32>,
    return
  }
  func.func @transform_0(%arg0: i32, %arg1: i32) -> (i32, i32, i32) {
    %c0_i32 = arith.constant 0 : i32
    %c0_i32_0 = arith.constant 0 : i32
    return %arg0, %arg1, %c0_i32 : i32, i32, i32
  }
  func.func @transform_1(%arg0: i32, %arg1: i32) -> (i32, i32, i32, i32) {
    %c0_i32 = arith.constant 0 : i32
    %c0_i32_0 = arith.constant 0 : i32
    %c0_i32_1 = arith.constant 0 : i32
    %c0_i32_2 = arith.constant 0 : i32
    return %arg0, %c0_i32, %c0_i32_0, %c0_i32_1 : i32, i32, i32, i32
  }
  func.func @transform_2(%arg0: i32, %arg1: i32) -> (i32, i32, i32, i32) {
    %c0_i32 = arith.constant 0 : i32
    %c0_i32_0 = arith.constant 0 : i32
    %c0_i32_1 = arith.constant 0 : i32
    %c0_i32_2 = arith.constant 0 : i32
    return %arg0, %c0_i32, %c0_i32_0, %c0_i32_1 : i32, i32, i32, i32
  }
  func.func @transform_3(%arg0: i32, %arg1: i32) -> (i32, i32, i32) {
    %c0_i32 = arith.constant 0 : i32
    %c0_i32_0 = arith.constant 0 : i32
    return %arg0, %arg1, %c0_i32 : i32, i32, i32
  }
  func.func @transform_4(%arg0: i32, %arg1: i32) -> (i32, i32) {
    %c0_i32 = arith.constant 0 : i32
    %c0_i32_0 = arith.constant 0 : i32
    %c0_i32_1 = arith.constant 0 : i32
    return %c0_i32, %c0_i32_0 : i32, i32
  }
  func.func @transform_5(%arg0: i32, %arg1: i32) -> (i32, i32) {
    %c0_i32 = arith.constant 0 : i32
    %c0_i32_0 = arith.constant 0 : i32
    %c0_i32_1 = arith.constant 0 : i32
    return %c0_i32, %c0_i32_0 : i32, i32
  }
  func.func @transform_6(%arg0: i32, %arg1: i32) -> (i32, i32) {
    %c0_i32 = arith.constant 0 : i32
    %c0_i32_0 = arith.constant 0 : i32
    %c0_i32_1 = arith.constant 0 : i32
    return %c0_i32, %c0_i32_0 : i32, i32
  }
  func.func @transform_7(%arg0: i32, %arg1: i32) -> (i32, i32, i32) {
    %c0_i32 = arith.constant 0 : i32
    %c0_i32_0 = arith.constant 0 : i32
    %c0_i32_1 = arith.constant 0 : i32
    %c0_i32_2 = arith.constant 0 : i32
    return %c0_i32, %c0_i32_0, %c0_i32_1 : i32, i32, i32
  }
  func.func @transform_8(%arg0: i32, %arg1: i32) -> (i32, i32, i32) {
    %c0_i32 = arith.constant 0 : i32
    %c0_i32_0 = arith.constant 0 : i32
    %c0_i32_1 = arith.constant 0 : i32
    %c0_i32_2 = arith.constant 0 : i32
    return %c0_i32, %c0_i32_0, %c0_i32_1 : i32, i32, i32
  }
  func.func @transform_9(%arg0: i32, %arg1: i32) -> (i32, i32) {
    %c0_i32 = arith.constant 0 : i32
    %c0_i32_0 = arith.constant 0 : i32
    %c0_i32_1 = arith.constant 0 : i32
    return %c0_i32, %c0_i32_0 : i32, i32
  }
  func.func @transform_10(%arg0: i32, %arg1: i32) -> (i32, i32) {
    %c0_i32 = arith.constant 0 : i32
    %c0_i32_0 = arith.constant 0 : i32
    %c0_i32_1 = arith.constant 0 : i32
    return %c0_i32, %c0_i32_0 : i32, i32
  }
  func.func @transform_11(%arg0: i32, %arg1: i32) -> (i32, i32) {
    %c0_i32 = arith.constant 0 : i32
    %c0_i32_0 = arith.constant 0 : i32
    %c0_i32_1 = arith.constant 0 : i32
    return %c0_i32, %c0_i32_0 : i32, i32
  }
  func.func @transform_12(%arg0: i32, %arg1: i32) -> (i32, i32) {
    %c0_i32 = arith.constant 0 : i32
    %c0_i32_0 = arith.constant 0 : i32
    %c0_i32_1 = arith.constant 0 : i32
    return %c0_i32, %c0_i32_0 : i32, i32
  }
  func.func @transform_13(%arg0: i32, %arg1: i32) -> (i32, i32) {
    %c0_i32 = arith.constant 0 : i32
    %c0_i32_0 = arith.constant 0 : i32
    %c0_i32_1 = arith.constant 0 : i32
    return %c0_i32, %c0_i32_0 : i32, i32
  }
  func.func @transform_14(%arg0: i32, %arg1: i32) -> (i32, i32) {
    %c0_i32 = arith.constant 0 : i32
    %c0_i32_0 = arith.constant 0 : i32
    %c0_i32_1 = arith.constant 0 : i32
    return %c0_i32, %c0_i32_0 : i32, i32
  }
  func.func @transform_15(%arg0: i32, %arg1: i32) -> (i32, i32, i32) {
    %c0_i32 = arith.constant 0 : i32
    %c0_i32_0 = arith.constant 0 : i32
    return %arg0, %arg1, %c0_i32 : i32, i32, i32
  }
}

module attributes {stable_mosaic.version = 11 : i64} {
  func.func @gated_xattn_kernel(%arg0: i32, %arg1: i32, %arg2: memref<1x8x32xf32, #tpu.memory_space<vmem>>, %arg3: memref<1x4x8x8xbf16, #tpu.memory_space<vmem>>, %arg4: memref<1x4x8x8xbf16, #tpu.memory_space<vmem>>, %arg5: memref<1x8x1xi32, #tpu.memory_space<vmem>>, %arg6: memref<1x8xi32, #tpu.memory_space<vmem>>, %arg7: memref<1x32xf32, #tpu.memory_space<vmem>>, %arg8: memref<1x32xf32, #tpu.memory_space<vmem>>, %arg9: memref<4x8x32xbf16, #tpu.memory_space<vmem>>, %arg10: memref<4x8x32xbf16, #tpu.memory_space<vmem>>, %arg11: memref<1x1xf32, #tpu.memory_space<vmem>>, %arg12: memref<1x32xf32, #tpu.memory_space<vmem>>, %arg13: memref<1x32xf32, #tpu.memory_space<vmem>>, %arg14: memref<32x128xbf16, #tpu.memory_space<vmem>>, %arg15: memref<128x32xbf16, #tpu.memory_space<vmem>>, %arg16: memref<1x1xf32, #tpu.memory_space<vmem>>, %arg17: memref<1x8x32xf32, #tpu.memory_space<vmem>>) attributes {dimension_semantics = [#tpu.dimension_semantics<parallel>, #tpu.dimension_semantics<parallel>], iteration_bounds = array<i64: 2, 2>, scalar_prefetch = 0 : i64, scratch_operands = 0 : i64, tpu.core_type = #tpu.core_type<tc>, window_params = [{transform_indices = @transform_0, window_bounds = array<i64: 1, 8, 32>}, {transform_indices = @transform_1, window_bounds = array<i64: 1, 4, 8, 8>}, {transform_indices = @transform_2, window_bounds = array<i64: 1, 4, 8, 8>}, {transform_indices = @transform_3, window_bounds = array<i64: 1, 8, 1>}, {pipeline_mode = #tpu.pipeline_mode<synchronous>, transform_indices = @transform_4, window_bounds = array<i64: 1, 8>}, {pipeline_mode = #tpu.pipeline_mode<synchronous>, transform_indices = @transform_5, window_bounds = array<i64: 1, 32>}, {pipeline_mode = #tpu.pipeline_mode<synchronous>, transform_indices = @transform_6, window_bounds = array<i64: 1, 32>}, {pipeline_mode = #tpu.pipeline_mode<synchronous>, transform_indices = @transform_7, window_bounds = array<i64: 4, 8, 32>}, {pipeline_mode = #tpu.pipeline_mode<synchronous>, transform_indices = @transform_8, window_bounds = array<i64: 4, 8, 32>}, {pipeline_mode = #tpu.pipeline_mode<synchronous>, transform_indices = @transform_9, window_bounds = array<i64: 1, 1>}, {pipeline_mode = #tpu.pipeline_mode<synchronous>, transform_indices = @transform_10, window_bounds = array<i64: 1, 32>}, {pipeline_mode = #tpu.pipeline_mode<synchronous>, transform_indices = @transform_11, window_bounds = array<i64: 1, 32>}, {pipeline_mode = #tpu.pipeline_mode<synchronous>, transform_indices = @transform_12, window_bounds = array<i64: 32, 128>}, {pipeline_mode = #tpu.pipeline_mode<synchronous>, transform_indices = @transform_13, window_bounds = array<i64: 128, 32>}, {pipeline_mode = #tpu.pipeline_mode<synchronous>, transform_indices = @transform_14, window_bounds = array<i64: 1, 1>}, {transform_indices = @transform_15, window_bounds = array<i64: 1, 8, 32>}]} {
    %c0 = arith.constant 0 : index
    %c0_0 = arith.constant 0 : index
    %c0_1 = arith.constant 0 : index
    %0 = vector.load %arg2[%c0, %c0_0, %c0_1] : memref<1x8x32xf32, #tpu.memory_space<vmem>>, vector<1x8x32xf32>
    %1 = vector.shape_cast %0 : vector<1x8x32xf32> to vector<8x32xf32>
    %c0_2 = arith.constant 0 : index
    %c0_3 = arith.constant 0 : index
    %c0_4 = arith.constant 0 : index
    %2 = vector.load %arg5[%c0_2, %c0_3, %c0_4] : memref<1x8x1xi32, #tpu.memory_space<vmem>>, vector<1x8x1xi32>
    %3 = vector.shape_cast %2 : vector<1x8x1xi32> to vector<8x1xi32>
    %c0_5 = arith.constant 0 : index
    %c0_6 = arith.constant 0 : index
    %4 = vector.load %arg6[%c0_5, %c0_6] : memref<1x8xi32, #tpu.memory_space<vmem>>, vector<1x8xi32>
    %5 = vector.broadcast %3 : vector<8x1xi32> to vector<8x8xi32>
    %6 = vector.broadcast %4 : vector<1x8xi32> to vector<8x8xi32>
    %7 = arith.cmpi eq, %5, %6 : vector<8x8xi32>
    %c0_7 = arith.constant 0 : index
    %c0_8 = arith.constant 0 : index
    %8 = vector.load %arg7[%c0_7, %c0_8] : memref<1x32xf32, #tpu.memory_space<vmem>>, vector<1x32xf32>
    %9 = vector.shape_cast %8 : vector<1x32xf32> to vector<32xf32>
    %c0_9 = arith.constant 0 : index
    %c0_10 = arith.constant 0 : index
    %10 = vector.load %arg8[%c0_9, %c0_10] : memref<1x32xf32, #tpu.memory_space<vmem>>, vector<1x32xf32>
    %11 = vector.shape_cast %10 : vector<1x32xf32> to vector<32xf32>
    %cst = arith.constant dense<0.000000e+00> : vector<8xf32>
    %12 = vector.multi_reduction <add>, %1, %cst [1] : vector<8x32xf32> to vector<8xf32>
    %13 = vector.shape_cast %12 : vector<8xf32> to vector<8x1xf32>
    %cst_11 = arith.constant 3.200000e+01 : f32
    %14 = vector.broadcast %cst_11 : f32 to vector<8x1xf32>
    %15 = arith.divf %13, %14 : vector<8x1xf32>
    %16 = arith.mulf %1, %1 : vector<8x32xf32>
    %cst_12 = arith.constant dense<0.000000e+00> : vector<8xf32>
    %17 = vector.multi_reduction <add>, %16, %cst_12 [1] : vector<8x32xf32> to vector<8xf32>
    %18 = vector.shape_cast %17 : vector<8xf32> to vector<8x1xf32>
    %cst_13 = arith.constant 3.200000e+01 : f32
    %19 = vector.broadcast %cst_13 : f32 to vector<8x1xf32>
    %20 = arith.divf %18, %19 : vector<8x1xf32>
    %21 = arith.mulf %15, %15 : vector<8x1xf32>
    %22 = arith.subf %20, %21 : vector<8x1xf32>
    %23 = vector.broadcast %15 : vector<8x1xf32> to vector<8x32xf32>
    %24 = arith.subf %1, %23 : vector<8x32xf32>
    %cst_14 = arith.constant 9.99999974E-6 : f32
    %25 = vector.broadcast %cst_14 : f32 to vector<8x1xf32>
    %26 = arith.addf %22, %25 : vector<8x1xf32>
    %27 = math.rsqrt %26 : vector<8x1xf32>
    %28 = vector.broadcast %27 : vector<8x1xf32> to vector<8x32xf32>
    %29 = arith.mulf %24, %28 : vector<8x32xf32>
    %30 = vector.shape_cast %9 : vector<32xf32> to vector<1x32xf32>
    %31 = vector.broadcast %30 : vector<1x32xf32> to vector<8x32xf32>
    %32 = arith.mulf %29, %31 : vector<8x32xf32>
    %33 = vector.shape_cast %11 : vector<32xf32> to vector<1x32xf32>
    %34 = vector.broadcast %33 : vector<1x32xf32> to vector<8x32xf32>
    %35 = arith.addf %32, %34 : vector<8x32xf32>
    %36 = arith.truncf %35 : vector<8x32xf32> to vector<8x32xbf16>
    %cst_15 = arith.constant 0.000000e+00 : f32
    %37 = vector.broadcast %cst_15 : f32 to vector<8x32xf32>
    %c0_16 = arith.constant 0 : index
    %c0_17 = arith.constant 0 : index
    %c0_18 = arith.constant 0 : index
    %38 = vector.load %arg9[%c0_16, %c0_17, %c0_18] : memref<4x8x32xbf16, #tpu.memory_space<vmem>>, vector<1x8x32xbf16>
    %39 = vector.shape_cast %38 : vector<1x8x32xbf16> to vector<8x32xbf16>
    %cst_19 = arith.constant dense<0.000000e+00> : vector<8x8xf32>
    %40 = tpu.matmul %36, %39, %cst_19 {dimension_numbers = #tpu.dot_dimension_numbers<[1], [1], [0], [0], [0, 0, 1, 0], [], []>} : vector<8x32xbf16>, vector<8x32xbf16>, vector<8x8xf32> -> vector<8x8xf32>
    %41 = arith.truncf %40 : vector<8x8xf32> to vector<8x8xbf16>
    %c0_20 = arith.constant 0 : index
    %c0_21 = arith.constant 0 : index
    %c0_22 = arith.constant 0 : index
    %c0_23 = arith.constant 0 : index
    %42 = vector.load %arg3[%c0_20, %c0_21, %c0_22, %c0_23] : memref<1x4x8x8xbf16, #tpu.memory_space<vmem>>, vector<1x1x8x8xbf16>
    %43 = vector.shape_cast %42 : vector<1x1x8x8xbf16> to vector<8x8xbf16>
    %cst_24 = arith.constant dense<0.000000e+00> : vector<8x8xf32>
    %44 = tpu.matmul %41, %43, %cst_24 {dimension_numbers = #tpu.dot_dimension_numbers<[1], [0], [0], [1], [0, 0, 1, 1], [], []>} : vector<8x8xbf16>, vector<8x8xbf16>, vector<8x8xf32> -> vector<8x8xf32>
    %cst_25 = arith.constant -3.40282347E+38 : f32
    %45 = vector.broadcast %cst_25 : f32 to vector<8x8xf32>
    %46 = arith.select %7, %44, %45 : vector<8x8xi1>, vector<8x8xf32>
    %cst_26 = arith.constant dense<0xFF800000> : vector<8xf32>
    %47 = vector.multi_reduction <maximumf>, %46, %cst_26 [1] : vector<8x8xf32> to vector<8xf32>
    %48 = vector.shape_cast %47 : vector<8xf32> to vector<8x1xf32>
    %49 = vector.broadcast %48 : vector<8x1xf32> to vector<8x8xf32>
    %50 = arith.subf %46, %49 : vector<8x8xf32>
    %51 = math.exp %50 : vector<8x8xf32>
    %cst_27 = arith.constant dense<0.000000e+00> : vector<8xf32>
    %52 = vector.multi_reduction <add>, %51, %cst_27 [1] : vector<8x8xf32> to vector<8xf32>
    %53 = vector.shape_cast %52 : vector<8xf32> to vector<8x1xf32>
    %54 = tpu.reciprocal %53 {approx = true} : vector<8x1xf32> -> vector<8x1xf32>
    %55 = vector.broadcast %54 : vector<8x1xf32> to vector<8x8xf32>
    %56 = arith.mulf %51, %55 : vector<8x8xf32>
    %57 = arith.truncf %56 : vector<8x8xf32> to vector<8x8xbf16>
    %c0_28 = arith.constant 0 : index
    %c0_29 = arith.constant 0 : index
    %c0_30 = arith.constant 0 : index
    %c0_31 = arith.constant 0 : index
    %58 = vector.load %arg4[%c0_28, %c0_29, %c0_30, %c0_31] : memref<1x4x8x8xbf16, #tpu.memory_space<vmem>>, vector<1x1x8x8xbf16>
    %59 = vector.shape_cast %58 : vector<1x1x8x8xbf16> to vector<8x8xbf16>
    %cst_32 = arith.constant dense<0.000000e+00> : vector<8x8xf32>
    %60 = tpu.matmul %57, %59, %cst_32 {dimension_numbers = #tpu.dot_dimension_numbers<[1], [1], [0], [0], [0, 0, 1, 0], [], []>} : vector<8x8xbf16>, vector<8x8xbf16>, vector<8x8xf32> -> vector<8x8xf32>
    %61 = arith.truncf %60 : vector<8x8xf32> to vector<8x8xbf16>
    %c0_33 = arith.constant 0 : index
    %c0_34 = arith.constant 0 : index
    %c0_35 = arith.constant 0 : index
    %62 = vector.load %arg10[%c0_33, %c0_34, %c0_35] : memref<4x8x32xbf16, #tpu.memory_space<vmem>>, vector<1x8x32xbf16>
    %63 = vector.shape_cast %62 : vector<1x8x32xbf16> to vector<8x32xbf16>
    %cst_36 = arith.constant dense<0.000000e+00> : vector<8x32xf32>
    %64 = tpu.matmul %61, %63, %cst_36 {dimension_numbers = #tpu.dot_dimension_numbers<[1], [0], [0], [1], [0, 0, 1, 1], [], []>} : vector<8x8xbf16>, vector<8x32xbf16>, vector<8x32xf32> -> vector<8x32xf32>
    %65 = arith.addf %37, %64 : vector<8x32xf32>
    %c1 = arith.constant 1 : index
    %c0_37 = arith.constant 0 : index
    %c0_38 = arith.constant 0 : index
    %66 = vector.load %arg9[%c1, %c0_37, %c0_38] : memref<4x8x32xbf16, #tpu.memory_space<vmem>>, vector<1x8x32xbf16>
    %67 = vector.shape_cast %66 : vector<1x8x32xbf16> to vector<8x32xbf16>
    %cst_39 = arith.constant dense<0.000000e+00> : vector<8x8xf32>
    %68 = tpu.matmul %36, %67, %cst_39 {dimension_numbers = #tpu.dot_dimension_numbers<[1], [1], [0], [0], [0, 0, 1, 0], [], []>} : vector<8x32xbf16>, vector<8x32xbf16>, vector<8x8xf32> -> vector<8x8xf32>
    %69 = arith.truncf %68 : vector<8x8xf32> to vector<8x8xbf16>
    %c0_40 = arith.constant 0 : index
    %c1_41 = arith.constant 1 : index
    %c0_42 = arith.constant 0 : index
    %c0_43 = arith.constant 0 : index
    %70 = vector.load %arg3[%c0_40, %c1_41, %c0_42, %c0_43] : memref<1x4x8x8xbf16, #tpu.memory_space<vmem>>, vector<1x1x8x8xbf16>
    %71 = vector.shape_cast %70 : vector<1x1x8x8xbf16> to vector<8x8xbf16>
    %cst_44 = arith.constant dense<0.000000e+00> : vector<8x8xf32>
    %72 = tpu.matmul %69, %71, %cst_44 {dimension_numbers = #tpu.dot_dimension_numbers<[1], [0], [0], [1], [0, 0, 1, 1], [], []>} : vector<8x8xbf16>, vector<8x8xbf16>, vector<8x8xf32> -> vector<8x8xf32>
    %cst_45 = arith.constant -3.40282347E+38 : f32
    %73 = vector.broadcast %cst_45 : f32 to vector<8x8xf32>
    %74 = arith.select %7, %72, %73 : vector<8x8xi1>, vector<8x8xf32>
    %cst_46 = arith.constant dense<0xFF800000> : vector<8xf32>
    %75 = vector.multi_reduction <maximumf>, %74, %cst_46 [1] : vector<8x8xf32> to vector<8xf32>
    %76 = vector.shape_cast %75 : vector<8xf32> to vector<8x1xf32>
    %77 = vector.broadcast %76 : vector<8x1xf32> to vector<8x8xf32>
    %78 = arith.subf %74, %77 : vector<8x8xf32>
    %79 = math.exp %78 : vector<8x8xf32>
    %cst_47 = arith.constant dense<0.000000e+00> : vector<8xf32>
    %80 = vector.multi_reduction <add>, %79, %cst_47 [1] : vector<8x8xf32> to vector<8xf32>
    %81 = vector.shape_cast %80 : vector<8xf32> to vector<8x1xf32>
    %82 = tpu.reciprocal %81 {approx = true} : vector<8x1xf32> -> vector<8x1xf32>
    %83 = vector.broadcast %82 : vector<8x1xf32> to vector<8x8xf32>
    %84 = arith.mulf %79, %83 : vector<8x8xf32>
    %85 = arith.truncf %84 : vector<8x8xf32> to vector<8x8xbf16>
    %c0_48 = arith.constant 0 : index
    %c1_49 = arith.constant 1 : index
    %c0_50 = arith.constant 0 : index
    %c0_51 = arith.constant 0 : index
    %86 = vector.load %arg4[%c0_48, %c1_49, %c0_50, %c0_51] : memref<1x4x8x8xbf16, #tpu.memory_space<vmem>>, vector<1x1x8x8xbf16>
    %87 = vector.shape_cast %86 : vector<1x1x8x8xbf16> to vector<8x8xbf16>
    %cst_52 = arith.constant dense<0.000000e+00> : vector<8x8xf32>
    %88 = tpu.matmul %85, %87, %cst_52 {dimension_numbers = #tpu.dot_dimension_numbers<[1], [1], [0], [0], [0, 0, 1, 0], [], []>} : vector<8x8xbf16>, vector<8x8xbf16>, vector<8x8xf32> -> vector<8x8xf32>
    %89 = arith.truncf %88 : vector<8x8xf32> to vector<8x8xbf16>
    %c1_53 = arith.constant 1 : index
    %c0_54 = arith.constant 0 : index
    %c0_55 = arith.constant 0 : index
    %90 = vector.load %arg10[%c1_53, %c0_54, %c0_55] : memref<4x8x32xbf16, #tpu.memory_space<vmem>>, vector<1x8x32xbf16>
    %91 = vector.shape_cast %90 : vector<1x8x32xbf16> to vector<8x32xbf16>
    %cst_56 = arith.constant dense<0.000000e+00> : vector<8x32xf32>
    %92 = tpu.matmul %89, %91, %cst_56 {dimension_numbers = #tpu.dot_dimension_numbers<[1], [0], [0], [1], [0, 0, 1, 1], [], []>} : vector<8x8xbf16>, vector<8x32xbf16>, vector<8x32xf32> -> vector<8x32xf32>
    %93 = arith.addf %65, %92 : vector<8x32xf32>
    %c2 = arith.constant 2 : index
    %c0_57 = arith.constant 0 : index
    %c0_58 = arith.constant 0 : index
    %94 = vector.load %arg9[%c2, %c0_57, %c0_58] : memref<4x8x32xbf16, #tpu.memory_space<vmem>>, vector<1x8x32xbf16>
    %95 = vector.shape_cast %94 : vector<1x8x32xbf16> to vector<8x32xbf16>
    %cst_59 = arith.constant dense<0.000000e+00> : vector<8x8xf32>
    %96 = tpu.matmul %36, %95, %cst_59 {dimension_numbers = #tpu.dot_dimension_numbers<[1], [1], [0], [0], [0, 0, 1, 0], [], []>} : vector<8x32xbf16>, vector<8x32xbf16>, vector<8x8xf32> -> vector<8x8xf32>
    %97 = arith.truncf %96 : vector<8x8xf32> to vector<8x8xbf16>
    %c0_60 = arith.constant 0 : index
    %c2_61 = arith.constant 2 : index
    %c0_62 = arith.constant 0 : index
    %c0_63 = arith.constant 0 : index
    %98 = vector.load %arg3[%c0_60, %c2_61, %c0_62, %c0_63] : memref<1x4x8x8xbf16, #tpu.memory_space<vmem>>, vector<1x1x8x8xbf16>
    %99 = vector.shape_cast %98 : vector<1x1x8x8xbf16> to vector<8x8xbf16>
    %cst_64 = arith.constant dense<0.000000e+00> : vector<8x8xf32>
    %100 = tpu.matmul %97, %99, %cst_64 {dimension_numbers = #tpu.dot_dimension_numbers<[1], [0], [0], [1], [0, 0, 1, 1], [], []>} : vector<8x8xbf16>, vector<8x8xbf16>, vector<8x8xf32> -> vector<8x8xf32>
    %cst_65 = arith.constant -3.40282347E+38 : f32
    %101 = vector.broadcast %cst_65 : f32 to vector<8x8xf32>
    %102 = arith.select %7, %100, %101 : vector<8x8xi1>, vector<8x8xf32>
    %cst_66 = arith.constant dense<0xFF800000> : vector<8xf32>
    %103 = vector.multi_reduction <maximumf>, %102, %cst_66 [1] : vector<8x8xf32> to vector<8xf32>
    %104 = vector.shape_cast %103 : vector<8xf32> to vector<8x1xf32>
    %105 = vector.broadcast %104 : vector<8x1xf32> to vector<8x8xf32>
    %106 = arith.subf %102, %105 : vector<8x8xf32>
    %107 = math.exp %106 : vector<8x8xf32>
    %cst_67 = arith.constant dense<0.000000e+00> : vector<8xf32>
    %108 = vector.multi_reduction <add>, %107, %cst_67 [1] : vector<8x8xf32> to vector<8xf32>
    %109 = vector.shape_cast %108 : vector<8xf32> to vector<8x1xf32>
    %110 = tpu.reciprocal %109 {approx = true} : vector<8x1xf32> -> vector<8x1xf32>
    %111 = vector.broadcast %110 : vector<8x1xf32> to vector<8x8xf32>
    %112 = arith.mulf %107, %111 : vector<8x8xf32>
    %113 = arith.truncf %112 : vector<8x8xf32> to vector<8x8xbf16>
    %c0_68 = arith.constant 0 : index
    %c2_69 = arith.constant 2 : index
    %c0_70 = arith.constant 0 : index
    %c0_71 = arith.constant 0 : index
    %114 = vector.load %arg4[%c0_68, %c2_69, %c0_70, %c0_71] : memref<1x4x8x8xbf16, #tpu.memory_space<vmem>>, vector<1x1x8x8xbf16>
    %115 = vector.shape_cast %114 : vector<1x1x8x8xbf16> to vector<8x8xbf16>
    %cst_72 = arith.constant dense<0.000000e+00> : vector<8x8xf32>
    %116 = tpu.matmul %113, %115, %cst_72 {dimension_numbers = #tpu.dot_dimension_numbers<[1], [1], [0], [0], [0, 0, 1, 0], [], []>} : vector<8x8xbf16>, vector<8x8xbf16>, vector<8x8xf32> -> vector<8x8xf32>
    %117 = arith.truncf %116 : vector<8x8xf32> to vector<8x8xbf16>
    %c2_73 = arith.constant 2 : index
    %c0_74 = arith.constant 0 : index
    %c0_75 = arith.constant 0 : index
    %118 = vector.load %arg10[%c2_73, %c0_74, %c0_75] : memref<4x8x32xbf16, #tpu.memory_space<vmem>>, vector<1x8x32xbf16>
    %119 = vector.shape_cast %118 : vector<1x8x32xbf16> to vector<8x32xbf16>
    %cst_76 = arith.constant dense<0.000000e+00> : vector<8x32xf32>
    %120 = tpu.matmul %117, %119, %cst_76 {dimension_numbers = #tpu.dot_dimension_numbers<[1], [0], [0], [1], [0, 0, 1, 1], [], []>} : vector<8x8xbf16>, vector<8x32xbf16>, vector<8x32xf32> -> vector<8x32xf32>
    %121 = arith.addf %93, %120 : vector<8x32xf32>
    %c3 = arith.constant 3 : index
    %c0_77 = arith.constant 0 : index
    %c0_78 = arith.constant 0 : index
    %122 = vector.load %arg9[%c3, %c0_77, %c0_78] : memref<4x8x32xbf16, #tpu.memory_space<vmem>>, vector<1x8x32xbf16>
    %123 = vector.shape_cast %122 : vector<1x8x32xbf16> to vector<8x32xbf16>
    %cst_79 = arith.constant dense<0.000000e+00> : vector<8x8xf32>
    %124 = tpu.matmul %36, %123, %cst_79 {dimension_numbers = #tpu.dot_dimension_numbers<[1], [1], [0], [0], [0, 0, 1, 0], [], []>} : vector<8x32xbf16>, vector<8x32xbf16>, vector<8x8xf32> -> vector<8x8xf32>
    %125 = arith.truncf %124 : vector<8x8xf32> to vector<8x8xbf16>
    %c0_80 = arith.constant 0 : index
    %c3_81 = arith.constant 3 : index
    %c0_82 = arith.constant 0 : index
    %c0_83 = arith.constant 0 : index
    %126 = vector.load %arg3[%c0_80, %c3_81, %c0_82, %c0_83] : memref<1x4x8x8xbf16, #tpu.memory_space<vmem>>, vector<1x1x8x8xbf16>
    %127 = vector.shape_cast %126 : vector<1x1x8x8xbf16> to vector<8x8xbf16>
    %cst_84 = arith.constant dense<0.000000e+00> : vector<8x8xf32>
    %128 = tpu.matmul %125, %127, %cst_84 {dimension_numbers = #tpu.dot_dimension_numbers<[1], [0], [0], [1], [0, 0, 1, 1], [], []>} : vector<8x8xbf16>, vector<8x8xbf16>, vector<8x8xf32> -> vector<8x8xf32>
    %cst_85 = arith.constant -3.40282347E+38 : f32
    %129 = vector.broadcast %cst_85 : f32 to vector<8x8xf32>
    %130 = arith.select %7, %128, %129 : vector<8x8xi1>, vector<8x8xf32>
    %cst_86 = arith.constant dense<0xFF800000> : vector<8xf32>
    %131 = vector.multi_reduction <maximumf>, %130, %cst_86 [1] : vector<8x8xf32> to vector<8xf32>
    %132 = vector.shape_cast %131 : vector<8xf32> to vector<8x1xf32>
    %133 = vector.broadcast %132 : vector<8x1xf32> to vector<8x8xf32>
    %134 = arith.subf %130, %133 : vector<8x8xf32>
    %135 = math.exp %134 : vector<8x8xf32>
    %cst_87 = arith.constant dense<0.000000e+00> : vector<8xf32>
    %136 = vector.multi_reduction <add>, %135, %cst_87 [1] : vector<8x8xf32> to vector<8xf32>
    %137 = vector.shape_cast %136 : vector<8xf32> to vector<8x1xf32>
    %138 = tpu.reciprocal %137 {approx = true} : vector<8x1xf32> -> vector<8x1xf32>
    %139 = vector.broadcast %138 : vector<8x1xf32> to vector<8x8xf32>
    %140 = arith.mulf %135, %139 : vector<8x8xf32>
    %141 = arith.truncf %140 : vector<8x8xf32> to vector<8x8xbf16>
    %c0_88 = arith.constant 0 : index
    %c3_89 = arith.constant 3 : index
    %c0_90 = arith.constant 0 : index
    %c0_91 = arith.constant 0 : index
    %142 = vector.load %arg4[%c0_88, %c3_89, %c0_90, %c0_91] : memref<1x4x8x8xbf16, #tpu.memory_space<vmem>>, vector<1x1x8x8xbf16>
    %143 = vector.shape_cast %142 : vector<1x1x8x8xbf16> to vector<8x8xbf16>
    %cst_92 = arith.constant dense<0.000000e+00> : vector<8x8xf32>
    %144 = tpu.matmul %141, %143, %cst_92 {dimension_numbers = #tpu.dot_dimension_numbers<[1], [1], [0], [0], [0, 0, 1, 0], [], []>} : vector<8x8xbf16>, vector<8x8xbf16>, vector<8x8xf32> -> vector<8x8xf32>
    %145 = arith.truncf %144 : vector<8x8xf32> to vector<8x8xbf16>
    %c3_93 = arith.constant 3 : index
    %c0_94 = arith.constant 0 : index
    %c0_95 = arith.constant 0 : index
    %146 = vector.load %arg10[%c3_93, %c0_94, %c0_95] : memref<4x8x32xbf16, #tpu.memory_space<vmem>>, vector<1x8x32xbf16>
    %147 = vector.shape_cast %146 : vector<1x8x32xbf16> to vector<8x32xbf16>
    %cst_96 = arith.constant dense<0.000000e+00> : vector<8x32xf32>
    %148 = tpu.matmul %145, %147, %cst_96 {dimension_numbers = #tpu.dot_dimension_numbers<[1], [0], [0], [1], [0, 0, 1, 1], [], []>} : vector<8x8xbf16>, vector<8x32xbf16>, vector<8x32xf32> -> vector<8x32xf32>
    %149 = arith.addf %121, %148 : vector<8x32xf32>
    %c0_97 = arith.constant 0 : index
    %c0_98 = arith.constant 0 : index
    %150 = vector.load %arg11[%c0_97, %c0_98] : memref<1x1xf32, #tpu.memory_space<vmem>>, vector<1x1xf32>
    %151 = vector.extract %150[0, 0] : f32 from vector<1x1xf32>
    %152 = vector.broadcast %151 : f32 to vector<8x32xf32>
    %153 = arith.mulf %152, %149 : vector<8x32xf32>
    %154 = arith.addf %1, %153 : vector<8x32xf32>
    %c0_99 = arith.constant 0 : index
    %c0_100 = arith.constant 0 : index
    %155 = vector.load %arg12[%c0_99, %c0_100] : memref<1x32xf32, #tpu.memory_space<vmem>>, vector<1x32xf32>
    %156 = vector.shape_cast %155 : vector<1x32xf32> to vector<32xf32>
    %c0_101 = arith.constant 0 : index
    %c0_102 = arith.constant 0 : index
    %157 = vector.load %arg13[%c0_101, %c0_102] : memref<1x32xf32, #tpu.memory_space<vmem>>, vector<1x32xf32>
    %158 = vector.shape_cast %157 : vector<1x32xf32> to vector<32xf32>
    %cst_103 = arith.constant dense<0.000000e+00> : vector<8xf32>
    %159 = vector.multi_reduction <add>, %154, %cst_103 [1] : vector<8x32xf32> to vector<8xf32>
    %160 = vector.shape_cast %159 : vector<8xf32> to vector<8x1xf32>
    %cst_104 = arith.constant 3.200000e+01 : f32
    %161 = vector.broadcast %cst_104 : f32 to vector<8x1xf32>
    %162 = arith.divf %160, %161 : vector<8x1xf32>
    %163 = arith.mulf %154, %154 : vector<8x32xf32>
    %cst_105 = arith.constant dense<0.000000e+00> : vector<8xf32>
    %164 = vector.multi_reduction <add>, %163, %cst_105 [1] : vector<8x32xf32> to vector<8xf32>
    %165 = vector.shape_cast %164 : vector<8xf32> to vector<8x1xf32>
    %cst_106 = arith.constant 3.200000e+01 : f32
    %166 = vector.broadcast %cst_106 : f32 to vector<8x1xf32>
    %167 = arith.divf %165, %166 : vector<8x1xf32>
    %168 = arith.mulf %162, %162 : vector<8x1xf32>
    %169 = arith.subf %167, %168 : vector<8x1xf32>
    %170 = vector.broadcast %162 : vector<8x1xf32> to vector<8x32xf32>
    %171 = arith.subf %154, %170 : vector<8x32xf32>
    %cst_107 = arith.constant 9.99999974E-6 : f32
    %172 = vector.broadcast %cst_107 : f32 to vector<8x1xf32>
    %173 = arith.addf %169, %172 : vector<8x1xf32>
    %174 = math.rsqrt %173 : vector<8x1xf32>
    %175 = vector.broadcast %174 : vector<8x1xf32> to vector<8x32xf32>
    %176 = arith.mulf %171, %175 : vector<8x32xf32>
    %177 = vector.shape_cast %156 : vector<32xf32> to vector<1x32xf32>
    %178 = vector.broadcast %177 : vector<1x32xf32> to vector<8x32xf32>
    %179 = arith.mulf %176, %178 : vector<8x32xf32>
    %180 = vector.shape_cast %158 : vector<32xf32> to vector<1x32xf32>
    %181 = vector.broadcast %180 : vector<1x32xf32> to vector<8x32xf32>
    %182 = arith.addf %179, %181 : vector<8x32xf32>
    %183 = arith.truncf %182 : vector<8x32xf32> to vector<8x32xbf16>
    %c0_108 = arith.constant 0 : index
    %c0_109 = arith.constant 0 : index
    %184 = vector.load %arg14[%c0_108, %c0_109] : memref<32x128xbf16, #tpu.memory_space<vmem>>, vector<32x128xbf16>
    %cst_110 = arith.constant dense<0.000000e+00> : vector<8x128xf32>
    %185 = tpu.matmul %183, %184, %cst_110 {dimension_numbers = #tpu.dot_dimension_numbers<[1], [0], [0], [1], [0, 0, 1, 1], [], []>} : vector<8x32xbf16>, vector<32x128xbf16>, vector<8x128xf32> -> vector<8x128xf32>
    %186 = arith.mulf %185, %185 : vector<8x128xf32>
    %187 = arith.mulf %185, %186 : vector<8x128xf32>
    %cst_111 = arith.constant 4.471500e-02 : f32
    %188 = vector.broadcast %cst_111 : f32 to vector<8x128xf32>
    %189 = arith.mulf %188, %187 : vector<8x128xf32>
    %190 = arith.addf %185, %189 : vector<8x128xf32>
    %cst_112 = arith.constant 0.797884583 : f32
    %191 = vector.broadcast %cst_112 : f32 to vector<8x128xf32>
    %192 = arith.mulf %191, %190 : vector<8x128xf32>
    %193 = math.tanh %192 : vector<8x128xf32>
    %cst_113 = arith.constant 1.000000e+00 : f32
    %194 = vector.broadcast %cst_113 : f32 to vector<8x128xf32>
    %195 = arith.addf %194, %193 : vector<8x128xf32>
    %cst_114 = arith.constant 5.000000e-01 : f32
    %196 = vector.broadcast %cst_114 : f32 to vector<8x128xf32>
    %197 = arith.mulf %196, %195 : vector<8x128xf32>
    %198 = arith.mulf %185, %197 : vector<8x128xf32>
    %199 = arith.truncf %198 : vector<8x128xf32> to vector<8x128xbf16>
    %c0_115 = arith.constant 0 : index
    %c0_116 = arith.constant 0 : index
    %200 = vector.load %arg15[%c0_115, %c0_116] : memref<128x32xbf16, #tpu.memory_space<vmem>>, vector<128x32xbf16>
    %cst_117 = arith.constant dense<0.000000e+00> : vector<8x32xf32>
    %201 = tpu.matmul %199, %200, %cst_117 {dimension_numbers = #tpu.dot_dimension_numbers<[1], [0], [0], [1], [0, 0, 1, 1], [], []>} : vector<8x128xbf16>, vector<128x32xbf16>, vector<8x32xf32> -> vector<8x32xf32>
    %c0_118 = arith.constant 0 : index
    %c0_119 = arith.constant 0 : index
    %202 = vector.load %arg16[%c0_118, %c0_119] : memref<1x1xf32, #tpu.memory_space<vmem>>, vector<1x1xf32>
    %203 = vector.extract %202[0, 0] : f32 from vector<1x1xf32>
    %204 = vector.broadcast %203 : f32 to vector<8x32xf32>
    %205 = arith.mulf %204, %201 : vector<8x32xf32>
    %206 = arith.addf %154, %205 : vector<8x32xf32>
    %c0_120 = arith.constant 0 : index
    %c0_121 = arith.constant 0 : index
    %c0_122 = arith.constant 0 : index
    %207 = vector.load %arg17[%c0_120, %c0_121, %c0_122] : memref<1x8x32xf32, #tpu.memory_space<vmem>>, vector<1x8x32xf32>
    %208 = vector.shape_cast %207 : vector<1x8x32xf32> to vector<8x32xf32>
    %209 = vector.shape_cast %206 : vector<8x32xf32> to vector<1x8x32xf32>
    tpu.vector_store %arg17[%c0_120, %c0_121, %c0_122], %209 {strides = array<i32>} : memref<1x8x32xf32, #tpu.memory_space<vmem>>, vector<1x8x32xf32>,
    return
  }
  func.func @transform_0(%arg0: i32, %arg1: i32) -> (i32, i32, i32) {
    %c0_i32 = arith.constant 0 : i32
    %c0_i32_0 = arith.constant 0 : i32
    return %arg0, %arg1, %c0_i32 : i32, i32, i32
  }
  func.func @transform_1(%arg0: i32, %arg1: i32) -> (i32, i32, i32, i32) {
    %c0_i32 = arith.constant 0 : i32
    %c0_i32_0 = arith.constant 0 : i32
    %c0_i32_1 = arith.constant 0 : i32
    %c0_i32_2 = arith.constant 0 : i32
    return %arg0, %c0_i32, %c0_i32_0, %c0_i32_1 : i32, i32, i32, i32
  }
  func.func @transform_2(%arg0: i32, %arg1: i32) -> (i32, i32, i32, i32) {
    %c0_i32 = arith.constant 0 : i32
    %c0_i32_0 = arith.constant 0 : i32
    %c0_i32_1 = arith.constant 0 : i32
    %c0_i32_2 = arith.constant 0 : i32
    return %arg0, %c0_i32, %c0_i32_0, %c0_i32_1 : i32, i32, i32, i32
  }
  func.func @transform_3(%arg0: i32, %arg1: i32) -> (i32, i32, i32) {
    %c0_i32 = arith.constant 0 : i32
    %c0_i32_0 = arith.constant 0 : i32
    return %arg0, %arg1, %c0_i32 : i32, i32, i32
  }
  func.func @transform_4(%arg0: i32, %arg1: i32) -> (i32, i32) {
    %c0_i32 = arith.constant 0 : i32
    %c0_i32_0 = arith.constant 0 : i32
    %c0_i32_1 = arith.constant 0 : i32
    return %c0_i32, %c0_i32_0 : i32, i32
  }
  func.func @transform_5(%arg0: i32, %arg1: i32) -> (i32, i32) {
    %c0_i32 = arith.constant 0 : i32
    %c0_i32_0 = arith.constant 0 : i32
    %c0_i32_1 = arith.constant 0 : i32
    return %c0_i32, %c0_i32_0 : i32, i32
  }
  func.func @transform_6(%arg0: i32, %arg1: i32) -> (i32, i32) {
    %c0_i32 = arith.constant 0 : i32
    %c0_i32_0 = arith.constant 0 : i32
    %c0_i32_1 = arith.constant 0 : i32
    return %c0_i32, %c0_i32_0 : i32, i32
  }
  func.func @transform_7(%arg0: i32, %arg1: i32) -> (i32, i32, i32) {
    %c0_i32 = arith.constant 0 : i32
    %c0_i32_0 = arith.constant 0 : i32
    %c0_i32_1 = arith.constant 0 : i32
    %c0_i32_2 = arith.constant 0 : i32
    return %c0_i32, %c0_i32_0, %c0_i32_1 : i32, i32, i32
  }
  func.func @transform_8(%arg0: i32, %arg1: i32) -> (i32, i32, i32) {
    %c0_i32 = arith.constant 0 : i32
    %c0_i32_0 = arith.constant 0 : i32
    %c0_i32_1 = arith.constant 0 : i32
    %c0_i32_2 = arith.constant 0 : i32
    return %c0_i32, %c0_i32_0, %c0_i32_1 : i32, i32, i32
  }
  func.func @transform_9(%arg0: i32, %arg1: i32) -> (i32, i32) {
    %c0_i32 = arith.constant 0 : i32
    %c0_i32_0 = arith.constant 0 : i32
    %c0_i32_1 = arith.constant 0 : i32
    return %c0_i32, %c0_i32_0 : i32, i32
  }
  func.func @transform_10(%arg0: i32, %arg1: i32) -> (i32, i32) {
    %c0_i32 = arith.constant 0 : i32
    %c0_i32_0 = arith.constant 0 : i32
    %c0_i32_1 = arith.constant 0 : i32
    return %c0_i32, %c0_i32_0 : i32, i32
  }
  func.func @transform_11(%arg0: i32, %arg1: i32) -> (i32, i32) {
    %c0_i32 = arith.constant 0 : i32
    %c0_i32_0 = arith.constant 0 : i32
    %c0_i32_1 = arith.constant 0 : i32
    return %c0_i32, %c0_i32_0 : i32, i32
  }
  func.func @transform_12(%arg0: i32, %arg1: i32) -> (i32, i32) {
    %c0_i32 = arith.constant 0 : i32
    %c0_i32_0 = arith.constant 0 : i32
    %c0_i32_1 = arith.constant 0 : i32
    return %c0_i32, %c0_i32_0 : i32, i32
  }
  func.func @transform_13(%arg0: i32, %arg1: i32) -> (i32, i32) {
    %c0_i32 = arith.constant 0 : i32
    %c0_i32_0 = arith.constant 0 : i32
    %c0_i32_1 = arith.constant 0 : i32
    return %c0_i32, %c0_i32_0 : i32, i32
  }
  func.func @transform_14(%arg0: i32, %arg1: i32) -> (i32, i32) {
    %c0_i32 = arith.constant 0 : i32
    %c0_i32_0 = arith.constant 0 : i32
    %c0_i32_1 = arith.constant 0 : i32
    return %c0_i32, %c0_i32_0 : i32, i32
  }
  func.func @transform_15(%arg0: i32, %arg1: i32) -> (i32, i32, i32) {
    %c0_i32 = arith.constant 0 : i32
    %c0_i32_0 = arith.constant 0 : i32
    return %arg0, %arg1, %c0_i32 : i32, i32, i32
  }
}

</mosaic_0001>

<llo_original>
// kernel: tpu_custom_call.1
$region0: #{tpu_custom_call.1}
  #allocation0 [shape = 'u32[]', space=smem, size = 0x4, offset = 0x4, fixed_abs, tag = 'smem constant byte address 0x4 - core index']
  #allocation1 [shape = 'u32[72,128]{1,0:T(1,128)}', space=vmem, size = 0x9000, scoped, tag = 'internal scratch']
  #allocation2 [shape = 'f32[1,1]{1,0:T(1,128)S(1)}', space=vmem, size = 0x200, scoped, tag = 'scoped memory for tpu_custom_call.1']
  #allocation3 [shape = 'f32[1,1]{1,0:T(1,128)S(1)}', space=vmem, size = 0x200, scoped, tag = 'scoped memory for tpu_custom_call.1']
  %s0 = inlined_call_operand.vmem [shape: f32[2,16,32], index: 0, kind: input, shape index: {}]
  %s1 = inlined_call_operand.vmem [shape: bf16[2,4,8,8], index: 1, kind: input, shape index: {}]
  %s2 = inlined_call_operand.vmem [shape: bf16[2,4,8,8], index: 2, kind: input, shape index: {}]
  %s3 = inlined_call_operand.vmem [shape: s32[2,16,1], index: 3, kind: input, shape index: {}]
  %s4 = inlined_call_operand.vmem [shape: s32[1,8], index: 4, kind: input, shape index: {}]
  %s5 = inlined_call_operand.vmem [shape: f32[1,32], index: 5, kind: input, shape index: {}]
  %s6 = inlined_call_operand.vmem [shape: f32[1,32], index: 6, kind: input, shape index: {}]
  %s7 = inlined_call_operand.hbm [shape: bf16[4,8,32], index: 7, kind: input, shape index: {}]
  %s8 = inlined_call_operand.hbm [shape: bf16[4,8,32], index: 8, kind: input, shape index: {}]
  %s9 = inlined_call_operand.<no memory space> [shape: f32[1,1], index: 9, kind: input, shape index: {}]
  %s10 = inlined_call_operand.vmem [shape: f32[1,32], index: 10, kind: input, shape index: {}]
  %s11 = inlined_call_operand.vmem [shape: f32[1,32], index: 11, kind: input, shape index: {}]
  %s12 = inlined_call_operand.hbm [shape: bf16[32,128], index: 12, kind: input, shape index: {}]
  %s13 = inlined_call_operand.vmem [shape: bf16[128,32], index: 13, kind: input, shape index: {}]
  %s14 = inlined_call_operand.<no memory space> [shape: f32[1,1], index: 14, kind: input, shape index: {}]
  %s15 = inlined_call_operand.hbm [shape: f32[2,16,32], index: 15, kind: output, shape index: {}]
  %s16 = sld [smem:[#allocation0]]
  $region105: #{tpu_custom_call.1} parent=0
    _
  %s18 = ssub.s32 1, %s16
  %s19 = scalar_select 0, %s18, %s16
  %v20 = vstv %s9
  %21 = vst [vmem:[#allocation2] sm:$0x1] %v20
  %v22 = vstv %s14
  %23 = vst [vmem:[#allocation3] sm:$0x1] %v22
  $region1: #{tpu_custom_call.1} parent=0
    #allocation4 [shape = 'u8[8192]{0}', space=vmem, size = 0x2000, scoped, tag = 'input window, operand 7, single buffered']
    #allocation5 [shape = 's32[2]{0}', space=sflag, size = 0x8, scoped, tag = 'scoped memory for tpu_custom_call.1']
    #allocation6 [shape = 's32[2]{0}', space=sflag, size = 0x8, scoped, tag = 'scoped memory for tpu_custom_call.1']
    #allocation7 [shape = 'u8[8192]{0}', space=vmem, size = 0x2000, scoped, tag = 'input window, operand 8, single buffered']
    #allocation8 [shape = 's32[1]{0}', space=sflag, size = 0x4, scoped, tag = 'scoped memory for tpu_custom_call.1']
    #allocation9 [shape = 'u8[8192]{0}', space=vmem, size = 0x2000, scoped, tag = 'input window, operand 12, single buffered']
    #allocation10 [shape = 'u8[8192]{0}', space=vmem, size = 0x2000, scoped, tag = 'output window, operand 0']
    %24 = vsyncpa [#allocation5], 0
    %25 = vsyncpa [#allocation8], 0
    %26 = vsyncpa [#allocation6], 0
    %s27 = scalar_lea.sflag [#allocation6], 1
    %28 = vsyncpa %s27, 0
    loop: start=0, step=1, limit=6
    $region2: #{tpu_custom_call.1} parent=1 // loop_pre_header
      _
    $region3: #{tpu_custom_call.1} parent=1 // loop_header
      %s30 = sphi 0, %s34
      %p31 = scmp.ge.s32.totalorder %s30, 6
      %s37 = sphi 0, %s49
      %s38 = sphi 0, %s45
      %s39 = sphi 0, %s37
      %s40 = sphi 0, %s38
      %s41 = sphi 0, %s39
      %s42 = sphi 0, %s40
      %s54 = sphi 0, %s56
      %s57 = sphi 0, %s54
      %s58 = sphi 0, %s57
      %s74 = sphi 0, %s58
      %s80 = sphi 0, %s82
      %s83 = sphi 0, %s80
      %s84 = sphi 0, %s83
      %s100 = sphi 0, %s84
      %s106 = sphi 0, %s108
      %s109 = sphi 0, %s106
      %s110 = sphi 0, %s109
      %s126 = sphi 0, %s110
      %s134 = sphi 0, %s136
      %s137 = sphi 0, %s134
      %s138 = sphi 0, %s137
      %s154 = sphi 0, %s138
      %s158 = sphi 0, %s158
      %s160 = sphi 0, %s158
      %s161 = sphi 0, %s160
      %s175 = sphi 0, %s161
      %s179 = sphi 0, %s179
      %s181 = sphi 0, %s179
      %s182 = sphi 0, %s181
      %s196 = sphi 0, %s182
      %s200 = sphi 0, %s200
      %s202 = sphi 0, %s200
      %s203 = sphi 0, %s202
      %s217 = sphi 0, %s203
      %s221 = sphi 0, %s221
      %s223 = sphi 0, %s221
      %s224 = sphi 0, %s223
      %s238 = sphi 0, %s224
      %s242 = sphi 0, %s242
      %s244 = sphi 0, %s242
      %s245 = sphi 0, %s244
      %s259 = sphi 0, %s245
      %s263 = sphi 0, %s263
      %s265 = sphi 0, %s263
      %s266 = sphi 0, %s265
      %s280 = sphi 0, %s266
      %s284 = sphi 0, %s284
      %s286 = sphi 0, %s284
      %s287 = sphi 0, %s286
      %s301 = sphi 0, %s287
      %s305 = sphi 0, %s305
      %s307 = sphi 0, %s305
      %s308 = sphi 0, %s307
      %s322 = sphi 0, %s308
      %s326 = sphi 0, %s326
      %s328 = sphi 0, %s326
      %s329 = sphi 0, %s328
      %s343 = sphi 0, %s329
      %s347 = sphi 0, %s347
      %s349 = sphi 0, %s347
      %s350 = sphi 0, %s349
      %s364 = sphi 0, %s350
      %s368 = sphi 0, %s368
      %s370 = sphi 0, %s368
      %s371 = sphi 0, %s370
      %s385 = sphi 0, %s371
      %s393 = sphi 0, %s395
      %s396 = sphi 0, %s393
      %s397 = sphi 0, %s396
      %s413 = sphi 0, %s397
    $region4: #{tpu_custom_call.1} parent=1 // loop_header_branch
      %33 = sbr.rel (%p31) target = $region8
    $region5: #{tpu_custom_call.1} parent=1 // loop_body
      %s35 = ssub.s32 %s30, 1
      %s36 = ssub.s32 %s30, 2
      %s43 = sadd.s32 1, %s38
      %p44 = scmp.ge.s32.totalorder %s43, 2
      %s45 = scalar_select %p44, 0, %s43
      %s46 = sadd.s32 1, %s37
      %s47 = scalar_select %p44, %s46, %s37
      %p48 = scmp.ge.s32.totalorder %s47, 2
      %s49 = scalar_select %p48, 0, %s47
      %s50 = ssub.s32 %s37, %s49
      %s51 = ssub.s32 %s38, %s45
      %s52 = sor.u32 %s50, %s51
      %p53 = scmp.eq.s32.totalorder %s52, 0
      %s55 = sadd.s32 %s54, 1
      %s56 = scalar_select %p53, %s54, %s55
      %p59 = pneg %p53
      %p60 = scmp.eq.s32.totalorder %s30, 3
      %p61 = por %p59, %p60
      %p62 = scmp.ne.s32.totalorder %s54, %s57
      %p63 = scmp.eq.s32.totalorder %s30, 0
      %p64 = por %p62, %p63
      %p65 = scmp.ne.s32.totalorder %s54, %s57
      %p66 = scmp.eq.s32.totalorder %s35, 3
      %p67 = por %p65, %p66
      %p68 = scmp.ne.s32.totalorder %s57, %s58
      %p69 = scmp.eq.s32.totalorder %s35, 0
      %p70 = por %p68, %p69
      %p71 = scmp.ne.s32.totalorder %s57, %s58
      %p72 = scmp.eq.s32.totalorder %s36, 3
      %p73 = por %p71, %p72
      %p75 = scmp.ne.s32.totalorder %s58, %s74
      %p76 = scmp.eq.s32.totalorder %s36, 0
      %p77 = por %p75, %p76
      %s78 = ssub.s32 %s37, %s49
      %p79 = scmp.eq.s32.totalorder %s78, 0
      %s81 = sadd.s32 %s80, 1
      %s82 = scalar_select %p79, %s80, %s81
      %p85 = pneg %p79
      %p86 = scmp.eq.s32.totalorder %s30, 3
      %p87 = por %p85, %p86
      %p88 = scmp.ne.s32.totalorder %s80, %s83
      %p89 = scmp.eq.s32.totalorder %s30, 0
      %p90 = por %p88, %p89
      %p91 = scmp.ne.s32.totalorder %s80, %s83
      %p92 = scmp.eq.s32.totalorder %s35, 3
      %p93 = por %p91, %p92
      %p94 = scmp.ne.s32.totalorder %s83, %s84
      %p95 = scmp.eq.s32.totalorder %s35, 0
      %p96 = por %p94, %p95
      %p97 = scmp.ne.s32.totalorder %s83, %s84
      %p98 = scmp.eq.s32.totalorder %s36, 3
      %p99 = por %p97, %p98
      %p101 = scmp.ne.s32.totalorder %s84, %s100
      %p102 = scmp.eq.s32.totalorder %s36, 0
      %p103 = por %p101, %p102
      %s104 = ssub.s32 %s37, %s49
      %p105 = scmp.eq.s32.totalorder %s104, 0
      %s107 = sadd.s32 %s106, 1
      %s108 = scalar_select %p105, %s106, %s107
      %p111 = pneg %p105
      %p112 = scmp.eq.s32.totalorder %s30, 3
      %p113 = por %p111, %p112
      %p114 = scmp.ne.s32.totalorder %s106, %s109
      %p115 = scmp.eq.s32.totalorder %s30, 0
      %p116 = por %p114, %p115
      %p117 = scmp.ne.s32.totalorder %s106, %s109
      %p118 = scmp.eq.s32.totalorder %s35, 3
      %p119 = por %p117, %p118
      %p120 = scmp.ne.s32.totalorder %s109, %s110
      %p121 = scmp.eq.s32.totalorder %s35, 0
      %p122 = por %p120, %p121
      %p123 = scmp.ne.s32.totalorder %s109, %s110
      %p124 = scmp.eq.s32.totalorder %s36, 3
      %p125 = por %p123, %p124
      %p127 = scmp.ne.s32.totalorder %s110, %s126
      %p128 = scmp.eq.s32.totalorder %s36, 0
      %p129 = por %p127, %p128
      %s130 = ssub.s32 %s37, %s49
      %s131 = ssub.s32 %s38, %s45
      %s132 = sor.u32 %s130, %s131
      %p133 = scmp.eq.s32.totalorder %s132, 0
      %s135 = sadd.s32 %s134, 1
      %s136 = scalar_select %p133, %s134, %s135
      %p139 = pneg %p133
      %p140 = scmp.eq.s32.totalorder %s30, 3
      %p141 = por %p139, %p140
      %p142 = scmp.ne.s32.totalorder %s134, %s137
      %p143 = scmp.eq.s32.totalorder %s30, 0
      %p144 = por %p142, %p143
      %p145 = scmp.ne.s32.totalorder %s134, %s137
      %p146 = scmp.eq.s32.totalorder %s35, 3
      %p147 = por %p145, %p146
      %p148 = scmp.ne.s32.totalorder %s137, %s138
      %p149 = scmp.eq.s32.totalorder %s35, 0
      %p150 = por %p148, %p149
      %p151 = scmp.ne.s32.totalorder %s137, %s138
      %p152 = scmp.eq.s32.totalorder %s36, 3
      %p153 = por %p151, %p152
      %p155 = scmp.ne.s32.totalorder %s138, %s154
      %p156 = scmp.eq.s32.totalorder %s36, 0
      %p157 = por %p155, %p156
      %s159 = sadd.s32 %s158, 1
      %p162 = scmp.eq.s32.totalorder %s30, 3
      %p163 = scmp.ne.s32.totalorder %s158, %s160
      %p164 = scmp.eq.s32.totalorder %s30, 0
      %p165 = por %p163, %p164
      %p166 = scmp.ne.s32.totalorder %s158, %s160
      %p167 = scmp.eq.s32.totalorder %s35, 3
      %p168 = por %p166, %p167
      %p169 = scmp.ne.s32.totalorder %s160, %s161
      %p170 = scmp.eq.s32.totalorder %s35, 0
      %p171 = por %p169, %p170
      %p172 = scmp.ne.s32.totalorder %s160, %s161
      %p173 = scmp.eq.s32.totalorder %s36, 3
      %p174 = por %p172, %p173
      %p176 = scmp.ne.s32.totalorder %s161, %s175
      %p177 = scmp.eq.s32.totalorder %s36, 0
      %p178 = por %p176, %p177
      %s180 = sadd.s32 %s179, 1
      %p183 = scmp.eq.s32.totalorder %s30, 3
      %p184 = scmp.ne.s32.totalorder %s179, %s181
      %p185 = scmp.eq.s32.totalorder %s30, 0
      %p186 = por %p184, %p185
      %p187 = scmp.ne.s32.totalorder %s179, %s181
      %p188 = scmp.eq.s32.totalorder %s35, 3
      %p189 = por %p187, %p188
      %p190 = scmp.ne.s32.totalorder %s181, %s182
      %p191 = scmp.eq.s32.totalorder %s35, 0
      %p192 = por %p190, %p191
      %p193 = scmp.ne.s32.totalorder %s181, %s182
      %p194 = scmp.eq.s32.totalorder %s36, 3
      %p195 = por %p193, %p194
      %p197 = scmp.ne.s32.totalorder %s182, %s196
      %p198 = scmp.eq.s32.totalorder %s36, 0
      %p199 = por %p197, %p198
      %s201 = sadd.s32 %s200, 1
      %p204 = scmp.eq.s32.totalorder %s30, 3
      %p205 = scmp.ne.s32.totalorder %s200, %s202
      %p206 = scmp.eq.s32.totalorder %s30, 0
      %p207 = por %p205, %p206
      %p208 = scmp.ne.s32.totalorder %s200, %s202
      %p209 = scmp.eq.s32.totalorder %s35, 3
      %p210 = por %p208, %p209
      %p211 = scmp.ne.s32.totalorder %s202, %s203
      %p212 = scmp.eq.s32.totalorder %s35, 0
      %p213 = por %p211, %p212
      %p214 = scmp.ne.s32.totalorder %s202, %s203
      %p215 = scmp.eq.s32.totalorder %s36, 3
      %p216 = por %p214, %p215
      %p218 = scmp.ne.s32.totalorder %s203, %s217
      %p219 = scmp.eq.s32.totalorder %s36, 0
      %p220 = por %p218, %p219
      %s222 = sadd.s32 %s221, 1
      %p225 = scmp.eq.s32.totalorder %s30, 3
      %p226 = scmp.ne.s32.totalorder %s221, %s223
      %p227 = scmp.eq.s32.totalorder %s30, 0
      %p228 = por %p226, %p227
      %p229 = scmp.ne.s32.totalorder %s221, %s223
      %p230 = scmp.eq.s32.totalorder %s35, 3
      %p231 = por %p229, %p230
      %p232 = scmp.ne.s32.totalorder %s223, %s224
      %p233 = scmp.eq.s32.totalorder %s35, 0
      %p234 = por %p232, %p233
      %p235 = scmp.ne.s32.totalorder %s223, %s224
      %p236 = scmp.eq.s32.totalorder %s36, 3
      %p237 = por %p235, %p236
      %p239 = scmp.ne.s32.totalorder %s224, %s238
      %p240 = scmp.eq.s32.totalorder %s36, 0
      %p241 = por %p239, %p240
      %s243 = sadd.s32 %s242, 1
      %p246 = scmp.eq.s32.totalorder %s30, 3
      %p247 = scmp.ne.s32.totalorder %s242, %s244
      %p248 = scmp.eq.s32.totalorder %s30, 0
      %p249 = por %p247, %p248
      %p250 = scmp.ne.s32.totalorder %s242, %s244
      %p251 = scmp.eq.s32.totalorder %s35, 3
      %p252 = por %p250, %p251
      %p253 = scmp.ne.s32.totalorder %s244, %s245
      %p254 = scmp.eq.s32.totalorder %s35, 0
      %p255 = por %p253, %p254
      %p256 = scmp.ne.s32.totalorder %s244, %s245
      %p257 = scmp.eq.s32.totalorder %s36, 3
      %p258 = por %p256, %p257
      %p260 = scmp.ne.s32.totalorder %s245, %s259
      %p261 = scmp.eq.s32.totalorder %s36, 0
      %p262 = por %p260, %p261
      %s264 = sadd.s32 %s263, 1
      %p267 = scmp.eq.s32.totalorder %s30, 3
      %p268 = scmp.ne.s32.totalorder %s263, %s265
      %p269 = scmp.eq.s32.totalorder %s30, 0
      %p270 = por %p268, %p269
      %p271 = scmp.ne.s32.totalorder %s263, %s265
      %p272 = scmp.eq.s32.totalorder %s35, 3
      %p273 = por %p271, %p272
      %p274 = scmp.ne.s32.totalorder %s265, %s266
      %p275 = scmp.eq.s32.totalorder %s35, 0
      %p276 = por %p274, %p275
      %p277 = scmp.ne.s32.totalorder %s265, %s266
      %p278 = scmp.eq.s32.totalorder %s36, 3
      %p279 = por %p277, %p278
      %p281 = scmp.ne.s32.totalorder %s266, %s280
      %p282 = scmp.eq.s32.totalorder %s36, 0
      %p283 = por %p281, %p282
      %s285 = sadd.s32 %s284, 1
      %p288 = scmp.eq.s32.totalorder %s30, 3
      %p289 = scmp.ne.s32.totalorder %s284, %s286
      %p290 = scmp.eq.s32.totalorder %s30, 0
      %p291 = por %p289, %p290
      %p292 = scmp.ne.s32.totalorder %s284, %s286
      %p293 = scmp.eq.s32.totalorder %s35, 3
      %p294 = por %p292, %p293
      %p295 = scmp.ne.s32.totalorder %s286, %s287
      %p296 = scmp.eq.s32.totalorder %s35, 0
      %p297 = por %p295, %p296
      %p298 = scmp.ne.s32.totalorder %s286, %s287
      %p299 = scmp.eq.s32.totalorder %s36, 3
      %p300 = por %p298, %p299
      %p302 = scmp.ne.s32.totalorder %s287, %s301
      %p303 = scmp.eq.s32.totalorder %s36, 0
      %p304 = por %p302, %p303
      %s306 = sadd.s32 %s305, 1
      %p309 = scmp.eq.s32.totalorder %s30, 3
      %p310 = scmp.ne.s32.totalorder %s305, %s307
      %p311 = scmp.eq.s32.totalorder %s30, 0
      %p312 = por %p310, %p311
      %p313 = scmp.ne.s32.totalorder %s305, %s307
      %p314 = scmp.eq.s32.totalorder %s35, 3
      %p315 = por %p313, %p314
      %p316 = scmp.ne.s32.totalorder %s307, %s308
      %p317 = scmp.eq.s32.totalorder %s35, 0
      %p318 = por %p316, %p317
      %p319 = scmp.ne.s32.totalorder %s307, %s308
      %p320 = scmp.eq.s32.totalorder %s36, 3
      %p321 = por %p319, %p320
      %p323 = scmp.ne.s32.totalorder %s308, %s322
      %p324 = scmp.eq.s32.totalorder %s36, 0
      %p325 = por %p323, %p324
      %s327 = sadd.s32 %s326, 1
      %p330 = scmp.eq.s32.totalorder %s30, 3
      %p331 = scmp.ne.s32.totalorder %s326, %s328
      %p332 = scmp.eq.s32.totalorder %s30, 0
      %p333 = por %p331, %p332
      %p334 = scmp.ne.s32.totalorder %s326, %s328
      %p335 = scmp.eq.s32.totalorder %s35, 3
      %p336 = por %p334, %p335
      %p337 = scmp.ne.s32.totalorder %s328, %s329
      %p338 = scmp.eq.s32.totalorder %s35, 0
      %p339 = por %p337, %p338
      %p340 = scmp.ne.s32.totalorder %s328, %s329
      %p341 = scmp.eq.s32.totalorder %s36, 3
      %p342 = por %p340, %p341
      %p344 = scmp.ne.s32.totalorder %s329, %s343
      %p345 = scmp.eq.s32.totalorder %s36, 0
      %p346 = por %p344, %p345
      %s348 = sadd.s32 %s347, 1
      %p351 = scmp.eq.s32.totalorder %s30, 3
      %p352 = scmp.ne.s32.totalorder %s347, %s349
      %p353 = scmp.eq.s32.totalorder %s30, 0
      %p354 = por %p352, %p353
      %p355 = scmp.ne.s32.totalorder %s347, %s349
      %p356 = scmp.eq.s32.totalorder %s35, 3
      %p357 = por %p355, %p356
      %p358 = scmp.ne.s32.totalorder %s349, %s350
      %p359 = scmp.eq.s32.totalorder %s35, 0
      %p360 = por %p358, %p359
      %p361 = scmp.ne.s32.totalorder %s349, %s350
      %p362 = scmp.eq.s32.totalorder %s36, 3
      %p363 = por %p361, %p362
      %p365 = scmp.ne.s32.totalorder %s350, %s364
      %p366 = scmp.eq.s32.totalorder %s36, 0
      %p367 = por %p365, %p366
      %s369 = sadd.s32 %s368, 1
      %p372 = scmp.eq.s32.totalorder %s30, 3
      %p373 = scmp.ne.s32.totalorder %s368, %s370
      %p374 = scmp.eq.s32.totalorder %s30, 0
      %p375 = por %p373, %p374
      %p376 = scmp.ne.s32.totalorder %s368, %s370
      %p377 = scmp.eq.s32.totalorder %s35, 3
      %p378 = por %p376, %p377
      %p379 = scmp.ne.s32.totalorder %s370, %s371
      %p380 = scmp.eq.s32.totalorder %s35, 0
      %p381 = por %p379, %p380
      %p382 = scmp.ne.s32.totalorder %s370, %s371
      %p383 = scmp.eq.s32.totalorder %s36, 3
      %p384 = por %p382, %p383
      %p386 = scmp.ne.s32.totalorder %s371, %s385
      %p387 = scmp.eq.s32.totalorder %s36, 0
      %p388 = por %p386, %p387
      %s389 = ssub.s32 %s37, %s49
      %s390 = ssub.s32 %s38, %s45
      %s391 = sor.u32 %s389, %s390
      %p392 = scmp.eq.s32.totalorder %s391, 0
      %s394 = sadd.s32 %s393, 1
      %s395 = scalar_select %p392, %s393, %s394
      %p398 = pneg %p392
      %p399 = scmp.eq.s32.totalorder %s30, 3
      %p400 = por %p398, %p399
      %p401 = scmp.ne.s32.totalorder %s393, %s396
      %p402 = scmp.eq.s32.totalorder %s30, 0
      %p403 = por %p401, %p402
      %p404 = scmp.ne.s32.totalorder %s393, %s396
      %p405 = scmp.eq.s32.totalorder %s35, 3
      %p406 = por %p404, %p405
      %p407 = scmp.ne.s32.totalorder %s396, %s397
      %p408 = scmp.eq.s32.totalorder %s35, 0
      %p409 = por %p407, %p408
      %p410 = scmp.ne.s32.totalorder %s396, %s397
      %p411 = scmp.eq.s32.totalorder %s36, 3
      %p412 = por %p410, %p411
      %p414 = scmp.ne.s32.totalorder %s397, %s413
      %p415 = scmp.eq.s32.totalorder %s36, 0
      %p416 = por %p414, %p415
      %p417 = scmp.le.s32.totalorder 1, %s30
      %p418 = scmp.lt.s32.totalorder %s30, 5
      %p419 = pnand %p417, %p418
      %p420 = pneg %p419
      // Predicated region
      $region9: #{tpu_custom_call.1} parent=5 // pred_check
        _
      $region10: #{tpu_custom_call.1} parent=5 // pred_check_branch
        %422 = sbr.rel (%p419) target = $region12
      $region11: #{tpu_custom_call.1} parent=5 // pred_region
        %s423 = ssub.s32 %s30, 1
        // Predicated region
        $region13: #{tpu_custom_call.1} parent=11 // pred_check
          %p424 = pneg %p171
        $region14: #{tpu_custom_call.1} parent=11 // pred_check_branch
          %426 = sbr.rel (%p424) target = $region16
        $region15: #{tpu_custom_call.1} parent=11 // pred_region
          _
        $region16: #{tpu_custom_call.1} parent=11 // pred_fallthru
          _
        // Predicated region
        $region17: #{tpu_custom_call.1} parent=11 // pred_check
          %p427 = pneg %p192
        $region18: #{tpu_custom_call.1} parent=11 // pred_check_branch
          %429 = sbr.rel (%p427) target = $region20
        $region19: #{tpu_custom_call.1} parent=11 // pred_region
          _
        $region20: #{tpu_custom_call.1} parent=11 // pred_fallthru
          _
        // Predicated region
        $region21: #{tpu_custom_call.1} parent=11 // pred_check
          %p430 = pneg %p213
        $region22: #{tpu_custom_call.1} parent=11 // pred_check_branch
          %432 = sbr.rel (%p430) target = $region24
        $region23: #{tpu_custom_call.1} parent=11 // pred_region
          _
        $region24: #{tpu_custom_call.1} parent=11 // pred_fallthru
          _
        // Predicated region
        $region25: #{tpu_custom_call.1} parent=11 // pred_check
          %p433 = pneg %p234
        $region26: #{tpu_custom_call.1} parent=11 // pred_check_branch
          %435 = sbr.rel (%p433) target = $region28
        $region27: #{tpu_custom_call.1} parent=11 // pred_region
          %437 = vsyncadd [#allocation5], 0
          %s438 = sshll.u32 %s7, 4
          %s439 = int_to_ptr.hbm [resolvable:$true] %s438
          %s440 = sshll.u32 [#allocation4], 4
          %s441 = int_to_ptr.vmem [resolvable:$true] %s440
          %446 = dma.hbm_to_vmem [thread:$0]  %s439, 256, %s441, [#allocation5], 64, 64, 4
        $region28: #{tpu_custom_call.1} parent=11 // pred_fallthru
          _
        // Predicated region
        $region29: #{tpu_custom_call.1} parent=11 // pred_check
          %p447 = pneg %p255
        $region30: #{tpu_custom_call.1} parent=11 // pred_check_branch
          %449 = sbr.rel (%p447) target = $region32
        $region31: #{tpu_custom_call.1} parent=11 // pred_region
          %451 = vsyncadd [#allocation8], 0
          %s452 = sshll.u32 %s8, 4
          %s453 = int_to_ptr.hbm [resolvable:$true] %s452
          %s454 = sshll.u32 [#allocation7], 4
          %s455 = int_to_ptr.vmem [resolvable:$true] %s454
          %460 = dma.hbm_to_vmem [thread:$0]  %s453, 256, %s455, [#allocation8], 64, 64, 4
        $region32: #{tpu_custom_call.1} parent=11 // pred_fallthru
          _
        // Predicated region
        $region33: #{tpu_custom_call.1} parent=11 // pred_check
          %p461 = pneg %p276
        $region34: #{tpu_custom_call.1} parent=11 // pred_check_branch
          %463 = sbr.rel (%p461) target = $region36
        $region35: #{tpu_custom_call.1} parent=11 // pred_region
          _
        $region36: #{tpu_custom_call.1} parent=11 // pred_fallthru
          _
        // Predicated region
        $region37: #{tpu_custom_call.1} parent=11 // pred_check
          %p464 = pneg %p297
        $region38: #{tpu_custom_call.1} parent=11 // pred_check_branch
          %466 = sbr.rel (%p464) target = $region40
        $region39: #{tpu_custom_call.1} parent=11 // pred_region
          _
        $region40: #{tpu_custom_call.1} parent=11 // pred_fallthru
          _
        // Predicated region
        $region41: #{tpu_custom_call.1} parent=11 // pred_check
          %p467 = pneg %p318
        $region42: #{tpu_custom_call.1} parent=11 // pred_check_branch
          %469 = sbr.rel (%p467) target = $region44
        $region43: #{tpu_custom_call.1} parent=11 // pred_region
          _
        $region44: #{tpu_custom_call.1} parent=11 // pred_fallthru
          _
        // Predicated region
        $region45: #{tpu_custom_call.1} parent=11 // pred_check
          %p470 = pneg %p339
        $region46: #{tpu_custom_call.1} parent=11 // pred_check_branch
          %472 = sbr.rel (%p470) target = $region48
        $region47: #{tpu_custom_call.1} parent=11 // pred_region
          %474 = vsyncadd [#allocation8], 0
          %s475 = sshll.u32 %s12, 4
          %s476 = int_to_ptr.hbm [resolvable:$true] %s475
          %s477 = sshll.u32 [#allocation9], 4
          %s478 = int_to_ptr.vmem [resolvable:$true] %s477
          %483 = dma.hbm_to_vmem [thread:$0]  %s476, 256, %s478, [#allocation8], 64, 64, 4
        $region48: #{tpu_custom_call.1} parent=11 // pred_fallthru
          _
        // Predicated region
        $region49: #{tpu_custom_call.1} parent=11 // pred_check
          %p484 = pneg %p360
        $region50: #{tpu_custom_call.1} parent=11 // pred_check_branch
          %486 = sbr.rel (%p484) target = $region52
        $region51: #{tpu_custom_call.1} parent=11 // pred_region
          _
        $region52: #{tpu_custom_call.1} parent=11 // pred_fallthru
          _
        // Predicated region
        $region53: #{tpu_custom_call.1} parent=11 // pred_check
          %p487 = pneg %p381
        $region54: #{tpu_custom_call.1} parent=11 // pred_check_branch
          %489 = sbr.rel (%p487) target = $region56
        $region55: #{tpu_custom_call.1} parent=11 // pred_region
          _
        $region56: #{tpu_custom_call.1} parent=11 // pred_fallthru
          _
      $region12: #{tpu_custom_call.1} parent=5 // pred_fallthru
        _
      %p490 = scmp.lt.s32.totalorder %s30, 4
      // Predicated region
      $region57: #{tpu_custom_call.1} parent=5 // pred_check
        %p491 = pneg %p490
      $region58: #{tpu_custom_call.1} parent=5 // pred_check_branch
        %493 = sbr.rel (%p491) target = $region60
      $region59: #{tpu_custom_call.1} parent=5 // pred_region
        // Predicated region
        $region61: #{tpu_custom_call.1} parent=59 // pred_check
          %p494 = pneg %p64
        $region62: #{tpu_custom_call.1} parent=59 // pred_check_branch
          %496 = sbr.rel (%p494) target = $region64
        $region63: #{tpu_custom_call.1} parent=59 // pred_region
          %p497 = scmp.lt.s32.totalorder %s37, 1
          %s498 = scalar_select %p497, %s37, 1
          %p499 = scmp.lt.s32.totalorder %s38, 1
          %s500 = scalar_select %p499, %s38, 1
          %s501 = smul.addr %s498, 2
          %s502 = sadd.s32 %s500, %s501
          %s503 = smul.addr %s502, 8
          %s504 = scalar_lea.vmem %s0, %s503
        $region64: #{tpu_custom_call.1} parent=59 // pred_fallthru
          _
        // Predicated region
        $region65: #{tpu_custom_call.1} parent=59 // pred_check
          %p505 = pneg %p90
        $region66: #{tpu_custom_call.1} parent=59 // pred_check_branch
          %507 = sbr.rel (%p505) target = $region68
        $region67: #{tpu_custom_call.1} parent=59 // pred_region
          %p508 = scmp.lt.s32.totalorder %s37, 1
          %s509 = scalar_select %p508, %s37, 1
          %s510 = smul.addr %s509, 4
          %s511 = smul.addr %s510, 4
          %s512 = scalar_lea.vmem %s1, %s511
        $region68: #{tpu_custom_call.1} parent=59 // pred_fallthru
          _
        // Predicated region
        $region69: #{tpu_custom_call.1} parent=59 // pred_check
          %p513 = pneg %p116
        $region70: #{tpu_custom_call.1} parent=59 // pred_check_branch
          %515 = sbr.rel (%p513) target = $region72
        $region71: #{tpu_custom_call.1} parent=59 // pred_region
          %p516 = scmp.lt.s32.totalorder %s37, 1
          %s517 = scalar_select %p516, %s37, 1
          %s518 = smul.addr %s517, 4
          %s519 = smul.addr %s518, 4
          %s520 = scalar_lea.vmem %s2, %s519
        $region72: #{tpu_custom_call.1} parent=59 // pred_fallthru
          _
        // Predicated region
        $region73: #{tpu_custom_call.1} parent=59 // pred_check
          %p521 = pneg %p144
        $region74: #{tpu_custom_call.1} parent=59 // pred_check_branch
          %523 = sbr.rel (%p521) target = $region76
        $region75: #{tpu_custom_call.1} parent=59 // pred_region
          %p524 = scmp.lt.s32.totalorder %s37, 1
          %s525 = scalar_select %p524, %s37, 1
          %p526 = scmp.lt.s32.totalorder %s38, 1
          %s527 = scalar_select %p526, %s38, 1
          %s528 = smul.addr %s525, 2
          %s529 = sadd.s32 %s527, %s528
          %s530 = smul.addr %s529, 8
          %s531 = scalar_lea.vmem %s3, %s530
        $region76: #{tpu_custom_call.1} parent=59 // pred_fallthru
          _
      $region60: #{tpu_custom_call.1} parent=5 // pred_fallthru
        _
      %p532 = scmp.le.s32.totalorder 1, %s30
      %p533 = scmp.lt.s32.totalorder %s30, 5
      %p534 = pnand %p532, %p533
      %p535 = pneg %p534
      // Predicated region
      $region77: #{tpu_custom_call.1} parent=5 // pred_check
        _
      $region78: #{tpu_custom_call.1} parent=5 // pred_check_branch
        %537 = sbr.rel (%p534) target = $region80
      $region79: #{tpu_custom_call.1} parent=5 // pred_region
        %s538 = ssub.s32 %s30, 1
        // Predicated region
        $region81: #{tpu_custom_call.1} parent=79 // pred_check
          %p539 = pneg %p234
        $region82: #{tpu_custom_call.1} parent=79 // pred_check_branch
          %541 = sbr.rel (%p539) target = $region84
        $region83: #{tpu_custom_call.1} parent=79 // pred_region
          %543 = dma.done [#allocation5], 256
        $region84: #{tpu_custom_call.1} parent=79 // pred_fallthru
          _
        // Predicated region
        $region85: #{tpu_custom_call.1} parent=79 // pred_check
          %p544 = pneg %p255
        $region86: #{tpu_custom_call.1} parent=79 // pred_check_branch
          %546 = sbr.rel (%p544) target = $region88
        $region87: #{tpu_custom_call.1} parent=79 // pred_region
          %548 = dma.done [#allocation8], 256
        $region88: #{tpu_custom_call.1} parent=79 // pred_fallthru
          _
        // Predicated region
        $region89: #{tpu_custom_call.1} parent=79 // pred_check
          %p549 = pneg %p339
        $region90: #{tpu_custom_call.1} parent=79 // pred_check_branch
          %551 = sbr.rel (%p549) target = $region92
        $region91: #{tpu_custom_call.1} parent=79 // pred_region
          %553 = dma.done [#allocation8], 256
        $region92: #{tpu_custom_call.1} parent=79 // pred_fallthru
          _
        %p554 = scmp.lt.s32.totalorder %s39, 1
        %s555 = scalar_select %p554, %s39, 1
        %p556 = scmp.lt.s32.totalorder %s40, 1
        %s557 = scalar_select %p556, %s40, 1
        %s558 = smul.addr %s555, 2
        %s559 = sadd.s32 %s557, %s558
        %s560 = smul.addr %s559, 8
        %s561 = scalar_lea.vmem %s0, %s560
        %p562 = pneg %p70
        %p563 = pneg %p67
        %p564 = scmp.lt.s32.totalorder %s39, 1
        %s565 = scalar_select %p564, %s39, 1
        %s566 = smul.addr %s565, 4
        %s567 = smul.addr %s566, 4
        %s568 = scalar_lea.vmem %s1, %s567
        %p569 = pneg %p96
        %p570 = pneg %p93
        %p571 = scmp.lt.s32.totalorder %s39, 1
        %s572 = scalar_select %p571, %s39, 1
        %s573 = smul.addr %s572, 4
        %s574 = smul.addr %s573, 4
        %s575 = scalar_lea.vmem %s2, %s574
        %p576 = pneg %p122
        %p577 = pneg %p119
        %p578 = scmp.lt.s32.totalorder %s39, 1
        %s579 = scalar_select %p578, %s39, 1
        %p580 = scmp.lt.s32.totalorder %s40, 1
        %s581 = scalar_select %p580, %s40, 1
        %s582 = smul.addr %s579, 2
        %s583 = sadd.s32 %s581, %s582
        %s584 = smul.addr %s583, 8
        %s585 = scalar_lea.vmem %s3, %s584
        %p586 = pneg %p150
        %p587 = pneg %p147
        %p588 = pneg %p171
        %p589 = pneg %p168
        %p590 = pneg %p192
        %p591 = pneg %p189
        %p592 = pneg %p213
        %p593 = pneg %p210
        %p594 = pneg %p234
        %p595 = pneg %p231
        %p596 = pneg %p255
        %p597 = pneg %p252
        %p598 = pneg %p276
        %p599 = pneg %p273
        %p600 = pneg %p297
        %p601 = pneg %p294
        %p602 = pneg %p318
        %p603 = pneg %p315
        %p604 = pneg %p339
        %p605 = pneg %p336
        %p606 = pneg %p360
        %p607 = pneg %p357
        %p608 = pneg %p381
        %p609 = pneg %p378
        %p610 = pneg %p409
        %p611 = pneg %p406
        %s612 = sand.u32 %s396, 1
        %s613 = scalar_lea.sflag [#allocation6], %s612
        %s614 = sand.u32 %s396, 1
        %s615 = smul.addr %s614, 8
        %s616 = scalar_lea.vmem [#allocation10], %s615
        %p617 = scmp.lt.s32.totalorder %s39, 1
        %s618 = scalar_select %p617, %s39, 1
        %p619 = scmp.lt.s32.totalorder %s40, 1
        %s620 = scalar_select %p619, %s40, 1
        %s621 = smul.addr %s618, 2
        %s622 = sadd.s32 %s620, %s621
        %s623 = smul.addr %s622, 8
        %s624 = scalar_lea.vmem %s0, %s623
        %p625 = scmp.lt.s32.totalorder %s39, 1
        %s626 = scalar_select %p625, %s39, 1
        %s627 = smul.addr %s626, 4
        %s628 = smul.addr %s627, 4
        %s629 = scalar_lea.vmem %s1, %s628
        %p630 = scmp.lt.s32.totalorder %s39, 1
        %s631 = scalar_select %p630, %s39, 1
        %s632 = smul.addr %s631, 4
        %s633 = smul.addr %s632, 4
        %s634 = scalar_lea.vmem %s2, %s633
        %p635 = scmp.lt.s32.totalorder %s39, 1
        %s636 = scalar_select %p635, %s39, 1
        %p637 = scmp.lt.s32.totalorder %s40, 1
        %s638 = scalar_select %p637, %s40, 1
        %s639 = smul.addr %s636, 2
        %s640 = sadd.s32 %s638, %s639
        %s641 = smul.addr %s640, 8
        %s642 = scalar_lea.vmem %s3, %s641
        %v644 = vld [vmem:[%s624] sm:$0xff]
        %v645 = vld [vmem:[%s642] sm:$0xff]
        %v646 = vld [vmem:[%s4] sm:$0x1]
        %647 = vset.pattern.permute.xlu0 0
        %648 = vperm.xlu0 %647, %v645
        %v649 = vpop.permute.xlu0 %648
        %v650 = vperm.slane %v646, 0
        %vm651 = vcmp.eq.s32.totalorder %v649, %v650
        %v652 = vld [vmem:[%s5] sm:$0x1]
        %v653 = vld [vmem:[%s6] sm:$0x1]
        %vm654 = vcmask 261120
        %v655 = vsel %vm654, %v644, 0.0
        %656 = vadd.xlane.f32.xlu0 %v655
        %v657 = vpop.xlane.xlu0 %656
        %v658 = vrcp.pop 32.0
        %v659 = vmul.f32 32.0, %v658
        %v660 = vsub.f32 1.0, %v659
        %v661 = vmul.f32 %v658, %v660
        %v662 = vadd.f32 %v658, %v661
        %vm663 = vweird.f32 %v658
        %v664 = vsel %vm663, %v658, %v662
        %v665 = vmul.f32 %v657, %v664
        %v666 = vmul.f32 %v644, %v644
        %v667 = vsel %vm654, %v666, 0.0
        %668 = vadd.xlane.f32.xlu0 %v667
        %v669 = vpop.xlane.xlu0 %668
        %v670 = vmul.f32 %v669, %v664
        %v671 = vmul.f32 %v665, %v665
        %v672 = vsub.f32 %v670, %v671
        %v673 = vsub.f32 %v644, %v665
        %v674 = vadd.f32 %v672, 1e-05
        %v675 = vrsqrt.pop %v674
        %v676 = vmul.f32 %v675, %v674
        %v677 = vmul.f32 %v676, %v675
        %v678 = vmul.f32 0.5, %v677
        %v679 = vsub.f32 1.5, %v678
        %v680 = vmul.f32 %v675, %v679
        %vm681 = vweird.f32 %v674
        %vm682 = vweird.f32 %v675
        %vm683 = vmor %vm681, %vm682
        %v684 = vsel %vm683, %v675, %v680
        %v685 = vmul.f32 %v673, %v684
        %v687 = vperm.slane %v652, 0
        %v689 = vmul.f32 %v685, %v687
        %v691 = vperm.slane %v653, 0
        %v693 = vadd.f32 %v689, %v691
        %v694 = vpack.c.bf16 %v693, %v693
        %v695 = vld [vmem:[#allocation4] sm:$0xf]
        %v697 = vsel %vm654, %v694, 0
        %v700 = vsel %vm654, %v695, 0
        %702 = vmatpush.bf16.xpose.msra.mxu0 0
        %703 = vmatpush.bf16.xpose.msra.mxu0 0
        %704 = vmatpush.bf16.xpose.msra.mxu0 0
        %705 = vmatpush.bf16.xpose.msra.mxu0 0
        %706 = vmatpush.bf16.xpose.msra.mxu0 0
        %707 = vmatpush.bf16.xpose.msra.mxu0 0
        %708 = vmatpush.bf16.xpose.msra.mxu0 0
        %709 = vmatpush.bf16.xpose.msra.mxu0 %v700
        %710 = vmatmul.bf16.gmra.mxu0 %v697
        %v711 = vpop.f32.mrf.mxu0
        %v712 = vadd.f32 0.0, %v711
        %v713 = vpop.f32.mrf.mxu0
        %714 = vdwg.mxu0
        %v715 = vpack.c.bf16 %v712, %v712
        %v716 = vld [vmem:[%s629] sm:$0xf]
        %vm717 = vcmask 64512
        %v719 = vsel %vm717, %v715, 0
        %vm721 = vcmask 1043456
        %v723 = vsel %vm721, %v716, 0
        %725 = vmatpush.bf16.msra.mxu0 0
        %726 = vmatpush.bf16.msra.mxu0 0
        %727 = vmatpush.bf16.msra.mxu0 0
        %728 = vmatpush.bf16.msra.mxu0 0
        %729 = vmatpush.bf16.msra.mxu0 0
        %730 = vmatpush.bf16.msra.mxu0 0
        %731 = vmatpush.bf16.msra.mxu0 0
        %732 = vmatpush.bf16.msra.mxu0 %v723
        %733 = vmatmul.bf16.gmra.mxu0 %v719
        %v734 = vpop.f32.mrf.mxu0
        %v735 = vadd.f32 0.0, %v734
        %v736 = vpop.f32.mrf.mxu0
        %737 = vdwg.mxu0
        %v738 = vsel %vm651, %v735, -3.4028235e+38
        %v739 = vsel %vm717, %v738, -inf
        %740 = vmax.xlane.f32.xlu0 %v739
        %v741 = vpop.xlane.xlu0 %740
        %v742 = vsub.f32 %v738, %v741
        %v743 = vmul.f32 %v742, 1.442695
        %v744 = vpow.pop %v743
        %v745 = vsel %vm717, %v744, 0.0
        %746 = vadd.xlane.f32.xlu0 %v745
        %v747 = vpop.xlane.xlu0 %746
        %v748 = vrcp.pop %v747
        %v749 = vmul.f32 %v744, %v748
        %v750 = vpack.c.bf16 %v749, %v749
        %v751 = vld [vmem:[%s634] sm:$0xf]
        %v753 = vsel %vm717, %v750, 0
        %v756 = vsel %vm717, %v751, 0
        %758 = vmatpush.bf16.xpose.msra.mxu0 0
        %759 = vmatpush.bf16.xpose.msra.mxu0 0
        %760 = vmatpush.bf16.xpose.msra.mxu0 0
        %761 = vmatpush.bf16.xpose.msra.mxu0 0
        %762 = vmatpush.bf16.xpose.msra.mxu0 0
        %763 = vmatpush.bf16.xpose.msra.mxu0 0
        %764 = vmatpush.bf16.xpose.msra.mxu0 0
        %765 = vmatpush.bf16.xpose.msra.mxu0 %v756
        %766 = vmatmul.bf16.gmra.mxu0 %v753
        %v767 = vpop.f32.mrf.mxu0
        %v768 = vadd.f32 0.0, %v767
        %v769 = vpop.f32.mrf.mxu0
        %770 = vdwg.mxu0
        %v771 = vpack.c.bf16 %v768, %v768
        %v772 = vld [vmem:[#allocation7] sm:$0xf]
        %s773 = scalar_lea.vmem [#allocation4], 4
        %v774 = vld [vmem:[%s773] sm:$0xf]
        %v776 = vsel %vm654, %v774, 0
        %778 = vmatpush.bf16.xpose.msra.mxu0 0
        %779 = vmatpush.bf16.xpose.msra.mxu0 0
        %780 = vmatpush.bf16.xpose.msra.mxu0 0
        %781 = vmatpush.bf16.xpose.msra.mxu0 0
        %782 = vmatpush.bf16.xpose.msra.mxu0 0
        %783 = vmatpush.bf16.xpose.msra.mxu0 0
        %784 = vmatpush.bf16.xpose.msra.mxu0 0
        %785 = vmatpush.bf16.xpose.msra.mxu0 %v776
        %786 = vmatmul.bf16.gmra.mxu0 %v697
        %v787 = vpop.f32.mrf.mxu0
        %v788 = vadd.f32 0.0, %v787
        %v789 = vpop.f32.mrf.mxu0
        %790 = vdwg.mxu0
        %v791 = vpack.c.bf16 %v788, %v788
        %s792 = scalar_lea.vmem %s629, 4
        %v793 = vld [vmem:[%s792] sm:$0xf]
        %v795 = vsel %vm717, %v791, 0
        %v798 = vsel %vm721, %v793, 0
        %800 = vmatpush.bf16.msra.mxu0 0
        %801 = vmatpush.bf16.msra.mxu0 0
        %802 = vmatpush.bf16.msra.mxu0 0
        %803 = vmatpush.bf16.msra.mxu0 0
        %804 = vmatpush.bf16.msra.mxu0 0
        %805 = vmatpush.bf16.msra.mxu0 0
        %806 = vmatpush.bf16.msra.mxu0 0
        %807 = vmatpush.bf16.msra.mxu0 %v798
        %808 = vmatmul.bf16.gmra.mxu0 %v795
        %v809 = vpop.f32.mrf.mxu0
        %v810 = vadd.f32 0.0, %v809
        %v811 = vpop.f32.mrf.mxu0
        %812 = vdwg.mxu0
        %v813 = vsel %vm651, %v810, -3.4028235e+38
        %v814 = vsel %vm717, %v813, -inf
        %815 = vmax.xlane.f32.xlu0 %v814
        %v816 = vpop.xlane.xlu0 %815
        %v817 = vsub.f32 %v813, %v816
        %v818 = vmul.f32 %v817, 1.442695
        %v819 = vpow.pop %v818
        %v820 = vsel %vm717, %v819, 0.0
        %821 = vadd.xlane.f32.xlu0 %v820
        %v822 = vpop.xlane.xlu0 %821
        %v823 = vrcp.pop %v822
        %v824 = vmul.f32 %v819, %v823
        %v825 = vpack.c.bf16 %v824, %v824
        %s826 = scalar_lea.vmem %s634, 4
        %v827 = vld [vmem:[%s826] sm:$0xf]
        %v829 = vsel %vm717, %v825, 0
        %v832 = vsel %vm717, %v827, 0
        %834 = vmatpush.bf16.xpose.msra.mxu0 0
        %835 = vmatpush.bf16.xpose.msra.mxu0 0
        %836 = vmatpush.bf16.xpose.msra.mxu0 0
        %837 = vmatpush.bf16.xpose.msra.mxu0 0
        %838 = vmatpush.bf16.xpose.msra.mxu0 0
        %839 = vmatpush.bf16.xpose.msra.mxu0 0
        %840 = vmatpush.bf16.xpose.msra.mxu0 0
        %841 = vmatpush.bf16.xpose.msra.mxu0 %v832
        %842 = vmatmul.bf16.gmra.mxu0 %v829
        %v843 = vpop.f32.mrf.mxu0
        %v844 = vadd.f32 0.0, %v843
        %v845 = vpop.f32.mrf.mxu0
        %846 = vdwg.mxu0
        %v847 = vpack.c.bf16 %v844, %v844
        %s848 = scalar_lea.vmem [#allocation7], 4
        %v849 = vld [vmem:[%s848] sm:$0xf]
        %v851 = vsel %vm717, %v847, 0
        %v854 = vsel %vm721, %v849, 0
        %856 = vmatpush.bf16.msra.mxu0 0
        %857 = vmatpush.bf16.msra.mxu0 0
        %858 = vmatpush.bf16.msra.mxu0 0
        %859 = vmatpush.bf16.msra.mxu0 0
        %860 = vmatpush.bf16.msra.mxu0 0
        %861 = vmatpush.bf16.msra.mxu0 0
        %862 = vmatpush.bf16.msra.mxu0 0
        %863 = vmatpush.bf16.msra.mxu0 %v854
        %864 = vmatmul.bf16.gmra.mxu0 %v851
        %v865 = vpop.f32.mrf.mxu0
        %v866 = vadd.f32 0.0, %v865
        %v867 = vpop.f32.mrf.mxu0
        %868 = vdwg.mxu0
        %v870 = vsel %vm717, %v771, 0
        %v873 = vsel %vm721, %v772, 0
        %875 = vmatpush.bf16.msra.mxu0 0
        %876 = vmatpush.bf16.msra.mxu0 0
        %877 = vmatpush.bf16.msra.mxu0 0
        %878 = vmatpush.bf16.msra.mxu0 0
        %879 = vmatpush.bf16.msra.mxu0 0
        %880 = vmatpush.bf16.msra.mxu0 0
        %881 = vmatpush.bf16.msra.mxu0 0
        %882 = vmatpush.bf16.msra.mxu0 %v873
        %883 = vmatmul.bf16.gmra.mxu0 %v870
        %v884 = vpop.f32.mrf.mxu0
        %v885 = vadd.f32 %v866, %v884
        %v886 = vpop.f32.mrf.mxu0
        %887 = vdwg.mxu0
        %s888 = scalar_lea.vmem [#allocation4], 8
        %v889 = vld [vmem:[%s888] sm:$0xf]
        %v891 = vsel %vm654, %v889, 0
        %893 = vmatpush.bf16.xpose.msra.mxu0 0
        %894 = vmatpush.bf16.xpose.msra.mxu0 0
        %895 = vmatpush.bf16.xpose.msra.mxu0 0
        %896 = vmatpush.bf16.xpose.msra.mxu0 0
        %897 = vmatpush.bf16.xpose.msra.mxu0 0
        %898 = vmatpush.bf16.xpose.msra.mxu0 0
        %899 = vmatpush.bf16.xpose.msra.mxu0 0
        %900 = vmatpush.bf16.xpose.msra.mxu0 %v891
        %901 = vmatmul.bf16.gmra.mxu0 %v697
        %v902 = vpop.f32.mrf.mxu0
        %v903 = vadd.f32 0.0, %v902
        %v904 = vpop.f32.mrf.mxu0
        %905 = vdwg.mxu0
        %v906 = vpack.c.bf16 %v903, %v903
        %s907 = scalar_lea.vmem %s629, 8
        %v908 = vld [vmem:[%s907] sm:$0xf]
        %v910 = vsel %vm717, %v906, 0
        %v913 = vsel %vm721, %v908, 0
        %915 = vmatpush.bf16.msra.mxu0 0
        %916 = vmatpush.bf16.msra.mxu0 0
        %917 = vmatpush.bf16.msra.mxu0 0
        %918 = vmatpush.bf16.msra.mxu0 0
        %919 = vmatpush.bf16.msra.mxu0 0
        %920 = vmatpush.bf16.msra.mxu0 0
        %921 = vmatpush.bf16.msra.mxu0 0
        %922 = vmatpush.bf16.msra.mxu0 %v913
        %923 = vmatmul.bf16.gmra.mxu0 %v910
        %v924 = vpop.f32.mrf.mxu0
        %v925 = vadd.f32 0.0, %v924
        %v926 = vpop.f32.mrf.mxu0
        %927 = vdwg.mxu0
        %v928 = vsel %vm651, %v925, -3.4028235e+38
        %v929 = vsel %vm717, %v928, -inf
        %930 = vmax.xlane.f32.xlu0 %v929
        %v931 = vpop.xlane.xlu0 %930
        %v932 = vsub.f32 %v928, %v931
        %v933 = vmul.f32 %v932, 1.442695
        %v934 = vpow.pop %v933
        %v935 = vsel %vm717, %v934, 0.0
        %936 = vadd.xlane.f32.xlu0 %v935
        %v937 = vpop.xlane.xlu0 %936
        %v938 = vrcp.pop %v937
        %v939 = vmul.f32 %v934, %v938
        %v940 = vpack.c.bf16 %v939, %v939
        %s941 = scalar_lea.vmem %s634, 8
        %v942 = vld [vmem:[%s941] sm:$0xf]
        %v944 = vsel %vm717, %v940, 0
        %v947 = vsel %vm717, %v942, 0
        %949 = vmatpush.bf16.xpose.msra.mxu0 0
        %950 = vmatpush.bf16.xpose.msra.mxu0 0
        %951 = vmatpush.bf16.xpose.msra.mxu0 0
        %952 = vmatpush.bf16.xpose.msra.mxu0 0
        %953 = vmatpush.bf16.xpose.msra.mxu0 0
        %954 = vmatpush.bf16.xpose.msra.mxu0 0
        %955 = vmatpush.bf16.xpose.msra.mxu0 0
        %956 = vmatpush.bf16.xpose.msra.mxu0 %v947
        %957 = vmatmul.bf16.gmra.mxu0 %v944
        %v958 = vpop.f32.mrf.mxu0
        %v959 = vadd.f32 0.0, %v958
        %v960 = vpop.f32.mrf.mxu0
        %961 = vdwg.mxu0
        %v962 = vpack.c.bf16 %v959, %v959
        %s963 = scalar_lea.vmem [#allocation7], 8
        %v964 = vld [vmem:[%s963] sm:$0xf]
        %v966 = vsel %vm717, %v962, 0
        %v969 = vsel %vm721, %v964, 0
        %971 = vmatpush.bf16.msra.mxu0 0
        %972 = vmatpush.bf16.msra.mxu0 0
        %973 = vmatpush.bf16.msra.mxu0 0
        %974 = vmatpush.bf16.msra.mxu0 0
        %975 = vmatpush.bf16.msra.mxu0 0
        %976 = vmatpush.bf16.msra.mxu0 0
        %977 = vmatpush.bf16.msra.mxu0 0
        %978 = vmatpush.bf16.msra.mxu0 %v969
        %979 = vmatmul.bf16.gmra.mxu0 %v966
        %v980 = vpop.f32.mrf.mxu0
        %v981 = vadd.f32 0.0, %v980
        %v982 = vpop.f32.mrf.mxu0
        %983 = vdwg.mxu0
        %v984 = vadd.f32 %v885, %v981
        %s985 = scalar_lea.vmem [#allocation4], 12
        %v986 = vld [vmem:[%s985] sm:$0xf]
        %v988 = vsel %vm654, %v986, 0
        %990 = vmatpush.bf16.xpose.msra.mxu0 0
        %991 = vmatpush.bf16.xpose.msra.mxu0 0
        %992 = vmatpush.bf16.xpose.msra.mxu0 0
        %993 = vmatpush.bf16.xpose.msra.mxu0 0
        %994 = vmatpush.bf16.xpose.msra.mxu0 0
        %995 = vmatpush.bf16.xpose.msra.mxu0 0
        %996 = vmatpush.bf16.xpose.msra.mxu0 0
        %997 = vmatpush.bf16.xpose.msra.mxu0 %v988
        %998 = vmatmul.bf16.gmra.mxu0 %v697
        %v999 = vpop.f32.mrf.mxu0
        %v1000 = vadd.f32 0.0, %v999
        %v1001 = vpop.f32.mrf.mxu0
        %1002 = vdwg.mxu0
        %v1003 = vpack.c.bf16 %v1000, %v1000
        %s1004 = scalar_lea.vmem %s629, 12
        %v1005 = vld [vmem:[%s1004] sm:$0xf]
        %v1007 = vsel %vm717, %v1003, 0
        %v1010 = vsel %vm721, %v1005, 0
        %1012 = vmatpush.bf16.msra.mxu0 0
        %1013 = vmatpush.bf16.msra.mxu0 0
        %1014 = vmatpush.bf16.msra.mxu0 0
        %1015 = vmatpush.bf16.msra.mxu0 0
        %1016 = vmatpush.bf16.msra.mxu0 0
        %1017 = vmatpush.bf16.msra.mxu0 0
        %1018 = vmatpush.bf16.msra.mxu0 0
        %1019 = vmatpush.bf16.msra.mxu0 %v1010
        %1020 = vmatmul.bf16.gmra.mxu0 %v1007
        %v1021 = vpop.f32.mrf.mxu0
        %v1022 = vadd.f32 0.0, %v1021
        %v1023 = vpop.f32.mrf.mxu0
        %1024 = vdwg.mxu0
        %v1025 = vsel %vm651, %v1022, -3.4028235e+38
        %v1026 = vsel %vm717, %v1025, -inf
        %1027 = vmax.xlane.f32.xlu0 %v1026
        %v1028 = vpop.xlane.xlu0 %1027
        %v1029 = vsub.f32 %v1025, %v1028
        %v1030 = vmul.f32 %v1029, 1.442695
        %v1031 = vpow.pop %v1030
        %v1032 = vsel %vm717, %v1031, 0.0
        %1033 = vadd.xlane.f32.xlu0 %v1032
        %v1034 = vpop.xlane.xlu0 %1033
        %v1035 = vrcp.pop %v1034
        %v1036 = vmul.f32 %v1031, %v1035
        %v1037 = vpack.c.bf16 %v1036, %v1036
        %s1038 = scalar_lea.vmem %s634, 12
        %v1039 = vld [vmem:[%s1038] sm:$0xf]
        %v1041 = vsel %vm717, %v1037, 0
        %v1044 = vsel %vm717, %v1039, 0
        %1046 = vmatpush.bf16.xpose.msra.mxu0 0
        %1047 = vmatpush.bf16.xpose.msra.mxu0 0
        %1048 = vmatpush.bf16.xpose.msra.mxu0 0
        %1049 = vmatpush.bf16.xpose.msra.mxu0 0
        %1050 = vmatpush.bf16.xpose.msra.mxu0 0
        %1051 = vmatpush.bf16.xpose.msra.mxu0 0
        %1052 = vmatpush.bf16.xpose.msra.mxu0 0
        %1053 = vmatpush.bf16.xpose.msra.mxu0 %v1044
        %1054 = vmatmul.bf16.gmra.mxu0 %v1041
        %v1055 = vpop.f32.mrf.mxu0
        %v1056 = vadd.f32 0.0, %v1055
        %v1057 = vpop.f32.mrf.mxu0
        %1058 = vdwg.mxu0
        %v1059 = vpack.c.bf16 %v1056, %v1056
        %s1060 = scalar_lea.vmem [#allocation7], 12
        %v1061 = vld [vmem:[%s1060] sm:$0xf]
        %v1063 = vsel %vm717, %v1059, 0
        %v1066 = vsel %vm721, %v1061, 0
        %1068 = vmatpush.bf16.msra.mxu0 0
        %1069 = vmatpush.bf16.msra.mxu0 0
        %1070 = vmatpush.bf16.msra.mxu0 0
        %1071 = vmatpush.bf16.msra.mxu0 0
        %1072 = vmatpush.bf16.msra.mxu0 0
        %1073 = vmatpush.bf16.msra.mxu0 0
        %1074 = vmatpush.bf16.msra.mxu0 0
        %1075 = vmatpush.bf16.msra.mxu0 %v1066
        %1076 = vmatmul.bf16.gmra.mxu0 %v1063
        %v1077 = vpop.f32.mrf.mxu0
        %v1078 = vadd.f32 0.0, %v1077
        %v1079 = vpop.f32.mrf.mxu0
        %1080 = vdwg.mxu0
        %v1081 = vadd.f32 %v984, %v1078
        %v1082 = vld [vmem:[#allocation2] sm:$0x1]
        %s1083 = vtos %v1082
        %v1084 = vstv %s1083
        %v1085 = vmul.f32 %v1084, %v1081
        %v1086 = vadd.f32 %v644, %v1085
        %v1087 = vld [vmem:[%s10] sm:$0x1]
        %v1088 = vld [vmem:[%s11] sm:$0x1]
        %v1089 = vsel %vm654, %v1086, 0.0
        %1090 = vadd.xlane.f32.xlu0 %v1089
        %v1091 = vpop.xlane.xlu0 %1090
        %v1092 = vmul.f32 %v1091, %v664
        %v1093 = vmul.f32 %v1086, %v1086
        %v1094 = vsel %vm654, %v1093, 0.0
        %1095 = vadd.xlane.f32.xlu0 %v1094
        %v1096 = vpop.xlane.xlu0 %1095
        %v1097 = vmul.f32 %v1096, %v664
        %v1098 = vmul.f32 %v1092, %v1092
        %v1099 = vsub.f32 %v1097, %v1098
        %v1100 = vsub.f32 %v1086, %v1092
        %v1101 = vadd.f32 %v1099, 1e-05
        %v1102 = vrsqrt.pop %v1101
        %v1103 = vmul.f32 %v1102, %v1101
        %v1104 = vmul.f32 %v1103, %v1102
        %v1105 = vmul.f32 0.5, %v1104
        %v1106 = vsub.f32 1.5, %v1105
        %v1107 = vmul.f32 %v1102, %v1106
        %vm1108 = vweird.f32 %v1101
        %vm1109 = vweird.f32 %v1102
        %vm1110 = vmor %vm1108, %vm1109
        %v1111 = vsel %vm1110, %v1102, %v1107
        %v1112 = vmul.f32 %v1100, %v1111
        %v1114 = vperm.slane %v1087, 0
        %v1116 = vmul.f32 %v1112, %v1114
        %v1118 = vperm.slane %v1088, 0
        %v1120 = vadd.f32 %v1116, %v1118
        %v1121 = vpack.c.bf16 %v1120, %v1120
        %v1122 = vld [vmem:[#allocation9] sm:$0xf]
        %v1123 = vld [vmem:[#allocation9 + $0x4] sm:$0xf]
        %v1124 = vld [vmem:[#allocation9 + $0x8] sm:$0xf]
        %v1125 = vld [vmem:[#allocation9 + $0xc] sm:$0xf]
        %v1130 = vunpack.c.l.b16 %v1122
        %v1131 = vunpack.c.l.b16 %v1123
        %v1132 = vunpack.c.l.b16 %v1124
        %v1133 = vunpack.c.l.b16 %v1125
        %v1134 = vpack.c.b16 %v1131, %v1130
        %v1135 = vpack.c.b16 %v1133, %v1132
        %v1139 = vsel %vm654, %v1121, 0
        %1141 = vmatpush.bf16.msra.mxu0 0
        %1142 = vmatpush.bf16.msra.mxu0 0
        %1143 = vmatpush.bf16.msra.mxu0 0
        %1144 = vmatpush.bf16.msra.mxu0 0
        %1145 = vmatpush.bf16.msra.mxu0 0
        %1146 = vmatpush.bf16.msra.mxu0 0
        %1147 = vmatpush.bf16.msra.mxu0 %v1135
        %1148 = vmatpush.bf16.msra.mxu0 %v1134
        %1149 = vmatmul.bf16.gmra.mxu0 %v1139
        %v1150 = vpop.f32.mrf.mxu0
        %v1151 = vadd.f32 0.0, %v1150
        %v1152 = vpop.f32.mrf.mxu0
        %1153 = vdwg.mxu0
        %v1154 = vmul.f32 %v1151, %v1151
        %v1155 = vmul.f32 %v1151, %v1154
        %v1156 = vmul.f32 %v1155, 0.044715
        %v1157 = vadd.f32 %v1151, %v1156
        %v1158 = vmul.f32 %v1157, 0.7978846
        %v1159 = vtanh.pop %v1158
        %v1160 = vadd.f32 %v1159, 1.0
        %v1161 = vmul.f32 %v1160, 0.5
        %v1162 = vmul.f32 %v1151, %v1161
        %v1163 = vpack.c.bf16 %v1162, %v1162
        %v1164 = vld [vmem:[%s13] sm:$0xf]
        %v1165 = vld [vmem:[%s13 + $0x4] sm:$0xf]
        %v1166 = vld [vmem:[%s13 + $0x8] sm:$0xf]
        %v1167 = vld [vmem:[%s13 + $0xc] sm:$0xf]
        %v1168 = vld [vmem:[%s13 + $0x10] sm:$0xf]
        %v1169 = vld [vmem:[%s13 + $0x14] sm:$0xf]
        %v1170 = vld [vmem:[%s13 + $0x18] sm:$0xf]
        %v1171 = vld [vmem:[%s13 + $0x1c] sm:$0xf]
        %v1172 = vld [vmem:[%s13 + $0x20] sm:$0xf]
        %v1173 = vld [vmem:[%s13 + $0x24] sm:$0xf]
        %v1174 = vld [vmem:[%s13 + $0x28] sm:$0xf]
        %v1175 = vld [vmem:[%s13 + $0x2c] sm:$0xf]
        %v1176 = vld [vmem:[%s13 + $0x30] sm:$0xf]
        %v1177 = vld [vmem:[%s13 + $0x34] sm:$0xf]
        %v1178 = vld [vmem:[%s13 + $0x38] sm:$0xf]
        %v1179 = vld [vmem:[%s13 + $0x3c] sm:$0xf]
        %v1196 = vunpack.c.l.b16 %v1164
        %v1197 = vunpack.c.l.b16 %v1165
        %v1198 = vunpack.c.l.b16 %v1166
        %v1199 = vunpack.c.l.b16 %v1167
        %v1200 = vunpack.c.l.b16 %v1168
        %v1201 = vunpack.c.l.b16 %v1169
        %v1202 = vunpack.c.l.b16 %v1170
        %v1203 = vunpack.c.l.b16 %v1171
        %v1204 = vunpack.c.l.b16 %v1172
        %v1205 = vunpack.c.l.b16 %v1173
        %v1206 = vunpack.c.l.b16 %v1174
        %v1207 = vunpack.c.l.b16 %v1175
        %v1208 = vunpack.c.l.b16 %v1176
        %v1209 = vunpack.c.l.b16 %v1177
        %v1210 = vunpack.c.l.b16 %v1178
        %v1211 = vunpack.c.l.b16 %v1179
        %v1212 = vpack.c.b16 %v1197, %v1196
        %v1213 = vpack.c.b16 %v1199, %v1198
        %v1214 = vpack.c.b16 %v1201, %v1200
        %v1215 = vpack.c.b16 %v1203, %v1202
        %v1216 = vpack.c.b16 %v1205, %v1204
        %v1217 = vpack.c.b16 %v1207, %v1206
        %v1218 = vpack.c.b16 %v1209, %v1208
        %v1219 = vpack.c.b16 %v1211, %v1210
        %1228 = vmatpush.bf16.msra.mxu0 %v1219
        %1229 = vmatpush.bf16.msra.mxu0 %v1218
        %1230 = vmatpush.bf16.msra.mxu0 %v1217
        %1231 = vmatpush.bf16.msra.mxu0 %v1216
        %1232 = vmatpush.bf16.msra.mxu0 %v1215
        %1233 = vmatpush.bf16.msra.mxu0 %v1214
        %1234 = vmatpush.bf16.msra.mxu0 %v1213
        %1235 = vmatpush.bf16.msra.mxu0 %v1212
        %1236 = vmatmul.bf16.gmra.mxu0 %v1163
        %v1237 = vpop.f32.mrf.mxu0
        %v1238 = vadd.f32 0.0, %v1237
        %v1239 = vpop.f32.mrf.mxu0
        %1240 = vdwg.mxu0
        %v1241 = vld [vmem:[#allocation3] sm:$0x1]
        %s1242 = vtos %v1241
        %v1243 = vstv %s1242
        %v1244 = vmul.f32 %v1243, %v1238
        %v1245 = vadd.f32 %v1086, %v1244
        %1246 = vst.msk [vmem:[%s616] sm:$0xff] %vm654, %v1245
        %s1247 = sand.u32 %s396, 1
        %s1248 = scalar_lea.sflag [#allocation6], %s1247
        %s1249 = sand.u32 %s396, 1
        %s1250 = smul.addr %s1249, 8
        %s1251 = scalar_lea.vmem [#allocation10], %s1250
        // Predicated region
        $region93: #{tpu_custom_call.1} parent=79 // pred_check
          %p1252 = pneg %p406
        $region94: #{tpu_custom_call.1} parent=79 // pred_check_branch
          %1254 = sbr.rel (%p1252) target = $region96
        $region95: #{tpu_custom_call.1} parent=79 // pred_region
          %1256 = vsyncadd %s1248, 0
          %s1257 = smul.addr %s39, 2
          %s1258 = sadd.s32 %s40, %s1257
          %s1259 = smul.addr %s1258, 8
          %s1260 = scalar_lea.hbm %s15, %s1259
          %s1262 = sshll.u32 %s1251, 4
          %s1263 = int_to_ptr.vmem [resolvable:$true] %s1262
          %s1264 = sshll.u32 %s1260, 4
          %s1265 = int_to_ptr.hbm [resolvable:$true] %s1264
          %1267 = dma.vmem_to_hbm [thread:$0]  %s1263, 128, %s1265, %s1248
        $region96: #{tpu_custom_call.1} parent=79 // pred_fallthru
          _
      $region80: #{tpu_custom_call.1} parent=5 // pred_fallthru
        _
      %p1268 = scmp.le.s32.totalorder 2, %s30
      // Predicated region
      $region97: #{tpu_custom_call.1} parent=5 // pred_check
        %p1269 = pneg %p1268
      $region98: #{tpu_custom_call.1} parent=5 // pred_check_branch
        %1271 = sbr.rel (%p1269) target = $region100
      $region99: #{tpu_custom_call.1} parent=5 // pred_region
        %s1272 = ssub.s32 %s30, 2
        // Predicated region
        $region101: #{tpu_custom_call.1} parent=99 // pred_check
          %p1273 = pneg %p412
        $region102: #{tpu_custom_call.1} parent=99 // pred_check_branch
          %1275 = sbr.rel (%p1273) target = $region104
        $region103: #{tpu_custom_call.1} parent=99 // pred_region
          %s1276 = sand.u32 %s397, 1
          %s1277 = scalar_lea.sflag [#allocation6], %s1276
          %s1278 = sand.u32 %s397, 1
          %s1279 = smul.addr %s1278, 8
          %s1280 = scalar_lea.vmem [#allocation10], %s1279
          %1282 = dma.done %s1277, 128
        $region104: #{tpu_custom_call.1} parent=99 // pred_fallthru
          _
      $region100: #{tpu_custom_call.1} parent=5 // pred_fallthru
        _
    $region6: #{tpu_custom_call.1} parent=1 // loop_footer
      %s34 = sadd.s32 1, %s30
    $region7: #{tpu_custom_call.1} parent=1 // loop_footer_branch
      %29 = sbr.rel target = $region3
    $region8: #{tpu_custom_call.1} parent=1 // loop_exit
      _
    %1283 = vsyncpa [#allocation5], 1
    %s1284 = scalar_lea.sflag [#allocation5], 1
    %1285 = vsyncpa %s1284, 1
    %1286 = vsyncpa [#allocation8], 1
    %1287 = vsyncpa [#allocation6], 1
    %s1288 = scalar_lea.sflag [#allocation6], 1
    %1289 = vsyncpa %s1288, 1

// kernel: tpu_custom_call.1
$region0: #{tpu_custom_call.1}
  #allocation0 [shape = 'u32[]', space=smem, size = 0x4, offset = 0x4, fixed_abs, tag = 'smem constant byte address 0x4 - core index']
  #allocation1 [shape = 'u32[72,128]{1,0:T(1,128)}', space=vmem, size = 0x9000, scoped, tag = 'internal scratch']
  #allocation2 [shape = 'f32[1,1]{1,0:T(1,128)S(1)}', space=vmem, size = 0x200, scoped, tag = 'scoped memory for tpu_custom_call.1']
  #allocation3 [shape = 'f32[1,1]{1,0:T(1,128)S(1)}', space=vmem, size = 0x200, scoped, tag = 'scoped memory for tpu_custom_call.1']
  %s0 = inlined_call_operand.vmem [shape: f32[2,16,32], index: 0, kind: input, shape index: {}]
  %s1 = inlined_call_operand.vmem [shape: bf16[2,4,8,8], index: 1, kind: input, shape index: {}]
  %s2 = inlined_call_operand.vmem [shape: bf16[2,4,8,8], index: 2, kind: input, shape index: {}]
  %s3 = inlined_call_operand.vmem [shape: s32[2,16,1], index: 3, kind: input, shape index: {}]
  %s4 = inlined_call_operand.vmem [shape: s32[1,8], index: 4, kind: input, shape index: {}]
  %s5 = inlined_call_operand.vmem [shape: f32[1,32], index: 5, kind: input, shape index: {}]
  %s6 = inlined_call_operand.vmem [shape: f32[1,32], index: 6, kind: input, shape index: {}]
  %s7 = inlined_call_operand.hbm [shape: bf16[4,8,32], index: 7, kind: input, shape index: {}]
  %s8 = inlined_call_operand.hbm [shape: bf16[4,8,32], index: 8, kind: input, shape index: {}]
  %s9 = inlined_call_operand.<no memory space> [shape: f32[1,1], index: 9, kind: input, shape index: {}]
  %s10 = inlined_call_operand.vmem [shape: f32[1,32], index: 10, kind: input, shape index: {}]
  %s11 = inlined_call_operand.vmem [shape: f32[1,32], index: 11, kind: input, shape index: {}]
  %s12 = inlined_call_operand.hbm [shape: bf16[32,128], index: 12, kind: input, shape index: {}]
  %s13 = inlined_call_operand.vmem [shape: bf16[128,32], index: 13, kind: input, shape index: {}]
  %s14 = inlined_call_operand.<no memory space> [shape: f32[1,1], index: 14, kind: input, shape index: {}]
  %s15 = inlined_call_operand.hbm [shape: f32[2,16,32], index: 15, kind: output, shape index: {}]
  %s16 = sld [smem:[#allocation0]]
  $region105: #{tpu_custom_call.1} parent=0
    _
  %s18 = ssub.s32 1, %s16
  %s19 = scalar_select 0, %s18, %s16
  %v20 = vstv %s9
  %21 = vst [vmem:[#allocation2] sm:$0x1] %v20
  %v22 = vstv %s14
  %23 = vst [vmem:[#allocation3] sm:$0x1] %v22
  $region1: #{tpu_custom_call.1} parent=0
    #allocation4 [shape = 'u8[8192]{0}', space=vmem, size = 0x2000, scoped, tag = 'input window, operand 7, single buffered']
    #allocation5 [shape = 's32[2]{0}', space=sflag, size = 0x8, scoped, tag = 'scoped memory for tpu_custom_call.1']
    #allocation6 [shape = 's32[2]{0}', space=sflag, size = 0x8, scoped, tag = 'scoped memory for tpu_custom_call.1']
    #allocation7 [shape = 'u8[8192]{0}', space=vmem, size = 0x2000, scoped, tag = 'input window, operand 8, single buffered']
    #allocation8 [shape = 's32[1]{0}', space=sflag, size = 0x4, scoped, tag = 'scoped memory for tpu_custom_call.1']
    #allocation9 [shape = 'u8[8192]{0}', space=vmem, size = 0x2000, scoped, tag = 'input window, operand 12, single buffered']
    #allocation10 [shape = 'u8[8192]{0}', space=vmem, size = 0x2000, scoped, tag = 'output window, operand 0']
    %24 = vsyncpa [#allocation5], 0
    %25 = vsyncpa [#allocation8], 0
    %26 = vsyncpa [#allocation6], 0
    %s27 = scalar_lea.sflag [#allocation6], 1
    %28 = vsyncpa %s27, 0
    loop: start=0, step=1, limit=6
    $region2: #{tpu_custom_call.1} parent=1 // loop_pre_header
      _
    $region3: #{tpu_custom_call.1} parent=1 // loop_header
      %s30 = sphi 0, %s34
      %p31 = scmp.ge.s32.totalorder %s30, 6
      %s37 = sphi 0, %s49
      %s38 = sphi 0, %s45
      %s39 = sphi 0, %s37
      %s40 = sphi 0, %s38
      %s41 = sphi 0, %s39
      %s42 = sphi 0, %s40
      %s54 = sphi 0, %s56
      %s57 = sphi 0, %s54
      %s58 = sphi 0, %s57
      %s74 = sphi 0, %s58
      %s80 = sphi 0, %s82
      %s83 = sphi 0, %s80
      %s84 = sphi 0, %s83
      %s100 = sphi 0, %s84
      %s106 = sphi 0, %s108
      %s109 = sphi 0, %s106
      %s110 = sphi 0, %s109
      %s126 = sphi 0, %s110
      %s134 = sphi 0, %s136
      %s137 = sphi 0, %s134
      %s138 = sphi 0, %s137
      %s154 = sphi 0, %s138
      %s158 = sphi 0, %s158
      %s160 = sphi 0, %s158
      %s161 = sphi 0, %s160
      %s175 = sphi 0, %s161
      %s179 = sphi 0, %s179
      %s181 = sphi 0, %s179
      %s182 = sphi 0, %s181
      %s196 = sphi 0, %s182
      %s200 = sphi 0, %s200
      %s202 = sphi 0, %s200
      %s203 = sphi 0, %s202
      %s217 = sphi 0, %s203
      %s221 = sphi 0, %s221
      %s223 = sphi 0, %s221
      %s224 = sphi 0, %s223
      %s238 = sphi 0, %s224
      %s242 = sphi 0, %s242
      %s244 = sphi 0, %s242
      %s245 = sphi 0, %s244
      %s259 = sphi 0, %s245
      %s263 = sphi 0, %s263
      %s265 = sphi 0, %s263
      %s266 = sphi 0, %s265
      %s280 = sphi 0, %s266
      %s284 = sphi 0, %s284
      %s286 = sphi 0, %s284
      %s287 = sphi 0, %s286
      %s301 = sphi 0, %s287
      %s305 = sphi 0, %s305
      %s307 = sphi 0, %s305
      %s308 = sphi 0, %s307
      %s322 = sphi 0, %s308
      %s326 = sphi 0, %s326
      %s328 = sphi 0, %s326
      %s329 = sphi 0, %s328
      %s343 = sphi 0, %s329
      %s347 = sphi 0, %s347
      %s349 = sphi 0, %s347
      %s350 = sphi 0, %s349
      %s364 = sphi 0, %s350
      %s368 = sphi 0, %s368
      %s370 = sphi 0, %s368
      %s371 = sphi 0, %s370
      %s385 = sphi 0, %s371
      %s393 = sphi 0, %s395
      %s396 = sphi 0, %s393
      %s397 = sphi 0, %s396
      %s413 = sphi 0, %s397
    $region4: #{tpu_custom_call.1} parent=1 // loop_header_branch
      %33 = sbr.rel (%p31) target = $region8
    $region5: #{tpu_custom_call.1} parent=1 // loop_body
      %s35 = ssub.s32 %s30, 1
      %s36 = ssub.s32 %s30, 2
      %s43 = sadd.s32 1, %s38
      %p44 = scmp.ge.s32.totalorder %s43, 2
      %s45 = scalar_select %p44, 0, %s43
      %s46 = sadd.s32 1, %s37
      %s47 = scalar_select %p44, %s46, %s37
      %p48 = scmp.ge.s32.totalorder %s47, 2
      %s49 = scalar_select %p48, 0, %s47
      %s50 = ssub.s32 %s37, %s49
      %s51 = ssub.s32 %s38, %s45
      %s52 = sor.u32 %s50, %s51
      %p53 = scmp.eq.s32.totalorder %s52, 0
      %s55 = sadd.s32 %s54, 1
      %s56 = scalar_select %p53, %s54, %s55
      %p59 = pneg %p53
      %p60 = scmp.eq.s32.totalorder %s30, 3
      %p61 = por %p59, %p60
      %p62 = scmp.ne.s32.totalorder %s54, %s57
      %p63 = scmp.eq.s32.totalorder %s30, 0
      %p64 = por %p62, %p63
      %p65 = scmp.ne.s32.totalorder %s54, %s57
      %p66 = scmp.eq.s32.totalorder %s35, 3
      %p67 = por %p65, %p66
      %p68 = scmp.ne.s32.totalorder %s57, %s58
      %p69 = scmp.eq.s32.totalorder %s35, 0
      %p70 = por %p68, %p69
      %p71 = scmp.ne.s32.totalorder %s57, %s58
      %p72 = scmp.eq.s32.totalorder %s36, 3
      %p73 = por %p71, %p72
      %p75 = scmp.ne.s32.totalorder %s58, %s74
      %p76 = scmp.eq.s32.totalorder %s36, 0
      %p77 = por %p75, %p76
      %s78 = ssub.s32 %s37, %s49
      %p79 = scmp.eq.s32.totalorder %s78, 0
      %s81 = sadd.s32 %s80, 1
      %s82 = scalar_select %p79, %s80, %s81
      %p85 = pneg %p79
      %p86 = scmp.eq.s32.totalorder %s30, 3
      %p87 = por %p85, %p86
      %p88 = scmp.ne.s32.totalorder %s80, %s83
      %p89 = scmp.eq.s32.totalorder %s30, 0
      %p90 = por %p88, %p89
      %p91 = scmp.ne.s32.totalorder %s80, %s83
      %p92 = scmp.eq.s32.totalorder %s35, 3
      %p93 = por %p91, %p92
      %p94 = scmp.ne.s32.totalorder %s83, %s84
      %p95 = scmp.eq.s32.totalorder %s35, 0
      %p96 = por %p94, %p95
      %p97 = scmp.ne.s32.totalorder %s83, %s84
      %p98 = scmp.eq.s32.totalorder %s36, 3
      %p99 = por %p97, %p98
      %p101 = scmp.ne.s32.totalorder %s84, %s100
      %p102 = scmp.eq.s32.totalorder %s36, 0
      %p103 = por %p101, %p102
      %s104 = ssub.s32 %s37, %s49
      %p105 = scmp.eq.s32.totalorder %s104, 0
      %s107 = sadd.s32 %s106, 1
      %s108 = scalar_select %p105, %s106, %s107
      %p111 = pneg %p105
      %p112 = scmp.eq.s32.totalorder %s30, 3
      %p113 = por %p111, %p112
      %p114 = scmp.ne.s32.totalorder %s106, %s109
      %p115 = scmp.eq.s32.totalorder %s30, 0
      %p116 = por %p114, %p115
      %p117 = scmp.ne.s32.totalorder %s106, %s109
      %p118 = scmp.eq.s32.totalorder %s35, 3
      %p119 = por %p117, %p118
      %p120 = scmp.ne.s32.totalorder %s109, %s110
      %p121 = scmp.eq.s32.totalorder %s35, 0
      %p122 = por %p120, %p121
      %p123 = scmp.ne.s32.totalorder %s109, %s110
      %p124 = scmp.eq.s32.totalorder %s36, 3
      %p125 = por %p123, %p124
      %p127 = scmp.ne.s32.totalorder %s110, %s126
      %p128 = scmp.eq.s32.totalorder %s36, 0
      %p129 = por %p127, %p128
      %s130 = ssub.s32 %s37, %s49
      %s131 = ssub.s32 %s38, %s45
      %s132 = sor.u32 %s130, %s131
      %p133 = scmp.eq.s32.totalorder %s132, 0
      %s135 = sadd.s32 %s134, 1
      %s136 = scalar_select %p133, %s134, %s135
      %p139 = pneg %p133
      %p140 = scmp.eq.s32.totalorder %s30, 3
      %p141 = por %p139, %p140
      %p142 = scmp.ne.s32.totalorder %s134, %s137
      %p143 = scmp.eq.s32.totalorder %s30, 0
      %p144 = por %p142, %p143
      %p145 = scmp.ne.s32.totalorder %s134, %s137
      %p146 = scmp.eq.s32.totalorder %s35, 3
      %p147 = por %p145, %p146
      %p148 = scmp.ne.s32.totalorder %s137, %s138
      %p149 = scmp.eq.s32.totalorder %s35, 0
      %p150 = por %p148, %p149
      %p151 = scmp.ne.s32.totalorder %s137, %s138
      %p152 = scmp.eq.s32.totalorder %s36, 3
      %p153 = por %p151, %p152
      %p155 = scmp.ne.s32.totalorder %s138, %s154
      %p156 = scmp.eq.s32.totalorder %s36, 0
      %p157 = por %p155, %p156
      %s159 = sadd.s32 %s158, 1
      %p162 = scmp.eq.s32.totalorder %s30, 3
      %p163 = scmp.ne.s32.totalorder %s158, %s160
      %p164 = scmp.eq.s32.totalorder %s30, 0
      %p165 = por %p163, %p164
      %p166 = scmp.ne.s32.totalorder %s158, %s160
      %p167 = scmp.eq.s32.totalorder %s35, 3
      %p168 = por %p166, %p167
      %p169 = scmp.ne.s32.totalorder %s160, %s161
      %p170 = scmp.eq.s32.totalorder %s35, 0
      %p171 = por %p169, %p170
      %p172 = scmp.ne.s32.totalorder %s160, %s161
      %p173 = scmp.eq.s32.totalorder %s36, 3
      %p174 = por %p172, %p173
      %p176 = scmp.ne.s32.totalorder %s161, %s175
      %p177 = scmp.eq.s32.totalorder %s36, 0
      %p178 = por %p176, %p177
      %s180 = sadd.s32 %s179, 1
      %p183 = scmp.eq.s32.totalorder %s30, 3
      %p184 = scmp.ne.s32.totalorder %s179, %s181
      %p185 = scmp.eq.s32.totalorder %s30, 0
      %p186 = por %p184, %p185
      %p187 = scmp.ne.s32.totalorder %s179, %s181
      %p188 = scmp.eq.s32.totalorder %s35, 3
      %p189 = por %p187, %p188
      %p190 = scmp.ne.s32.totalorder %s181, %s182
      %p191 = scmp.eq.s32.totalorder %s35, 0
      %p192 = por %p190, %p191
      %p193 = scmp.ne.s32.totalorder %s181, %s182
      %p194 = scmp.eq.s32.totalorder %s36, 3
      %p195 = por %p193, %p194
      %p197 = scmp.ne.s32.totalorder %s182, %s196
      %p198 = scmp.eq.s32.totalorder %s36, 0
      %p199 = por %p197, %p198
      %s201 = sadd.s32 %s200, 1
      %p204 = scmp.eq.s32.totalorder %s30, 3
      %p205 = scmp.ne.s32.totalorder %s200, %s202
      %p206 = scmp.eq.s32.totalorder %s30, 0
      %p207 = por %p205, %p206
      %p208 = scmp.ne.s32.totalorder %s200, %s202
      %p209 = scmp.eq.s32.totalorder %s35, 3
      %p210 = por %p208, %p209
      %p211 = scmp.ne.s32.totalorder %s202, %s203
      %p212 = scmp.eq.s32.totalorder %s35, 0
      %p213 = por %p211, %p212
      %p214 = scmp.ne.s32.totalorder %s202, %s203
      %p215 = scmp.eq.s32.totalorder %s36, 3
      %p216 = por %p214, %p215
      %p218 = scmp.ne.s32.totalorder %s203, %s217
      %p219 = scmp.eq.s32.totalorder %s36, 0
      %p220 = por %p218, %p219
      %s222 = sadd.s32 %s221, 1
      %p225 = scmp.eq.s32.totalorder %s30, 3
      %p226 = scmp.ne.s32.totalorder %s221, %s223
      %p227 = scmp.eq.s32.totalorder %s30, 0
      %p228 = por %p226, %p227
      %p229 = scmp.ne.s32.totalorder %s221, %s223
      %p230 = scmp.eq.s32.totalorder %s35, 3
      %p231 = por %p229, %p230
      %p232 = scmp.ne.s32.totalorder %s223, %s224
      %p233 = scmp.eq.s32.totalorder %s35, 0
      %p234 = por %p232, %p233
      %p235 = scmp.ne.s32.totalorder %s223, %s224
      %p236 = scmp.eq.s32.totalorder %s36, 3
      %p237 = por %p235, %p236
      %p239 = scmp.ne.s32.totalorder %s224, %s238
      %p240 = scmp.eq.s32.totalorder %s36, 0
      %p241 = por %p239, %p240
      %s243 = sadd.s32 %s242, 1
      %p246 = scmp.eq.s32.totalorder %s30, 3
      %p247 = scmp.ne.s32.totalorder %s242, %s244
      %p248 = scmp.eq.s32.totalorder %s30, 0
      %p249 = por %p247, %p248
      %p250 = scmp.ne.s32.totalorder %s242, %s244
      %p251 = scmp.eq.s32.totalorder %s35, 3
      %p252 = por %p250, %p251
      %p253 = scmp.ne.s32.totalorder %s244, %s245
      %p254 = scmp.eq.s32.totalorder %s35, 0
      %p255 = por %p253, %p254
      %p256 = scmp.ne.s32.totalorder %s244, %s245
      %p257 = scmp.eq.s32.totalorder %s36, 3
      %p258 = por %p256, %p257
      %p260 = scmp.ne.s32.totalorder %s245, %s259
      %p261 = scmp.eq.s32.totalorder %s36, 0
      %p262 = por %p260, %p261
      %s264 = sadd.s32 %s263, 1
      %p267 = scmp.eq.s32.totalorder %s30, 3
      %p268 = scmp.ne.s32.totalorder %s263, %s265
      %p269 = scmp.eq.s32.totalorder %s30, 0
      %p270 = por %p268, %p269
      %p271 = scmp.ne.s32.totalorder %s263, %s265
      %p272 = scmp.eq.s32.totalorder %s35, 3
      %p273 = por %p271, %p272
      %p274 = scmp.ne.s32.totalorder %s265, %s266
      %p275 = scmp.eq.s32.totalorder %s35, 0
      %p276 = por %p274, %p275
      %p277 = scmp.ne.s32.totalorder %s265, %s266
      %p278 = scmp.eq.s32.totalorder %s36, 3
      %p279 = por %p277, %p278
      %p281 = scmp.ne.s32.totalorder %s266, %s280
      %p282 = scmp.eq.s32.totalorder %s36, 0
      %p283 = por %p281, %p282
      %s285 = sadd.s32 %s284, 1
      %p288 = scmp.eq.s32.totalorder %s30, 3
      %p289 = scmp.ne.s32.totalorder %s284, %s286
      %p290 = scmp.eq.s32.totalorder %s30, 0
      %p291 = por %p289, %p290
      %p292 = scmp.ne.s32.totalorder %s284, %s286
      %p293 = scmp.eq.s32.totalorder %s35, 3
      %p294 = por %p292, %p293
      %p295 = scmp.ne.s32.totalorder %s286, %s287
      %p296 = scmp.eq.s32.totalorder %s35, 0
      %p297 = por %p295, %p296
      %p298 = scmp.ne.s32.totalorder %s286, %s287
      %p299 = scmp.eq.s32.totalorder %s36, 3
      %p300 = por %p298, %p299
      %p302 = scmp.ne.s32.totalorder %s287, %s301
      %p303 = scmp.eq.s32.totalorder %s36, 0
      %p304 = por %p302, %p303
      %s306 = sadd.s32 %s305, 1
      %p309 = scmp.eq.s32.totalorder %s30, 3
      %p310 = scmp.ne.s32.totalorder %s305, %s307
      %p311 = scmp.eq.s32.totalorder %s30, 0
      %p312 = por %p310, %p311
      %p313 = scmp.ne.s32.totalorder %s305, %s307
      %p314 = scmp.eq.s32.totalorder %s35, 3
      %p315 = por %p313, %p314
      %p316 = scmp.ne.s32.totalorder %s307, %s308
      %p317 = scmp.eq.s32.totalorder %s35, 0
      %p318 = por %p316, %p317
      %p319 = scmp.ne.s32.totalorder %s307, %s308
      %p320 = scmp.eq.s32.totalorder %s36, 3
      %p321 = por %p319, %p320
      %p323 = scmp.ne.s32.totalorder %s308, %s322
      %p324 = scmp.eq.s32.totalorder %s36, 0
      %p325 = por %p323, %p324
      %s327 = sadd.s32 %s326, 1
      %p330 = scmp.eq.s32.totalorder %s30, 3
      %p331 = scmp.ne.s32.totalorder %s326, %s328
      %p332 = scmp.eq.s32.totalorder %s30, 0
      %p333 = por %p331, %p332
      %p334 = scmp.ne.s32.totalorder %s326, %s328
      %p335 = scmp.eq.s32.totalorder %s35, 3
      %p336 = por %p334, %p335
      %p337 = scmp.ne.s32.totalorder %s328, %s329
      %p338 = scmp.eq.s32.totalorder %s35, 0
      %p339 = por %p337, %p338
      %p340 = scmp.ne.s32.totalorder %s328, %s329
      %p341 = scmp.eq.s32.totalorder %s36, 3
      %p342 = por %p340, %p341
      %p344 = scmp.ne.s32.totalorder %s329, %s343
      %p345 = scmp.eq.s32.totalorder %s36, 0
      %p346 = por %p344, %p345
      %s348 = sadd.s32 %s347, 1
      %p351 = scmp.eq.s32.totalorder %s30, 3
      %p352 = scmp.ne.s32.totalorder %s347, %s349
      %p353 = scmp.eq.s32.totalorder %s30, 0
      %p354 = por %p352, %p353
      %p355 = scmp.ne.s32.totalorder %s347, %s349
      %p356 = scmp.eq.s32.totalorder %s35, 3
      %p357 = por %p355, %p356
      %p358 = scmp.ne.s32.totalorder %s349, %s350
      %p359 = scmp.eq.s32.totalorder %s35, 0
      %p360 = por %p358, %p359
      %p361 = scmp.ne.s32.totalorder %s349, %s350
      %p362 = scmp.eq.s32.totalorder %s36, 3
      %p363 = por %p361, %p362
      %p365 = scmp.ne.s32.totalorder %s350, %s364
      %p366 = scmp.eq.s32.totalorder %s36, 0
      %p367 = por %p365, %p366
      %s369 = sadd.s32 %s368, 1
      %p372 = scmp.eq.s32.totalorder %s30, 3
      %p373 = scmp.ne.s32.totalorder %s368, %s370
      %p374 = scmp.eq.s32.totalorder %s30, 0
      %p375 = por %p373, %p374
      %p376 = scmp.ne.s32.totalorder %s368, %s370
      %p377 = scmp.eq.s32.totalorder %s35, 3
      %p378 = por %p376, %p377
      %p379 = scmp.ne.s32.totalorder %s370, %s371
      %p380 = scmp.eq.s32.totalorder %s35, 0
      %p381 = por %p379, %p380
      %p382 = scmp.ne.s32.totalorder %s370, %s371
      %p383 = scmp.eq.s32.totalorder %s36, 3
      %p384 = por %p382, %p383
      %p386 = scmp.ne.s32.totalorder %s371, %s385
      %p387 = scmp.eq.s32.totalorder %s36, 0
      %p388 = por %p386, %p387
      %s389 = ssub.s32 %s37, %s49
      %s390 = ssub.s32 %s38, %s45
      %s391 = sor.u32 %s389, %s390
      %p392 = scmp.eq.s32.totalorder %s391, 0
      %s394 = sadd.s32 %s393, 1
      %s395 = scalar_select %p392, %s393, %s394
      %p398 = pneg %p392
      %p399 = scmp.eq.s32.totalorder %s30, 3
      %p400 = por %p398, %p399
      %p401 = scmp.ne.s32.totalorder %s393, %s396
      %p402 = scmp.eq.s32.totalorder %s30, 0
      %p403 = por %p401, %p402
      %p404 = scmp.ne.s32.totalorder %s393, %s396
      %p405 = scmp.eq.s32.totalorder %s35, 3
      %p406 = por %p404, %p405
      %p407 = scmp.ne.s32.totalorder %s396, %s397
      %p408 = scmp.eq.s32.totalorder %s35, 0
      %p409 = por %p407, %p408
      %p410 = scmp.ne.s32.totalorder %s396, %s397
      %p411 = scmp.eq.s32.totalorder %s36, 3
      %p412 = por %p410, %p411
      %p414 = scmp.ne.s32.totalorder %s397, %s413
      %p415 = scmp.eq.s32.totalorder %s36, 0
      %p416 = por %p414, %p415
      %p417 = scmp.le.s32.totalorder 1, %s30
      %p418 = scmp.lt.s32.totalorder %s30, 5
      %p419 = pnand %p417, %p418
      %p420 = pneg %p419
      // Predicated region
      $region9: #{tpu_custom_call.1} parent=5 // pred_check
        _
      $region10: #{tpu_custom_call.1} parent=5 // pred_check_branch
        %422 = sbr.rel (%p419) target = $region12
      $region11: #{tpu_custom_call.1} parent=5 // pred_region
        %s423 = ssub.s32 %s30, 1
        // Predicated region
        $region13: #{tpu_custom_call.1} parent=11 // pred_check
          %p424 = pneg %p171
        $region14: #{tpu_custom_call.1} parent=11 // pred_check_branch
          %426 = sbr.rel (%p424) target = $region16
        $region15: #{tpu_custom_call.1} parent=11 // pred_region
          _
        $region16: #{tpu_custom_call.1} parent=11 // pred_fallthru
          _
        // Predicated region
        $region17: #{tpu_custom_call.1} parent=11 // pred_check
          %p427 = pneg %p192
        $region18: #{tpu_custom_call.1} parent=11 // pred_check_branch
          %429 = sbr.rel (%p427) target = $region20
        $region19: #{tpu_custom_call.1} parent=11 // pred_region
          _
        $region20: #{tpu_custom_call.1} parent=11 // pred_fallthru
          _
        // Predicated region
        $region21: #{tpu_custom_call.1} parent=11 // pred_check
          %p430 = pneg %p213
        $region22: #{tpu_custom_call.1} parent=11 // pred_check_branch
          %432 = sbr.rel (%p430) target = $region24
        $region23: #{tpu_custom_call.1} parent=11 // pred_region
          _
        $region24: #{tpu_custom_call.1} parent=11 // pred_fallthru
          _
        // Predicated region
        $region25: #{tpu_custom_call.1} parent=11 // pred_check
          %p433 = pneg %p234
        $region26: #{tpu_custom_call.1} parent=11 // pred_check_branch
          %435 = sbr.rel (%p433) target = $region28
        $region27: #{tpu_custom_call.1} parent=11 // pred_region
          %437 = vsyncadd [#allocation5], 0
          %s438 = sshll.u32 %s7, 4
          %s439 = int_to_ptr.hbm [resolvable:$true] %s438
          %s440 = sshll.u32 [#allocation4], 4
          %s441 = int_to_ptr.vmem [resolvable:$true] %s440
          %446 = dma.hbm_to_vmem [thread:$0]  %s439, 256, %s441, [#allocation5], 64, 64, 4
        $region28: #{tpu_custom_call.1} parent=11 // pred_fallthru
          _
        // Predicated region
        $region29: #{tpu_custom_call.1} parent=11 // pred_check
          %p447 = pneg %p255
        $region30: #{tpu_custom_call.1} parent=11 // pred_check_branch
          %449 = sbr.rel (%p447) target = $region32
        $region31: #{tpu_custom_call.1} parent=11 // pred_region
          %451 = vsyncadd [#allocation8], 0
          %s452 = sshll.u32 %s8, 4
          %s453 = int_to_ptr.hbm [resolvable:$true] %s452
          %s454 = sshll.u32 [#allocation7], 4
          %s455 = int_to_ptr.vmem [resolvable:$true] %s454
          %460 = dma.hbm_to_vmem [thread:$0]  %s453, 256, %s455, [#allocation8], 64, 64, 4
        $region32: #{tpu_custom_call.1} parent=11 // pred_fallthru
          _
        // Predicated region
        $region33: #{tpu_custom_call.1} parent=11 // pred_check
          %p461 = pneg %p276
        $region34: #{tpu_custom_call.1} parent=11 // pred_check_branch
          %463 = sbr.rel (%p461) target = $region36
        $region35: #{tpu_custom_call.1} parent=11 // pred_region
          _
        $region36: #{tpu_custom_call.1} parent=11 // pred_fallthru
          _
        // Predicated region
        $region37: #{tpu_custom_call.1} parent=11 // pred_check
          %p464 = pneg %p297
        $region38: #{tpu_custom_call.1} parent=11 // pred_check_branch
          %466 = sbr.rel (%p464) target = $region40
        $region39: #{tpu_custom_call.1} parent=11 // pred_region
          _
        $region40: #{tpu_custom_call.1} parent=11 // pred_fallthru
          _
        // Predicated region
        $region41: #{tpu_custom_call.1} parent=11 // pred_check
          %p467 = pneg %p318
        $region42: #{tpu_custom_call.1} parent=11 // pred_check_branch
          %469 = sbr.rel (%p467) target = $region44
        $region43: #{tpu_custom_call.1} parent=11 // pred_region
          _
        $region44: #{tpu_custom_call.1} parent=11 // pred_fallthru
          _
        // Predicated region
        $region45: #{tpu_custom_call.1} parent=11 // pred_check
          %p470 = pneg %p339
        $region46: #{tpu_custom_call.1} parent=11 // pred_check_branch
          %472 = sbr.rel (%p470) target = $region48
        $region47: #{tpu_custom_call.1} parent=11 // pred_region
          %474 = vsyncadd [#allocation8], 0
          %s475 = sshll.u32 %s12, 4
          %s476 = int_to_ptr.hbm [resolvable:$true] %s475
          %s477 = sshll.u32 [#allocation9], 4
          %s478 = int_to_ptr.vmem [resolvable:$true] %s477
          %483 = dma.hbm_to_vmem [thread:$0]  %s476, 256, %s478, [#allocation8], 64, 64, 4
        $region48: #{tpu_custom_call.1} parent=11 // pred_fallthru
          _
        // Predicated region
        $region49: #{tpu_custom_call.1} parent=11 // pred_check
          %p484 = pneg %p360
        $region50: #{tpu_custom_call.1} parent=11 // pred_check_branch
          %486 = sbr.rel (%p484) target = $region52
        $region51: #{tpu_custom_call.1} parent=11 // pred_region
          _
        $region52: #{tpu_custom_call.1} parent=11 // pred_fallthru
          _
        // Predicated region
        $region53: #{tpu_custom_call.1} parent=11 // pred_check
          %p487 = pneg %p381
        $region54: #{tpu_custom_call.1} parent=11 // pred_check_branch
          %489 = sbr.rel (%p487) target = $region56
        $region55: #{tpu_custom_call.1} parent=11 // pred_region
          _
        $region56: #{tpu_custom_call.1} parent=11 // pred_fallthru
          _
      $region12: #{tpu_custom_call.1} parent=5 // pred_fallthru
        _
      %p490 = scmp.lt.s32.totalorder %s30, 4
      // Predicated region
      $region57: #{tpu_custom_call.1} parent=5 // pred_check
        %p491 = pneg %p490
      $region58: #{tpu_custom_call.1} parent=5 // pred_check_branch
        %493 = sbr.rel (%p491) target = $region60
      $region59: #{tpu_custom_call.1} parent=5 // pred_region
        // Predicated region
        $region61: #{tpu_custom_call.1} parent=59 // pred_check
          %p494 = pneg %p64
        $region62: #{tpu_custom_call.1} parent=59 // pred_check_branch
          %496 = sbr.rel (%p494) target = $region64
        $region63: #{tpu_custom_call.1} parent=59 // pred_region
          %p497 = scmp.lt.s32.totalorder %s37, 1
          %s498 = scalar_select %p497, %s37, 1
          %p499 = scmp.lt.s32.totalorder %s38, 1
          %s500 = scalar_select %p499, %s38, 1
          %s501 = smul.addr %s498, 2
          %s502 = sadd.s32 %s500, %s501
          %s503 = smul.addr %s502, 8
          %s504 = scalar_lea.vmem %s0, %s503
        $region64: #{tpu_custom_call.1} parent=59 // pred_fallthru
          _
        // Predicated region
        $region65: #{tpu_custom_call.1} parent=59 // pred_check
          %p505 = pneg %p90
        $region66: #{tpu_custom_call.1} parent=59 // pred_check_branch
          %507 = sbr.rel (%p505) target = $region68
        $region67: #{tpu_custom_call.1} parent=59 // pred_region
          %p508 = scmp.lt.s32.totalorder %s37, 1
          %s509 = scalar_select %p508, %s37, 1
          %s510 = smul.addr %s509, 4
          %s511 = smul.addr %s510, 4
          %s512 = scalar_lea.vmem %s1, %s511
        $region68: #{tpu_custom_call.1} parent=59 // pred_fallthru
          _
        // Predicated region
        $region69: #{tpu_custom_call.1} parent=59 // pred_check
          %p513 = pneg %p116
        $region70: #{tpu_custom_call.1} parent=59 // pred_check_branch
          %515 = sbr.rel (%p513) target = $region72
        $region71: #{tpu_custom_call.1} parent=59 // pred_region
          %p516 = scmp.lt.s32.totalorder %s37, 1
          %s517 = scalar_select %p516, %s37, 1
          %s518 = smul.addr %s517, 4
          %s519 = smul.addr %s518, 4
          %s520 = scalar_lea.vmem %s2, %s519
        $region72: #{tpu_custom_call.1} parent=59 // pred_fallthru
          _
        // Predicated region
        $region73: #{tpu_custom_call.1} parent=59 // pred_check
          %p521 = pneg %p144
        $region74: #{tpu_custom_call.1} parent=59 // pred_check_branch
          %523 = sbr.rel (%p521) target = $region76
        $region75: #{tpu_custom_call.1} parent=59 // pred_region
          %p524 = scmp.lt.s32.totalorder %s37, 1
          %s525 = scalar_select %p524, %s37, 1
          %p526 = scmp.lt.s32.totalorder %s38, 1
          %s527 = scalar_select %p526, %s38, 1
          %s528 = smul.addr %s525, 2
          %s529 = sadd.s32 %s527, %s528
          %s530 = smul.addr %s529, 8
          %s531 = scalar_lea.vmem %s3, %s530
        $region76: #{tpu_custom_call.1} parent=59 // pred_fallthru
          _
      $region60: #{tpu_custom_call.1} parent=5 // pred_fallthru
        _
      %p532 = scmp.le.s32.totalorder 1, %s30
      %p533 = scmp.lt.s32.totalorder %s30, 5
      %p534 = pnand %p532, %p533
      %p535 = pneg %p534
      // Predicated region
      $region77: #{tpu_custom_call.1} parent=5 // pred_check
        _
      $region78: #{tpu_custom_call.1} parent=5 // pred_check_branch
        %537 = sbr.rel (%p534) target = $region80
      $region79: #{tpu_custom_call.1} parent=5 // pred_region
        %s538 = ssub.s32 %s30, 1
        // Predicated region
        $region81: #{tpu_custom_call.1} parent=79 // pred_check
          %p539 = pneg %p234
        $region82: #{tpu_custom_call.1} parent=79 // pred_check_branch
          %541 = sbr.rel (%p539) target = $region84
        $region83: #{tpu_custom_call.1} parent=79 // pred_region
          %543 = dma.done [#allocation5], 256
        $region84: #{tpu_custom_call.1} parent=79 // pred_fallthru
          _
        // Predicated region
        $region85: #{tpu_custom_call.1} parent=79 // pred_check
          %p544 = pneg %p255
        $region86: #{tpu_custom_call.1} parent=79 // pred_check_branch
          %546 = sbr.rel (%p544) target = $region88
        $region87: #{tpu_custom_call.1} parent=79 // pred_region
          %548 = dma.done [#allocation8], 256
        $region88: #{tpu_custom_call.1} parent=79 // pred_fallthru
          _
        // Predicated region
        $region89: #{tpu_custom_call.1} parent=79 // pred_check
          %p549 = pneg %p339
        $region90: #{tpu_custom_call.1} parent=79 // pred_check_branch
          %551 = sbr.rel (%p549) target = $region92
        $region91: #{tpu_custom_call.1} parent=79 // pred_region
          %553 = dma.done [#allocation8], 256
        $region92: #{tpu_custom_call.1} parent=79 // pred_fallthru
          _
        %p554 = scmp.lt.s32.totalorder %s39, 1
        %s555 = scalar_select %p554, %s39, 1
        %p556 = scmp.lt.s32.totalorder %s40, 1
        %s557 = scalar_select %p556, %s40, 1
        %s558 = smul.addr %s555, 2
        %s559 = sadd.s32 %s557, %s558
        %s560 = smul.addr %s559, 8
        %s561 = scalar_lea.vmem %s0, %s560
        %p562 = pneg %p70
        %p563 = pneg %p67
        %p564 = scmp.lt.s32.totalorder %s39, 1
        %s565 = scalar_select %p564, %s39, 1
        %s566 = smul.addr %s565, 4
        %s567 = smul.addr %s566, 4
        %s568 = scalar_lea.vmem %s1, %s567
        %p569 = pneg %p96
        %p570 = pneg %p93
        %p571 = scmp.lt.s32.totalorder %s39, 1
        %s572 = scalar_select %p571, %s39, 1
        %s573 = smul.addr %s572, 4
        %s574 = smul.addr %s573, 4
        %s575 = scalar_lea.vmem %s2, %s574
        %p576 = pneg %p122
        %p577 = pneg %p119
        %p578 = scmp.lt.s32.totalorder %s39, 1
        %s579 = scalar_select %p578, %s39, 1
        %p580 = scmp.lt.s32.totalorder %s40, 1
        %s581 = scalar_select %p580, %s40, 1
        %s582 = smul.addr %s579, 2
        %s583 = sadd.s32 %s581, %s582
        %s584 = smul.addr %s583, 8
        %s585 = scalar_lea.vmem %s3, %s584
        %p586 = pneg %p150
        %p587 = pneg %p147
        %p588 = pneg %p171
        %p589 = pneg %p168
        %p590 = pneg %p192
        %p591 = pneg %p189
        %p592 = pneg %p213
        %p593 = pneg %p210
        %p594 = pneg %p234
        %p595 = pneg %p231
        %p596 = pneg %p255
        %p597 = pneg %p252
        %p598 = pneg %p276
        %p599 = pneg %p273
        %p600 = pneg %p297
        %p601 = pneg %p294
        %p602 = pneg %p318
        %p603 = pneg %p315
        %p604 = pneg %p339
        %p605 = pneg %p336
        %p606 = pneg %p360
        %p607 = pneg %p357
        %p608 = pneg %p381
        %p609 = pneg %p378
        %p610 = pneg %p409
        %p611 = pneg %p406
        %s612 = sand.u32 %s396, 1
        %s613 = scalar_lea.sflag [#allocation6], %s612
        %s614 = sand.u32 %s396, 1
        %s615 = smul.addr %s614, 8
        %s616 = scalar_lea.vmem [#allocation10], %s615
        %p617 = scmp.lt.s32.totalorder %s39, 1
        %s618 = scalar_select %p617, %s39, 1
        %p619 = scmp.lt.s32.totalorder %s40, 1
        %s620 = scalar_select %p619, %s40, 1
        %s621 = smul.addr %s618, 2
        %s622 = sadd.s32 %s620, %s621
        %s623 = smul.addr %s622, 8
        %s624 = scalar_lea.vmem %s0, %s623
        %p625 = scmp.lt.s32.totalorder %s39, 1
        %s626 = scalar_select %p625, %s39, 1
        %s627 = smul.addr %s626, 4
        %s628 = smul.addr %s627, 4
        %s629 = scalar_lea.vmem %s1, %s628
        %p630 = scmp.lt.s32.totalorder %s39, 1
        %s631 = scalar_select %p630, %s39, 1
        %s632 = smul.addr %s631, 4
        %s633 = smul.addr %s632, 4
        %s634 = scalar_lea.vmem %s2, %s633
        %p635 = scmp.lt.s32.totalorder %s39, 1
        %s636 = scalar_select %p635, %s39, 1
        %p637 = scmp.lt.s32.totalorder %s40, 1
        %s638 = scalar_select %p637, %s40, 1
        %s639 = smul.addr %s636, 2
        %s640 = sadd.s32 %s638, %s639
        %s641 = smul.addr %s640, 8
        %s642 = scalar_lea.vmem %s3, %s641
        %v644 = vld [vmem:[%s624] sm:$0xff]
        %v645 = vld [vmem:[%s642] sm:$0xff]
        %v646 = vld [vmem:[%s4] sm:$0x1]
        %647 = vset.pattern.permute.xlu0 0
        %648 = vperm.xlu0 %647, %v645
        %v649 = vpop.permute.xlu0 %648
        %v650 = vperm.slane %v646, 0
        %vm651 = vcmp.eq.s32.totalorder %v649, %v650
        %v652 = vld [vmem:[%s5] sm:$0x1]
        %v653 = vld [vmem:[%s6] sm:$0x1]
        %vm654 = vcmask 261120
        %v655 = vsel %vm654, %v644, 0.0
        %656 = vadd.xlane.f32.xlu0 %v655
        %v657 = vpop.xlane.xlu0 %656
        %v658 = vrcp.pop 32.0
        %v659 = vmul.f32 32.0, %v658
        %v660 = vsub.f32 1.0, %v659
        %v661 = vmul.f32 %v658, %v660
        %v662 = vadd.f32 %v658, %v661
        %vm663 = vweird.f32 %v658
        %v664 = vsel %vm663, %v658, %v662
        %v665 = vmul.f32 %v657, %v664
        %v666 = vmul.f32 %v644, %v644
        %v667 = vsel %vm654, %v666, 0.0
        %668 = vadd.xlane.f32.xlu0 %v667
        %v669 = vpop.xlane.xlu0 %668
        %v670 = vmul.f32 %v669, %v664
        %v671 = vmul.f32 %v665, %v665
        %v672 = vsub.f32 %v670, %v671
        %v673 = vsub.f32 %v644, %v665
        %v674 = vadd.f32 %v672, 1e-05
        %v675 = vrsqrt.pop %v674
        %v676 = vmul.f32 %v675, %v674
        %v677 = vmul.f32 %v676, %v675
        %v678 = vmul.f32 0.5, %v677
        %v679 = vsub.f32 1.5, %v678
        %v680 = vmul.f32 %v675, %v679
        %vm681 = vweird.f32 %v674
        %vm682 = vweird.f32 %v675
        %vm683 = vmor %vm681, %vm682
        %v684 = vsel %vm683, %v675, %v680
        %v685 = vmul.f32 %v673, %v684
        %v687 = vperm.slane %v652, 0
        %v689 = vmul.f32 %v685, %v687
        %v691 = vperm.slane %v653, 0
        %v693 = vadd.f32 %v689, %v691
        %v694 = vpack.c.bf16 %v693, %v693
        %v695 = vld [vmem:[#allocation4] sm:$0xf]
        %v697 = vsel %vm654, %v694, 0
        %v700 = vsel %vm654, %v695, 0
        %702 = vmatpush.bf16.xpose.msra.mxu0 0
        %703 = vmatpush.bf16.xpose.msra.mxu0 0
        %704 = vmatpush.bf16.xpose.msra.mxu0 0
        %705 = vmatpush.bf16.xpose.msra.mxu0 0
        %706 = vmatpush.bf16.xpose.msra.mxu0 0
        %707 = vmatpush.bf16.xpose.msra.mxu0 0
        %708 = vmatpush.bf16.xpose.msra.mxu0 0
        %709 = vmatpush.bf16.xpose.msra.mxu0 %v700
        %710 = vmatmul.bf16.gmra.mxu0 %v697
        %v711 = vpop.f32.mrf.mxu0
        %v712 = vadd.f32 0.0, %v711
        %v713 = vpop.f32.mrf.mxu0
        %714 = vdwg.mxu0
        %v715 = vpack.c.bf16 %v712, %v712
        %v716 = vld [vmem:[%s629] sm:$0xf]
        %vm717 = vcmask 64512
        %v719 = vsel %vm717, %v715, 0
        %vm721 = vcmask 1043456
        %v723 = vsel %vm721, %v716, 0
        %725 = vmatpush.bf16.msra.mxu0 0
        %726 = vmatpush.bf16.msra.mxu0 0
        %727 = vmatpush.bf16.msra.mxu0 0
        %728 = vmatpush.bf16.msra.mxu0 0
        %729 = vmatpush.bf16.msra.mxu0 0
        %730 = vmatpush.bf16.msra.mxu0 0
        %731 = vmatpush.bf16.msra.mxu0 0
        %732 = vmatpush.bf16.msra.mxu0 %v723
        %733 = vmatmul.bf16.gmra.mxu0 %v719
        %v734 = vpop.f32.mrf.mxu0
        %v735 = vadd.f32 0.0, %v734
        %v736 = vpop.f32.mrf.mxu0
        %737 = vdwg.mxu0
        %v738 = vsel %vm651, %v735, -3.4028235e+38
        %v739 = vsel %vm717, %v738, -inf
        %740 = vmax.xlane.f32.xlu0 %v739
        %v741 = vpop.xlane.xlu0 %740
        %v742 = vsub.f32 %v738, %v741
        %v743 = vmul.f32 %v742, 1.442695
        %v744 = vpow.pop %v743
        %v745 = vsel %vm717, %v744, 0.0
        %746 = vadd.xlane.f32.xlu0 %v745
        %v747 = vpop.xlane.xlu0 %746
        %v748 = vrcp.pop %v747
        %v749 = vmul.f32 %v744, %v748
        %v750 = vpack.c.bf16 %v749, %v749
        %v751 = vld [vmem:[%s634] sm:$0xf]
        %v753 = vsel %vm717, %v750, 0
        %v756 = vsel %vm717, %v751, 0
        %758 = vmatpush.bf16.xpose.msra.mxu0 0
        %759 = vmatpush.bf16.xpose.msra.mxu0 0
        %760 = vmatpush.bf16.xpose.msra.mxu0 0
        %761 = vmatpush.bf16.xpose.msra.mxu0 0
        %762 = vmatpush.bf16.xpose.msra.mxu0 0
        %763 = vmatpush.bf16.xpose.msra.mxu0 0
        %764 = vmatpush.bf16.xpose.msra.mxu0 0
        %765 = vmatpush.bf16.xpose.msra.mxu0 %v756
        %766 = vmatmul.bf16.gmra.mxu0 %v753
        %v767 = vpop.f32.mrf.mxu0
        %v768 = vadd.f32 0.0, %v767
        %v769 = vpop.f32.mrf.mxu0
        %770 = vdwg.mxu0
        %v771 = vpack.c.bf16 %v768, %v768
        %v772 = vld [vmem:[#allocation7] sm:$0xf]
        %s773 = scalar_lea.vmem [#allocation4], 4
        %v774 = vld [vmem:[%s773] sm:$0xf]
        %v776 = vsel %vm654, %v774, 0
        %778 = vmatpush.bf16.xpose.msra.mxu0 0
        %779 = vmatpush.bf16.xpose.msra.mxu0 0
        %780 = vmatpush.bf16.xpose.msra.mxu0 0
        %781 = vmatpush.bf16.xpose.msra.mxu0 0
        %782 = vmatpush.bf16.xpose.msra.mxu0 0
        %783 = vmatpush.bf16.xpose.msra.mxu0 0
        %784 = vmatpush.bf16.xpose.msra.mxu0 0
        %785 = vmatpush.bf16.xpose.msra.mxu0 %v776
        %786 = vmatmul.bf16.gmra.mxu0 %v697
        %v787 = vpop.f32.mrf.mxu0
        %v788 = vadd.f32 0.0, %v787
        %v789 = vpop.f32.mrf.mxu0
        %790 = vdwg.mxu0
        %v791 = vpack.c.bf16 %v788, %v788
        %s792 = scalar_lea.vmem %s629, 4
        %v793 = vld [vmem:[%s792] sm:$0xf]
        %v795 = vsel %vm717, %v791, 0
        %v798 = vsel %vm721, %v793, 0
        %800 = vmatpush.bf16.msra.mxu0 0
        %801 = vmatpush.bf16.msra.mxu0 0
        %802 = vmatpush.bf16.msra.mxu0 0
        %803 = vmatpush.bf16.msra.mxu0 0
        %804 = vmatpush.bf16.msra.mxu0 0
        %805 = vmatpush.bf16.msra.mxu0 0
        %806 = vmatpush.bf16.msra.mxu0 0
        %807 = vmatpush.bf16.msra.mxu0 %v798
        %808 = vmatmul.bf16.gmra.mxu0 %v795
        %v809 = vpop.f32.mrf.mxu0
        %v810 = vadd.f32 0.0, %v809
        %v811 = vpop.f32.mrf.mxu0
        %812 = vdwg.mxu0
        %v813 = vsel %vm651, %v810, -3.4028235e+38
        %v814 = vsel %vm717, %v813, -inf
        %815 = vmax.xlane.f32.xlu0 %v814
        %v816 = vpop.xlane.xlu0 %815
        %v817 = vsub.f32 %v813, %v816
        %v818 = vmul.f32 %v817, 1.442695
        %v819 = vpow.pop %v818
        %v820 = vsel %vm717, %v819, 0.0
        %821 = vadd.xlane.f32.xlu0 %v820
        %v822 = vpop.xlane.xlu0 %821
        %v823 = vrcp.pop %v822
        %v824 = vmul.f32 %v819, %v823
        %v825 = vpack.c.bf16 %v824, %v824
        %s826 = scalar_lea.vmem %s634, 4
        %v827 = vld [vmem:[%s826] sm:$0xf]
        %v829 = vsel %vm717, %v825, 0
        %v832 = vsel %vm717, %v827, 0
        %834 = vmatpush.bf16.xpose.msra.mxu0 0
        %835 = vmatpush.bf16.xpose.msra.mxu0 0
        %836 = vmatpush.bf16.xpose.msra.mxu0 0
        %837 = vmatpush.bf16.xpose.msra.mxu0 0
        %838 = vmatpush.bf16.xpose.msra.mxu0 0
        %839 = vmatpush.bf16.xpose.msra.mxu0 0
        %840 = vmatpush.bf16.xpose.msra.mxu0 0
        %841 = vmatpush.bf16.xpose.msra.mxu0 %v832
        %842 = vmatmul.bf16.gmra.mxu0 %v829
        %v843 = vpop.f32.mrf.mxu0
        %v844 = vadd.f32 0.0, %v843
        %v845 = vpop.f32.mrf.mxu0
        %846 = vdwg.mxu0
        %v847 = vpack.c.bf16 %v844, %v844
        %s848 = scalar_lea.vmem [#allocation7], 4
        %v849 = vld [vmem:[%s848] sm:$0xf]
        %v851 = vsel %vm717, %v847, 0
        %v854 = vsel %vm721, %v849, 0
        %856 = vmatpush.bf16.msra.mxu0 0
        %857 = vmatpush.bf16.msra.mxu0 0
        %858 = vmatpush.bf16.msra.mxu0 0
        %859 = vmatpush.bf16.msra.mxu0 0
        %860 = vmatpush.bf16.msra.mxu0 0
        %861 = vmatpush.bf16.msra.mxu0 0
        %862 = vmatpush.bf16.msra.mxu0 0
        %863 = vmatpush.bf16.msra.mxu0 %v854
        %864 = vmatmul.bf16.gmra.mxu0 %v851
        %v865 = vpop.f32.mrf.mxu0
        %v866 = vadd.f32 0.0, %v865
        %v867 = vpop.f32.mrf.mxu0
        %868 = vdwg.mxu0
        %v870 = vsel %vm717, %v771, 0
        %v873 = vsel %vm721, %v772, 0
        %875 = vmatpush.bf16.msra.mxu0 0
        %876 = vmatpush.bf16.msra.mxu0 0
        %877 = vmatpush.bf16.msra.mxu0 0
        %878 = vmatpush.bf16.msra.mxu0 0
        %879 = vmatpush.bf16.msra.mxu0 0
        %880 = vmatpush.bf16.msra.mxu0 0
        %881 = vmatpush.bf16.msra.mxu0 0
        %882 = vmatpush.bf16.msra.mxu0 %v873
        %883 = vmatmul.bf16.gmra.mxu0 %v870
        %v884 = vpop.f32.mrf.mxu0
        %v885 = vadd.f32 %v866, %v884
        %v886 = vpop.f32.mrf.mxu0
        %887 = vdwg.mxu0
        %s888 = scalar_lea.vmem [#allocation4], 8
        %v889 = vld [vmem:[%s888] sm:$0xf]
        %v891 = vsel %vm654, %v889, 0
        %893 = vmatpush.bf16.xpose.msra.mxu0 0
        %894 = vmatpush.bf16.xpose.msra.mxu0 0
        %895 = vmatpush.bf16.xpose.msra.mxu0 0
        %896 = vmatpush.bf16.xpose.msra.mxu0 0
        %897 = vmatpush.bf16.xpose.msra.mxu0 0
        %898 = vmatpush.bf16.xpose.msra.mxu0 0
        %899 = vmatpush.bf16.xpose.msra.mxu0 0
        %900 = vmatpush.bf16.xpose.msra.mxu0 %v891
        %901 = vmatmul.bf16.gmra.mxu0 %v697
        %v902 = vpop.f32.mrf.mxu0
        %v903 = vadd.f32 0.0, %v902
        %v904 = vpop.f32.mrf.mxu0
        %905 = vdwg.mxu0
        %v906 = vpack.c.bf16 %v903, %v903
        %s907 = scalar_lea.vmem %s629, 8
        %v908 = vld [vmem:[%s907] sm:$0xf]
        %v910 = vsel %vm717, %v906, 0
        %v913 = vsel %vm721, %v908, 0
        %915 = vmatpush.bf16.msra.mxu0 0
        %916 = vmatpush.bf16.msra.mxu0 0
        %917 = vmatpush.bf16.msra.mxu0 0
        %918 = vmatpush.bf16.msra.mxu0 0
        %919 = vmatpush.bf16.msra.mxu0 0
        %920 = vmatpush.bf16.msra.mxu0 0
        %921 = vmatpush.bf16.msra.mxu0 0
        %922 = vmatpush.bf16.msra.mxu0 %v913
        %923 = vmatmul.bf16.gmra.mxu0 %v910
        %v924 = vpop.f32.mrf.mxu0
        %v925 = vadd.f32 0.0, %v924
        %v926 = vpop.f32.mrf.mxu0
        %927 = vdwg.mxu0
        %v928 = vsel %vm651, %v925, -3.4028235e+38
        %v929 = vsel %vm717, %v928, -inf
        %930 = vmax.xlane.f32.xlu0 %v929
        %v931 = vpop.xlane.xlu0 %930
        %v932 = vsub.f32 %v928, %v931
        %v933 = vmul.f32 %v932, 1.442695
        %v934 = vpow.pop %v933
        %v935 = vsel %vm717, %v934, 0.0
        %936 = vadd.xlane.f32.xlu0 %v935
        %v937 = vpop.xlane.xlu0 %936
        %v938 = vrcp.pop %v937
        %v939 = vmul.f32 %v934, %v938
        %v940 = vpack.c.bf16 %v939, %v939
        %s941 = scalar_lea.vmem %s634, 8
        %v942 = vld [vmem:[%s941] sm:$0xf]
        %v944 = vsel %vm717, %v940, 0
        %v947 = vsel %vm717, %v942, 0
        %949 = vmatpush.bf16.xpose.msra.mxu0 0
        %950 = vmatpush.bf16.xpose.msra.mxu0 0
        %951 = vmatpush.bf16.xpose.msra.mxu0 0
        %952 = vmatpush.bf16.xpose.msra.mxu0 0
        %953 = vmatpush.bf16.xpose.msra.mxu0 0
        %954 = vmatpush.bf16.xpose.msra.mxu0 0
        %955 = vmatpush.bf16.xpose.msra.mxu0 0
        %956 = vmatpush.bf16.xpose.msra.mxu0 %v947
        %957 = vmatmul.bf16.gmra.mxu0 %v944
        %v958 = vpop.f32.mrf.mxu0
        %v959 = vadd.f32 0.0, %v958
        %v960 = vpop.f32.mrf.mxu0
        %961 = vdwg.mxu0
        %v962 = vpack.c.bf16 %v959, %v959
        %s963 = scalar_lea.vmem [#allocation7], 8
        %v964 = vld [vmem:[%s963] sm:$0xf]
        %v966 = vsel %vm717, %v962, 0
        %v969 = vsel %vm721, %v964, 0
        %971 = vmatpush.bf16.msra.mxu0 0
        %972 = vmatpush.bf16.msra.mxu0 0
        %973 = vmatpush.bf16.msra.mxu0 0
        %974 = vmatpush.bf16.msra.mxu0 0
        %975 = vmatpush.bf16.msra.mxu0 0
        %976 = vmatpush.bf16.msra.mxu0 0
        %977 = vmatpush.bf16.msra.mxu0 0
        %978 = vmatpush.bf16.msra.mxu0 %v969
        %979 = vmatmul.bf16.gmra.mxu0 %v966
        %v980 = vpop.f32.mrf.mxu0
        %v981 = vadd.f32 0.0, %v980
        %v982 = vpop.f32.mrf.mxu0
        %983 = vdwg.mxu0
        %v984 = vadd.f32 %v885, %v981
        %s985 = scalar_lea.vmem [#allocation4], 12
        %v986 = vld [vmem:[%s985] sm:$0xf]
        %v988 = vsel %vm654, %v986, 0
        %990 = vmatpush.bf16.xpose.msra.mxu0 0
        %991 = vmatpush.bf16.xpose.msra.mxu0 0
        %992 = vmatpush.bf16.xpose.msra.mxu0 0
        %993 = vmatpush.bf16.xpose.msra.mxu0 0
        %994 = vmatpush.bf16.xpose.msra.mxu0 0
        %995 = vmatpush.bf16.xpose.msra.mxu0 0
        %996 = vmatpush.bf16.xpose.msra.mxu0 0
        %997 = vmatpush.bf16.xpose.msra.mxu0 %v988
        %998 = vmatmul.bf16.gmra.mxu0 %v697
        %v999 = vpop.f32.mrf.mxu0
        %v1000 = vadd.f32 0.0, %v999
        %v1001 = vpop.f32.mrf.mxu0
        %1002 = vdwg.mxu0
        %v1003 = vpack.c.bf16 %v1000, %v1000
        %s1004 = scalar_lea.vmem %s629, 12
        %v1005 = vld [vmem:[%s1004] sm:$0xf]
        %v1007 = vsel %vm717, %v1003, 0
        %v1010 = vsel %vm721, %v1005, 0
        %1012 = vmatpush.bf16.msra.mxu0 0
        %1013 = vmatpush.bf16.msra.mxu0 0
        %1014 = vmatpush.bf16.msra.mxu0 0
        %1015 = vmatpush.bf16.msra.mxu0 0
        %1016 = vmatpush.bf16.msra.mxu0 0
        %1017 = vmatpush.bf16.msra.mxu0 0
        %1018 = vmatpush.bf16.msra.mxu0 0
        %1019 = vmatpush.bf16.msra.mxu0 %v1010
        %1020 = vmatmul.bf16.gmra.mxu0 %v1007
        %v1021 = vpop.f32.mrf.mxu0
        %v1022 = vadd.f32 0.0, %v1021
        %v1023 = vpop.f32.mrf.mxu0
        %1024 = vdwg.mxu0
        %v1025 = vsel %vm651, %v1022, -3.4028235e+38
        %v1026 = vsel %vm717, %v1025, -inf
        %1027 = vmax.xlane.f32.xlu0 %v1026
        %v1028 = vpop.xlane.xlu0 %1027
        %v1029 = vsub.f32 %v1025, %v1028
        %v1030 = vmul.f32 %v1029, 1.442695
        %v1031 = vpow.pop %v1030
        %v1032 = vsel %vm717, %v1031, 0.0
        %1033 = vadd.xlane.f32.xlu0 %v1032
        %v1034 = vpop.xlane.xlu0 %1033
        %v1035 = vrcp.pop %v1034
        %v1036 = vmul.f32 %v1031, %v1035
        %v1037 = vpack.c.bf16 %v1036, %v1036
        %s1038 = scalar_lea.vmem %s634, 12
        %v1039 = vld [vmem:[%s1038] sm:$0xf]
        %v1041 = vsel %vm717, %v1037, 0
        %v1044 = vsel %vm717, %v1039, 0
        %1046 = vmatpush.bf16.xpose.msra.mxu0 0
        %1047 = vmatpush.bf16.xpose.msra.mxu0 0
        %1048 = vmatpush.bf16.xpose.msra.mxu0 0
        %1049 = vmatpush.bf16.xpose.msra.mxu0 0
        %1050 = vmatpush.bf16.xpose.msra.mxu0 0
        %1051 = vmatpush.bf16.xpose.msra.mxu0 0
        %1052 = vmatpush.bf16.xpose.msra.mxu0 0
        %1053 = vmatpush.bf16.xpose.msra.mxu0 %v1044
        %1054 = vmatmul.bf16.gmra.mxu0 %v1041
        %v1055 = vpop.f32.mrf.mxu0
        %v1056 = vadd.f32 0.0, %v1055
        %v1057 = vpop.f32.mrf.mxu0
        %1058 = vdwg.mxu0
        %v1059 = vpack.c.bf16 %v1056, %v1056
        %s1060 = scalar_lea.vmem [#allocation7], 12
        %v1061 = vld [vmem:[%s1060] sm:$0xf]
        %v1063 = vsel %vm717, %v1059, 0
        %v1066 = vsel %vm721, %v1061, 0
        %1068 = vmatpush.bf16.msra.mxu0 0
        %1069 = vmatpush.bf16.msra.mxu0 0
        %1070 = vmatpush.bf16.msra.mxu0 0
        %1071 = vmatpush.bf16.msra.mxu0 0
        %1072 = vmatpush.bf16.msra.mxu0 0
        %1073 = vmatpush.bf16.msra.mxu0 0
        %1074 = vmatpush.bf16.msra.mxu0 0
        %1075 = vmatpush.bf16.msra.mxu0 %v1066
        %1076 = vmatmul.bf16.gmra.mxu0 %v1063
        %v1077 = vpop.f32.mrf.mxu0
        %v1078 = vadd.f32 0.0, %v1077
        %v1079 = vpop.f32.mrf.mxu0
        %1080 = vdwg.mxu0
        %v1081 = vadd.f32 %v984, %v1078
        %v1082 = vld [vmem:[#allocation2] sm:$0x1]
        %s1083 = vtos %v1082
        %v1084 = vstv %s1083
        %v1085 = vmul.f32 %v1084, %v1081
        %v1086 = vadd.f32 %v644, %v1085
        %v1087 = vld [vmem:[%s10] sm:$0x1]
        %v1088 = vld [vmem:[%s11] sm:$0x1]
        %v1089 = vsel %vm654, %v1086, 0.0
        %1090 = vadd.xlane.f32.xlu0 %v1089
        %v1091 = vpop.xlane.xlu0 %1090
        %v1092 = vmul.f32 %v1091, %v664
        %v1093 = vmul.f32 %v1086, %v1086
        %v1094 = vsel %vm654, %v1093, 0.0
        %1095 = vadd.xlane.f32.xlu0 %v1094
        %v1096 = vpop.xlane.xlu0 %1095
        %v1097 = vmul.f32 %v1096, %v664
        %v1098 = vmul.f32 %v1092, %v1092
        %v1099 = vsub.f32 %v1097, %v1098
        %v1100 = vsub.f32 %v1086, %v1092
        %v1101 = vadd.f32 %v1099, 1e-05
        %v1102 = vrsqrt.pop %v1101
        %v1103 = vmul.f32 %v1102, %v1101
        %v1104 = vmul.f32 %v1103, %v1102
        %v1105 = vmul.f32 0.5, %v1104
        %v1106 = vsub.f32 1.5, %v1105
        %v1107 = vmul.f32 %v1102, %v1106
        %vm1108 = vweird.f32 %v1101
        %vm1109 = vweird.f32 %v1102
        %vm1110 = vmor %vm1108, %vm1109
        %v1111 = vsel %vm1110, %v1102, %v1107
        %v1112 = vmul.f32 %v1100, %v1111
        %v1114 = vperm.slane %v1087, 0
        %v1116 = vmul.f32 %v1112, %v1114
        %v1118 = vperm.slane %v1088, 0
        %v1120 = vadd.f32 %v1116, %v1118
        %v1121 = vpack.c.bf16 %v1120, %v1120
        %v1122 = vld [vmem:[#allocation9] sm:$0xf]
        %v1123 = vld [vmem:[#allocation9 + $0x4] sm:$0xf]
        %v1124 = vld [vmem:[#allocation9 + $0x8] sm:$0xf]
        %v1125 = vld [vmem:[#allocation9 + $0xc] sm:$0xf]
        %v1130 = vunpack.c.l.b16 %v1122
        %v1131 = vunpack.c.l.b16 %v1123
        %v1132 = vunpack.c.l.b16 %v1124
        %v1133 = vunpack.c.l.b16 %v1125
        %v1134 = vpack.c.b16 %v1131, %v1130
        %v1135 = vpack.c.b16 %v1133, %v1132
        %v1139 = vsel %vm654, %v1121, 0
        %1141 = vmatpush.bf16.msra.mxu0 0
        %1142 = vmatpush.bf16.msra.mxu0 0
        %1143 = vmatpush.bf16.msra.mxu0 0
        %1144 = vmatpush.bf16.msra.mxu0 0
        %1145 = vmatpush.bf16.msra.mxu0 0
        %1146 = vmatpush.bf16.msra.mxu0 0
        %1147 = vmatpush.bf16.msra.mxu0 %v1135
        %1148 = vmatpush.bf16.msra.mxu0 %v1134
        %1149 = vmatmul.bf16.gmra.mxu0 %v1139
        %v1150 = vpop.f32.mrf.mxu0
        %v1151 = vadd.f32 0.0, %v1150
        %v1152 = vpop.f32.mrf.mxu0
        %1153 = vdwg.mxu0
        %v1154 = vmul.f32 %v1151, %v1151
        %v1155 = vmul.f32 %v1151, %v1154
        %v1156 = vmul.f32 %v1155, 0.044715
        %v1157 = vadd.f32 %v1151, %v1156
        %v1158 = vmul.f32 %v1157, 0.7978846
        %v1159 = vtanh.pop %v1158
        %v1160 = vadd.f32 %v1159, 1.0
        %v1161 = vmul.f32 %v1160, 0.5
        %v1162 = vmul.f32 %v1151, %v1161
        %v1163 = vpack.c.bf16 %v1162, %v1162
        %v1164 = vld [vmem:[%s13] sm:$0xf]
        %v1165 = vld [vmem:[%s13 + $0x4] sm:$0xf]
        %v1166 = vld [vmem:[%s13 + $0x8] sm:$0xf]
        %v1167 = vld [vmem:[%s13 + $0xc] sm:$0xf]
        %v1168 = vld [vmem:[%s13 + $0x10] sm:$0xf]
        %v1169 = vld [vmem:[%s13 + $0x14] sm:$0xf]
        %v1170 = vld [vmem:[%s13 + $0x18] sm:$0xf]
        %v1171 = vld [vmem:[%s13 + $0x1c] sm:$0xf]
        %v1172 = vld [vmem:[%s13 + $0x20] sm:$0xf]
        %v1173 = vld [vmem:[%s13 + $0x24] sm:$0xf]
        %v1174 = vld [vmem:[%s13 + $0x28] sm:$0xf]
        %v1175 = vld [vmem:[%s13 + $0x2c] sm:$0xf]
        %v1176 = vld [vmem:[%s13 + $0x30] sm:$0xf]
        %v1177 = vld [vmem:[%s13 + $0x34] sm:$0xf]
        %v1178 = vld [vmem:[%s13 + $0x38] sm:$0xf]
        %v1179 = vld [vmem:[%s13 + $0x3c] sm:$0xf]
        %v1196 = vunpack.c.l.b16 %v1164
        %v1197 = vunpack.c.l.b16 %v1165
        %v1198 = vunpack.c.l.b16 %v1166
        %v1199 = vunpack.c.l.b16 %v1167
        %v1200 = vunpack.c.l.b16 %v1168
        %v1201 = vunpack.c.l.b16 %v1169
        %v1202 = vunpack.c.l.b16 %v1170
        %v1203 = vunpack.c.l.b16 %v1171
        %v1204 = vunpack.c.l.b16 %v1172
        %v1205 = vunpack.c.l.b16 %v1173
        %v1206 = vunpack.c.l.b16 %v1174
        %v1207 = vunpack.c.l.b16 %v1175
        %v1208 = vunpack.c.l.b16 %v1176
        %v1209 = vunpack.c.l.b16 %v1177
        %v1210 = vunpack.c.l.b16 %v1178
        %v1211 = vunpack.c.l.b16 %v1179
        %v1212 = vpack.c.b16 %v1197, %v1196
        %v1213 = vpack.c.b16 %v1199, %v1198
        %v1214 = vpack.c.b16 %v1201, %v1200
        %v1215 = vpack.c.b16 %v1203, %v1202
        %v1216 = vpack.c.b16 %v1205, %v1204
        %v1217 = vpack.c.b16 %v1207, %v1206
        %v1218 = vpack.c.b16 %v1209, %v1208
        %v1219 = vpack.c.b16 %v1211, %v1210
        %1228 = vmatpush.bf16.msra.mxu0 %v1219
        %1229 = vmatpush.bf16.msra.mxu0 %v1218
        %1230 = vmatpush.bf16.msra.mxu0 %v1217
        %1231 = vmatpush.bf16.msra.mxu0 %v1216
        %1232 = vmatpush.bf16.msra.mxu0 %v1215
        %1233 = vmatpush.bf16.msra.mxu0 %v1214
        %1234 = vmatpush.bf16.msra.mxu0 %v1213
        %1235 = vmatpush.bf16.msra.mxu0 %v1212
        %1236 = vmatmul.bf16.gmra.mxu0 %v1163
        %v1237 = vpop.f32.mrf.mxu0
        %v1238 = vadd.f32 0.0, %v1237
        %v1239 = vpop.f32.mrf.mxu0
        %1240 = vdwg.mxu0
        %v1241 = vld [vmem:[#allocation3] sm:$0x1]
        %s1242 = vtos %v1241
        %v1243 = vstv %s1242
        %v1244 = vmul.f32 %v1243, %v1238
        %v1245 = vadd.f32 %v1086, %v1244
        %1246 = vst.msk [vmem:[%s616] sm:$0xff] %vm654, %v1245
        %s1247 = sand.u32 %s396, 1
        %s1248 = scalar_lea.sflag [#allocation6], %s1247
        %s1249 = sand.u32 %s396, 1
        %s1250 = smul.addr %s1249, 8
        %s1251 = scalar_lea.vmem [#allocation10], %s1250
        // Predicated region
        $region93: #{tpu_custom_call.1} parent=79 // pred_check
          %p1252 = pneg %p406
        $region94: #{tpu_custom_call.1} parent=79 // pred_check_branch
          %1254 = sbr.rel (%p1252) target = $region96
        $region95: #{tpu_custom_call.1} parent=79 // pred_region
          %1256 = vsyncadd %s1248, 0
          %s1257 = smul.addr %s39, 2
          %s1258 = sadd.s32 %s40, %s1257
          %s1259 = smul.addr %s1258, 8
          %s1260 = scalar_lea.hbm %s15, %s1259
          %s1262 = sshll.u32 %s1251, 4
          %s1263 = int_to_ptr.vmem [resolvable:$true] %s1262
          %s1264 = sshll.u32 %s1260, 4
          %s1265 = int_to_ptr.hbm [resolvable:$true] %s1264
          %1267 = dma.vmem_to_hbm [thread:$0]  %s1263, 128, %s1265, %s1248
        $region96: #{tpu_custom_call.1} parent=79 // pred_fallthru
          _
      $region80: #{tpu_custom_call.1} parent=5 // pred_fallthru
        _
      %p1268 = scmp.le.s32.totalorder 2, %s30
      // Predicated region
      $region97: #{tpu_custom_call.1} parent=5 // pred_check
        %p1269 = pneg %p1268
      $region98: #{tpu_custom_call.1} parent=5 // pred_check_branch
        %1271 = sbr.rel (%p1269) target = $region100
      $region99: #{tpu_custom_call.1} parent=5 // pred_region
        %s1272 = ssub.s32 %s30, 2
        // Predicated region
        $region101: #{tpu_custom_call.1} parent=99 // pred_check
          %p1273 = pneg %p412
        $region102: #{tpu_custom_call.1} parent=99 // pred_check_branch
          %1275 = sbr.rel (%p1273) target = $region104
        $region103: #{tpu_custom_call.1} parent=99 // pred_region
          %s1276 = sand.u32 %s397, 1
          %s1277 = scalar_lea.sflag [#allocation6], %s1276
          %s1278 = sand.u32 %s397, 1
          %s1279 = smul.addr %s1278, 8
          %s1280 = scalar_lea.vmem [#allocation10], %s1279
          %1282 = dma.done %s1277, 128
        $region104: #{tpu_custom_call.1} parent=99 // pred_fallthru
          _
      $region100: #{tpu_custom_call.1} parent=5 // pred_fallthru
        _
    $region6: #{tpu_custom_call.1} parent=1 // loop_footer
      %s34 = sadd.s32 1, %s30
    $region7: #{tpu_custom_call.1} parent=1 // loop_footer_branch
      %29 = sbr.rel target = $region3
    $region8: #{tpu_custom_call.1} parent=1 // loop_exit
      _
    %1283 = vsyncpa [#allocation5], 1
    %s1284 = scalar_lea.sflag [#allocation5], 1
    %1285 = vsyncpa %s1284, 1
    %1286 = vsyncpa [#allocation8], 1
    %1287 = vsyncpa [#allocation6], 1
    %s1288 = scalar_lea.sflag [#allocation6], 1
    %1289 = vsyncpa %s1288, 1

</llo_original>
